<compile_context>
chip_gen: v7x
topology: tpu7x:2x2x1
jax: 0.10.0
libtpu: 0.0.40
codegen_flags: <defaults>
</compile_context>

<pallas_src>
import jax
import jax.numpy as jnp
from jax import lax
from jax.experimental import pallas as pl
from jax.experimental.pallas import tpu as pltpu

EPS = 1e-5


def _residual_block_kernel(x_ref, w1_ref, g1_ref, b1_ref,
                           w2_ref, g2_ref, b2_ref, out_ref, pad_ref):
    N, H, W, C = x_ref.shape
    Cout = w1_ref.shape[-1]
    M = N * H * W          # number of output pixels

    # ---- stage x into the zero-padded VMEM scratch (single memset; the border
    #      ring stays zero for the whole kernel, so it is reused for conv2) ----
    pad_ref[...] = jnp.zeros_like(pad_ref)
    pad_ref[:, 1:H + 1, 1:W + 1, :] = x_ref[...].astype(jnp.float32)

    def conv3x3(w_ref):
        # 3x3 SAME conv as 9 accumulated (M, C) @ (C, Cout) dots.  No im2col
        # matrix is materialized: each tap's LHS is a window of the padded
        # scratch whose reshape to (M, C) is tile-preserving (trailing
        # (W, C) = (8, 64) is one vreg tile; leading dims only stack rows).
        acc = None
        for k in range(9):
            dy, dx = k // 3, k % 3
            lhs = pad_ref[:, dy:dy + H, dx:dx + W, :].reshape(M, C)
            d = jnp.dot(lhs, w_ref[k], preferred_element_type=jnp.float32)
            acc = d if acc is None else acc + d
        return acc

    def bn_relu(acc, g_ref, b_ref):
        # Training-mode batch norm (biased variance) + ReLU.  The centered
        # activations are computed once and reused for variance and the
        # normalization; gamma is folded into the rsqrt scale so the
        # per-element work is one fma against two (1, Cout) broadcasts.
        mean = jnp.mean(acc, axis=0, keepdims=True)
        xc = acc - mean
        var = jnp.mean(xc * xc, axis=0, keepdims=True)
        scale = lax.rsqrt(var + EPS) * g_ref[...]
        return jnp.maximum(xc * scale + b_ref[...], 0.0)

    # ---- conv1 -> BN1 -> ReLU ----
    y1 = bn_relu(conv3x3(w1_ref), g1_ref, b1_ref)

    # overwrite the interior with y1; border is still zero -> no second memset.
    pad_ref[:, 1:H + 1, 1:W + 1, :] = y1.reshape(N, H, W, Cout)

    # ---- conv2 -> BN2 -> ReLU ----
    y2 = bn_relu(conv3x3(w2_ref), g2_ref, b2_ref)

    # ---- residual add + final ReLU, all in the (M, Cout) layout: the reshape
    #      of the input block is tile-preserving, so no XLU relayout here ----
    res = x_ref[...].astype(jnp.float32).reshape(M, C)
    out = jnp.maximum(res + y2, 0.0)
    out_ref[...] = out.reshape(N, H, W, Cout).astype(out_ref.dtype)


def residual_block(x_nchw, w1, g1, b1, w2, g2, b2):
    """x_nchw: (N,C,H,W); w1: (3,3,C,64) HWIO; w2: (3,3,64,64) HWIO; g*/b*: (64,)."""
    x = jnp.transpose(x_nchw, (0, 2, 3, 1))            # NCHW -> NHWC
    N, H, W, C = x.shape
    Cout = w1.shape[-1]
    assert C == Cout, "ResidualBlock is only well-formed for dim_in == 64"

    w1t = w1.reshape(9, C, Cout)                       # tap-major weight layout
    w2t = w2.reshape(9, Cout, Cout)
    g1r, b1r = g1.reshape(1, Cout), b1.reshape(1, Cout)
    g2r, b2r = g2.reshape(1, Cout), b2.reshape(1, Cout)

    def full(shape):
        return pl.BlockSpec(shape, lambda *_: (0,) * len(shape))

    out = pl.pallas_call(
        _residual_block_kernel,
        out_shape=jax.ShapeDtypeStruct((N, H, W, Cout), x.dtype),
        grid_spec=pltpu.PrefetchScalarGridSpec(
            num_scalar_prefetch=0,
            grid=(1,),
            in_specs=[
                full((N, H, W, C)),
                full((9, C, Cout)), full((1, Cout)), full((1, Cout)),
                full((9, Cout, Cout)), full((1, Cout)), full((1, Cout)),
            ],
            out_specs=full((N, H, W, Cout)),
            scratch_shapes=[pltpu.VMEM((N, H + 2, W + 2, Cout), jnp.float32)],
        ),
        compiler_params=pltpu.CompilerParams(
            dimension_semantics=("arbitrary",),
            vmem_limit_bytes=32 * 1024 * 1024),
    )(x, w1t, g1r, b1r, w2t, g2r, b2r)

    return jnp.transpose(out, (0, 3, 1, 2))            # NHWC -> NCHW


def _reference(x_nchw, w1, g1, b1, w2, g2, b2):
    x = jnp.transpose(x_nchw, (0, 2, 3, 1))

    def conv_bn_relu(inp, w, g, b):
        y = lax.conv_general_dilated(
            inp, w, (1, 1), 'SAME',
            dimension_numbers=('NHWC', 'HWIO', 'NHWC'))
        mean = jnp.mean(y, axis=(0, 1, 2))
        var = jnp.mean((y - mean) ** 2, axis=(0, 1, 2))
        y = (y - mean) * lax.rsqrt(var + EPS) * g + b
        return jnp.maximum(y, 0.0)

    y = conv_bn_relu(conv_bn_relu(x, w1, g1, b1), w2, g2, b2)
    out = jnp.maximum(x + y, 0.0)
    return jnp.transpose(out, (0, 3, 1, 2))


if __name__ == "__main__":
    N, C, H, W = 2, 64, 8, 8   # dim_in must be 64 for the module to be well-formed
    COUT = 64

    key = jax.random.PRNGKey(0)
    kx, kw1, kw2, kg1, kb1, kg2, kb2 = jax.random.split(key, 7)

    x = jax.random.normal(kx, (N, C, H, W), jnp.float32)             # NCHW input
    w1 = 0.1 * jax.random.normal(kw1, (3, 3, C, COUT), jnp.float32)  # HWIO
    w2 = 0.1 * jax.random.normal(kw2, (3, 3, COUT, COUT), jnp.float32)
    g1 = 1.0 + 0.1 * jax.random.normal(kg1, (COUT,), jnp.float32)    # BN gamma
    b1 = 0.05 * jax.random.normal(kb1, (COUT,), jnp.float32)         # BN beta
    g2 = 1.0 + 0.1 * jax.random.normal(kg2, (COUT,), jnp.float32)
    b2 = 0.05 * jax.random.normal(kb2, (COUT,), jnp.float32)

    out = jax.block_until_ready(residual_block(x, w1, g1, b1, w2, g2, b2))
    ref = jax.block_until_ready(_reference(x, w1, g1, b1, w2, g2, b2))

    assert out.shape == (N, COUT, H, W), out.shape
    assert jnp.allclose(out, ref, atol=1e-4, rtol=1e-4), \
        float(jnp.max(jnp.abs(out - ref)))
    print("KERNEL_OK")
</pallas_src>

<mosaic_0001>
module attributes {stable_mosaic.version = 11 : i64} {
  func.func @_residual_block_kernel(%arg0: i32, %arg1: memref<2x8x8x64xf32, #tpu.memory_space<vmem>>, %arg2: memref<9x64x64xf32, #tpu.memory_space<vmem>>, %arg3: memref<1x64xf32, #tpu.memory_space<vmem>>, %arg4: memref<1x64xf32, #tpu.memory_space<vmem>>, %arg5: memref<9x64x64xf32, #tpu.memory_space<vmem>>, %arg6: memref<1x64xf32, #tpu.memory_space<vmem>>, %arg7: memref<1x64xf32, #tpu.memory_space<vmem>>, %arg8: memref<2x8x8x64xf32, #tpu.memory_space<vmem>>, %arg9: memref<2x10x10x64xf32, #tpu.memory_space<vmem>>) attributes {dimension_semantics = [#tpu.dimension_semantics<arbitrary>], iteration_bounds = array<i64: 1>, scalar_prefetch = 0 : i64, scratch_operands = 1 : i64, tpu.core_type = #tpu.core_type<tc>, window_params = [{pipeline_mode = #tpu.pipeline_mode<synchronous>, transform_indices = @transform_0, window_bounds = array<i64: 2, 8, 8, 64>}, {pipeline_mode = #tpu.pipeline_mode<synchronous>, transform_indices = @transform_1, window_bounds = array<i64: 9, 64, 64>}, {pipeline_mode = #tpu.pipeline_mode<synchronous>, transform_indices = @transform_2, window_bounds = array<i64: 1, 64>}, {pipeline_mode = #tpu.pipeline_mode<synchronous>, transform_indices = @transform_3, window_bounds = array<i64: 1, 64>}, {pipeline_mode = #tpu.pipeline_mode<synchronous>, transform_indices = @transform_4, window_bounds = array<i64: 9, 64, 64>}, {pipeline_mode = #tpu.pipeline_mode<synchronous>, transform_indices = @transform_5, window_bounds = array<i64: 1, 64>}, {pipeline_mode = #tpu.pipeline_mode<synchronous>, transform_indices = @transform_6, window_bounds = array<i64: 1, 64>}, {pipeline_mode = #tpu.pipeline_mode<synchronous>, transform_indices = @transform_7, window_bounds = array<i64: 2, 8, 8, 64>}]} {
    %cst = arith.constant 0.000000e+00 : f32
    %0 = vector.broadcast %cst : f32 to vector<2x10x10x64xf32>
    %c0 = arith.constant 0 : index
    %c0_0 = arith.constant 0 : index
    %c0_1 = arith.constant 0 : index
    %c0_2 = arith.constant 0 : index
    %1 = vector.load %arg9[%c0, %c0_0, %c0_1, %c0_2] : memref<2x10x10x64xf32, #tpu.memory_space<vmem>>, vector<2x10x10x64xf32>
    tpu.vector_store %arg9[%c0, %c0_0, %c0_1, %c0_2], %0 {strides = array<i32>} : memref<2x10x10x64xf32, #tpu.memory_space<vmem>>, vector<2x10x10x64xf32>,
    %c0_3 = arith.constant 0 : index
    %c0_4 = arith.constant 0 : index
    %c0_5 = arith.constant 0 : index
    %c0_6 = arith.constant 0 : index
    %2 = vector.load %arg1[%c0_3, %c0_4, %c0_5, %c0_6] : memref<2x8x8x64xf32, #tpu.memory_space<vmem>>, vector<2x8x8x64xf32>
    %c0_7 = arith.constant 0 : index
    %c1 = arith.constant 1 : index
    %c1_8 = arith.constant 1 : index
    %c0_9 = arith.constant 0 : index
    %3 = vector.load %arg9[%c0_7, %c1, %c1_8, %c0_9] : memref<2x10x10x64xf32, #tpu.memory_space<vmem>>, vector<2x8x8x64xf32>
    tpu.vector_store %arg9[%c0_7, %c1, %c1_8, %c0_9], %2 {strides = array<i32>} : memref<2x10x10x64xf32, #tpu.memory_space<vmem>>, vector<2x8x8x64xf32>,
    %c0_10 = arith.constant 0 : index
    %c0_11 = arith.constant 0 : index
    %c0_12 = arith.constant 0 : index
    %c0_13 = arith.constant 0 : index
    %4 = vector.load %arg9[%c0_10, %c0_11, %c0_12, %c0_13] : memref<2x10x10x64xf32, #tpu.memory_space<vmem>>, vector<2x8x8x64xf32>
    %5 = vector.shape_cast %4 : vector<2x8x8x64xf32> to vector<128x64xf32>
    %c0_14 = arith.constant 0 : index
    %c0_15 = arith.constant 0 : index
    %c0_16 = arith.constant 0 : index
    %6 = vector.load %arg2[%c0_14, %c0_15, %c0_16] : memref<9x64x64xf32, #tpu.memory_space<vmem>>, vector<1x64x64xf32>
    %7 = vector.shape_cast %6 : vector<1x64x64xf32> to vector<64x64xf32>
    %cst_17 = arith.constant dense<0.000000e+00> : vector<128x64xf32>
    %8 = tpu.matmul %5, %7, %cst_17 {dimension_numbers = #tpu.dot_dimension_numbers<[1], [0], [0], [1], [0, 0, 1, 1], [], []>} : vector<128x64xf32>, vector<64x64xf32>, vector<128x64xf32> -> vector<128x64xf32>
    %c0_18 = arith.constant 0 : index
    %c0_19 = arith.constant 0 : index
    %c1_20 = arith.constant 1 : index
    %c0_21 = arith.constant 0 : index
    %9 = vector.load %arg9[%c0_18, %c0_19, %c1_20, %c0_21] : memref<2x10x10x64xf32, #tpu.memory_space<vmem>>, vector<2x8x8x64xf32>
    %10 = vector.shape_cast %9 : vector<2x8x8x64xf32> to vector<128x64xf32>
    %c1_22 = arith.constant 1 : index
    %c0_23 = arith.constant 0 : index
    %c0_24 = arith.constant 0 : index
    %11 = vector.load %arg2[%c1_22, %c0_23, %c0_24] : memref<9x64x64xf32, #tpu.memory_space<vmem>>, vector<1x64x64xf32>
    %12 = vector.shape_cast %11 : vector<1x64x64xf32> to vector<64x64xf32>
    %cst_25 = arith.constant dense<0.000000e+00> : vector<128x64xf32>
    %13 = tpu.matmul %10, %12, %cst_25 {dimension_numbers = #tpu.dot_dimension_numbers<[1], [0], [0], [1], [0, 0, 1, 1], [], []>} : vector<128x64xf32>, vector<64x64xf32>, vector<128x64xf32> -> vector<128x64xf32>
    %14 = arith.addf %8, %13 : vector<128x64xf32>
    %c0_26 = arith.constant 0 : index
    %c0_27 = arith.constant 0 : index
    %c2 = arith.constant 2 : index
    %c0_28 = arith.constant 0 : index
    %15 = vector.load %arg9[%c0_26, %c0_27, %c2, %c0_28] : memref<2x10x10x64xf32, #tpu.memory_space<vmem>>, vector<2x8x8x64xf32>
    %16 = vector.shape_cast %15 : vector<2x8x8x64xf32> to vector<128x64xf32>
    %c2_29 = arith.constant 2 : index
    %c0_30 = arith.constant 0 : index
    %c0_31 = arith.constant 0 : index
    %17 = vector.load %arg2[%c2_29, %c0_30, %c0_31] : memref<9x64x64xf32, #tpu.memory_space<vmem>>, vector<1x64x64xf32>
    %18 = vector.shape_cast %17 : vector<1x64x64xf32> to vector<64x64xf32>
    %cst_32 = arith.constant dense<0.000000e+00> : vector<128x64xf32>
    %19 = tpu.matmul %16, %18, %cst_32 {dimension_numbers = #tpu.dot_dimension_numbers<[1], [0], [0], [1], [0, 0, 1, 1], [], []>} : vector<128x64xf32>, vector<64x64xf32>, vector<128x64xf32> -> vector<128x64xf32>
    %20 = arith.addf %14, %19 : vector<128x64xf32>
    %c0_33 = arith.constant 0 : index
    %c1_34 = arith.constant 1 : index
    %c0_35 = arith.constant 0 : index
    %c0_36 = arith.constant 0 : index
    %21 = vector.load %arg9[%c0_33, %c1_34, %c0_35, %c0_36] : memref<2x10x10x64xf32, #tpu.memory_space<vmem>>, vector<2x8x8x64xf32>
    %22 = vector.shape_cast %21 : vector<2x8x8x64xf32> to vector<128x64xf32>
    %c3 = arith.constant 3 : index
    %c0_37 = arith.constant 0 : index
    %c0_38 = arith.constant 0 : index
    %23 = vector.load %arg2[%c3, %c0_37, %c0_38] : memref<9x64x64xf32, #tpu.memory_space<vmem>>, vector<1x64x64xf32>
    %24 = vector.shape_cast %23 : vector<1x64x64xf32> to vector<64x64xf32>
    %cst_39 = arith.constant dense<0.000000e+00> : vector<128x64xf32>
    %25 = tpu.matmul %22, %24, %cst_39 {dimension_numbers = #tpu.dot_dimension_numbers<[1], [0], [0], [1], [0, 0, 1, 1], [], []>} : vector<128x64xf32>, vector<64x64xf32>, vector<128x64xf32> -> vector<128x64xf32>
    %26 = arith.addf %20, %25 : vector<128x64xf32>
    %c0_40 = arith.constant 0 : index
    %c1_41 = arith.constant 1 : index
    %c1_42 = arith.constant 1 : index
    %c0_43 = arith.constant 0 : index
    %27 = vector.load %arg9[%c0_40, %c1_41, %c1_42, %c0_43] : memref<2x10x10x64xf32, #tpu.memory_space<vmem>>, vector<2x8x8x64xf32>
    %28 = vector.shape_cast %27 : vector<2x8x8x64xf32> to vector<128x64xf32>
    %c4 = arith.constant 4 : index
    %c0_44 = arith.constant 0 : index
    %c0_45 = arith.constant 0 : index
    %29 = vector.load %arg2[%c4, %c0_44, %c0_45] : memref<9x64x64xf32, #tpu.memory_space<vmem>>, vector<1x64x64xf32>
    %30 = vector.shape_cast %29 : vector<1x64x64xf32> to vector<64x64xf32>
    %cst_46 = arith.constant dense<0.000000e+00> : vector<128x64xf32>
    %31 = tpu.matmul %28, %30, %cst_46 {dimension_numbers = #tpu.dot_dimension_numbers<[1], [0], [0], [1], [0, 0, 1, 1], [], []>} : vector<128x64xf32>, vector<64x64xf32>, vector<128x64xf32> -> vector<128x64xf32>
    %32 = arith.addf %26, %31 : vector<128x64xf32>
    %c0_47 = arith.constant 0 : index
    %c1_48 = arith.constant 1 : index
    %c2_49 = arith.constant 2 : index
    %c0_50 = arith.constant 0 : index
    %33 = vector.load %arg9[%c0_47, %c1_48, %c2_49, %c0_50] : memref<2x10x10x64xf32, #tpu.memory_space<vmem>>, vector<2x8x8x64xf32>
    %34 = vector.shape_cast %33 : vector<2x8x8x64xf32> to vector<128x64xf32>
    %c5 = arith.constant 5 : index
    %c0_51 = arith.constant 0 : index
    %c0_52 = arith.constant 0 : index
    %35 = vector.load %arg2[%c5, %c0_51, %c0_52] : memref<9x64x64xf32, #tpu.memory_space<vmem>>, vector<1x64x64xf32>
    %36 = vector.shape_cast %35 : vector<1x64x64xf32> to vector<64x64xf32>
    %cst_53 = arith.constant dense<0.000000e+00> : vector<128x64xf32>
    %37 = tpu.matmul %34, %36, %cst_53 {dimension_numbers = #tpu.dot_dimension_numbers<[1], [0], [0], [1], [0, 0, 1, 1], [], []>} : vector<128x64xf32>, vector<64x64xf32>, vector<128x64xf32> -> vector<128x64xf32>
    %38 = arith.addf %32, %37 : vector<128x64xf32>
    %c0_54 = arith.constant 0 : index
    %c2_55 = arith.constant 2 : index
    %c0_56 = arith.constant 0 : index
    %c0_57 = arith.constant 0 : index
    %39 = vector.load %arg9[%c0_54, %c2_55, %c0_56, %c0_57] : memref<2x10x10x64xf32, #tpu.memory_space<vmem>>, vector<2x8x8x64xf32>
    %40 = vector.shape_cast %39 : vector<2x8x8x64xf32> to vector<128x64xf32>
    %c6 = arith.constant 6 : index
    %c0_58 = arith.constant 0 : index
    %c0_59 = arith.constant 0 : index
    %41 = vector.load %arg2[%c6, %c0_58, %c0_59] : memref<9x64x64xf32, #tpu.memory_space<vmem>>, vector<1x64x64xf32>
    %42 = vector.shape_cast %41 : vector<1x64x64xf32> to vector<64x64xf32>
    %cst_60 = arith.constant dense<0.000000e+00> : vector<128x64xf32>
    %43 = tpu.matmul %40, %42, %cst_60 {dimension_numbers = #tpu.dot_dimension_numbers<[1], [0], [0], [1], [0, 0, 1, 1], [], []>} : vector<128x64xf32>, vector<64x64xf32>, vector<128x64xf32> -> vector<128x64xf32>
    %44 = arith.addf %38, %43 : vector<128x64xf32>
    %c0_61 = arith.constant 0 : index
    %c2_62 = arith.constant 2 : index
    %c1_63 = arith.constant 1 : index
    %c0_64 = arith.constant 0 : index
    %45 = vector.load %arg9[%c0_61, %c2_62, %c1_63, %c0_64] : memref<2x10x10x64xf32, #tpu.memory_space<vmem>>, vector<2x8x8x64xf32>
    %46 = vector.shape_cast %45 : vector<2x8x8x64xf32> to vector<128x64xf32>
    %c7 = arith.constant 7 : index
    %c0_65 = arith.constant 0 : index
    %c0_66 = arith.constant 0 : index
    %47 = vector.load %arg2[%c7, %c0_65, %c0_66] : memref<9x64x64xf32, #tpu.memory_space<vmem>>, vector<1x64x64xf32>
    %48 = vector.shape_cast %47 : vector<1x64x64xf32> to vector<64x64xf32>
    %cst_67 = arith.constant dense<0.000000e+00> : vector<128x64xf32>
    %49 = tpu.matmul %46, %48, %cst_67 {dimension_numbers = #tpu.dot_dimension_numbers<[1], [0], [0], [1], [0, 0, 1, 1], [], []>} : vector<128x64xf32>, vector<64x64xf32>, vector<128x64xf32> -> vector<128x64xf32>
    %50 = arith.addf %44, %49 : vector<128x64xf32>
    %c0_68 = arith.constant 0 : index
    %c2_69 = arith.constant 2 : index
    %c2_70 = arith.constant 2 : index
    %c0_71 = arith.constant 0 : index
    %51 = vector.load %arg9[%c0_68, %c2_69, %c2_70, %c0_71] : memref<2x10x10x64xf32, #tpu.memory_space<vmem>>, vector<2x8x8x64xf32>
    %52 = vector.shape_cast %51 : vector<2x8x8x64xf32> to vector<128x64xf32>
    %c8 = arith.constant 8 : index
    %c0_72 = arith.constant 0 : index
    %c0_73 = arith.constant 0 : index
    %53 = vector.load %arg2[%c8, %c0_72, %c0_73] : memref<9x64x64xf32, #tpu.memory_space<vmem>>, vector<1x64x64xf32>
    %54 = vector.shape_cast %53 : vector<1x64x64xf32> to vector<64x64xf32>
    %cst_74 = arith.constant dense<0.000000e+00> : vector<128x64xf32>
    %55 = tpu.matmul %52, %54, %cst_74 {dimension_numbers = #tpu.dot_dimension_numbers<[1], [0], [0], [1], [0, 0, 1, 1], [], []>} : vector<128x64xf32>, vector<64x64xf32>, vector<128x64xf32> -> vector<128x64xf32>
    %56 = arith.addf %50, %55 : vector<128x64xf32>
    %cst_75 = arith.constant dense<0.000000e+00> : vector<64xf32>
    %57 = vector.multi_reduction <add>, %56, %cst_75 [0] : vector<128x64xf32> to vector<64xf32>
    %58 = vector.shape_cast %57 : vector<64xf32> to vector<1x64xf32>
    %cst_76 = arith.constant 1.280000e+02 : f32
    %59 = vector.broadcast %cst_76 : f32 to vector<1x64xf32>
    %60 = arith.divf %58, %59 : vector<1x64xf32>
    %61 = vector.broadcast %60 : vector<1x64xf32> to vector<128x64xf32>
    %62 = arith.subf %56, %61 : vector<128x64xf32>
    %63 = arith.mulf %62, %62 : vector<128x64xf32>
    %cst_77 = arith.constant dense<0.000000e+00> : vector<64xf32>
    %64 = vector.multi_reduction <add>, %63, %cst_77 [0] : vector<128x64xf32> to vector<64xf32>
    %65 = vector.shape_cast %64 : vector<64xf32> to vector<1x64xf32>
    %cst_78 = arith.constant 1.280000e+02 : f32
    %66 = vector.broadcast %cst_78 : f32 to vector<1x64xf32>
    %67 = arith.divf %65, %66 : vector<1x64xf32>
    %cst_79 = arith.constant 9.99999974E-6 : f32
    %68 = vector.broadcast %cst_79 : f32 to vector<1x64xf32>
    %69 = arith.addf %67, %68 : vector<1x64xf32>
    %70 = math.rsqrt %69 : vector<1x64xf32>
    %c0_80 = arith.constant 0 : index
    %c0_81 = arith.constant 0 : index
    %71 = vector.load %arg3[%c0_80, %c0_81] : memref<1x64xf32, #tpu.memory_space<vmem>>, vector<1x64xf32>
    %72 = arith.mulf %70, %71 : vector<1x64xf32>
    %73 = vector.broadcast %72 : vector<1x64xf32> to vector<128x64xf32>
    %74 = arith.mulf %62, %73 : vector<128x64xf32>
    %c0_82 = arith.constant 0 : index
    %c0_83 = arith.constant 0 : index
    %75 = vector.load %arg4[%c0_82, %c0_83] : memref<1x64xf32, #tpu.memory_space<vmem>>, vector<1x64xf32>
    %76 = vector.broadcast %75 : vector<1x64xf32> to vector<128x64xf32>
    %77 = arith.addf %74, %76 : vector<128x64xf32>
    %cst_84 = arith.constant 0.000000e+00 : f32
    %78 = vector.broadcast %cst_84 : f32 to vector<128x64xf32>
    %79 = arith.maximumf %77, %78 : vector<128x64xf32>
    %80 = vector.shape_cast %79 : vector<128x64xf32> to vector<2x8x8x64xf32>
    %c0_85 = arith.constant 0 : index
    %c1_86 = arith.constant 1 : index
    %c1_87 = arith.constant 1 : index
    %c0_88 = arith.constant 0 : index
    %81 = vector.load %arg9[%c0_85, %c1_86, %c1_87, %c0_88] : memref<2x10x10x64xf32, #tpu.memory_space<vmem>>, vector<2x8x8x64xf32>
    tpu.vector_store %arg9[%c0_85, %c1_86, %c1_87, %c0_88], %80 {strides = array<i32>} : memref<2x10x10x64xf32, #tpu.memory_space<vmem>>, vector<2x8x8x64xf32>,
    %c0_89 = arith.constant 0 : index
    %c0_90 = arith.constant 0 : index
    %c0_91 = arith.constant 0 : index
    %c0_92 = arith.constant 0 : index
    %82 = vector.load %arg9[%c0_89, %c0_90, %c0_91, %c0_92] : memref<2x10x10x64xf32, #tpu.memory_space<vmem>>, vector<2x8x8x64xf32>
    %83 = vector.shape_cast %82 : vector<2x8x8x64xf32> to vector<128x64xf32>
    %c0_93 = arith.constant 0 : index
    %c0_94 = arith.constant 0 : index
    %c0_95 = arith.constant 0 : index
    %84 = vector.load %arg5[%c0_93, %c0_94, %c0_95] : memref<9x64x64xf32, #tpu.memory_space<vmem>>, vector<1x64x64xf32>
    %85 = vector.shape_cast %84 : vector<1x64x64xf32> to vector<64x64xf32>
    %cst_96 = arith.constant dense<0.000000e+00> : vector<128x64xf32>
    %86 = tpu.matmul %83, %85, %cst_96 {dimension_numbers = #tpu.dot_dimension_numbers<[1], [0], [0], [1], [0, 0, 1, 1], [], []>} : vector<128x64xf32>, vector<64x64xf32>, vector<128x64xf32> -> vector<128x64xf32>
    %c0_97 = arith.constant 0 : index
    %c0_98 = arith.constant 0 : index
    %c1_99 = arith.constant 1 : index
    %c0_100 = arith.constant 0 : index
    %87 = vector.load %arg9[%c0_97, %c0_98, %c1_99, %c0_100] : memref<2x10x10x64xf32, #tpu.memory_space<vmem>>, vector<2x8x8x64xf32>
    %88 = vector.shape_cast %87 : vector<2x8x8x64xf32> to vector<128x64xf32>
    %c1_101 = arith.constant 1 : index
    %c0_102 = arith.constant 0 : index
    %c0_103 = arith.constant 0 : index
    %89 = vector.load %arg5[%c1_101, %c0_102, %c0_103] : memref<9x64x64xf32, #tpu.memory_space<vmem>>, vector<1x64x64xf32>
    %90 = vector.shape_cast %89 : vector<1x64x64xf32> to vector<64x64xf32>
    %cst_104 = arith.constant dense<0.000000e+00> : vector<128x64xf32>
    %91 = tpu.matmul %88, %90, %cst_104 {dimension_numbers = #tpu.dot_dimension_numbers<[1], [0], [0], [1], [0, 0, 1, 1], [], []>} : vector<128x64xf32>, vector<64x64xf32>, vector<128x64xf32> -> vector<128x64xf32>
    %92 = arith.addf %86, %91 : vector<128x64xf32>
    %c0_105 = arith.constant 0 : index
    %c0_106 = arith.constant 0 : index
    %c2_107 = arith.constant 2 : index
    %c0_108 = arith.constant 0 : index
    %93 = vector.load %arg9[%c0_105, %c0_106, %c2_107, %c0_108] : memref<2x10x10x64xf32, #tpu.memory_space<vmem>>, vector<2x8x8x64xf32>
    %94 = vector.shape_cast %93 : vector<2x8x8x64xf32> to vector<128x64xf32>
    %c2_109 = arith.constant 2 : index
    %c0_110 = arith.constant 0 : index
    %c0_111 = arith.constant 0 : index
    %95 = vector.load %arg5[%c2_109, %c0_110, %c0_111] : memref<9x64x64xf32, #tpu.memory_space<vmem>>, vector<1x64x64xf32>
    %96 = vector.shape_cast %95 : vector<1x64x64xf32> to vector<64x64xf32>
    %cst_112 = arith.constant dense<0.000000e+00> : vector<128x64xf32>
    %97 = tpu.matmul %94, %96, %cst_112 {dimension_numbers = #tpu.dot_dimension_numbers<[1], [0], [0], [1], [0, 0, 1, 1], [], []>} : vector<128x64xf32>, vector<64x64xf32>, vector<128x64xf32> -> vector<128x64xf32>
    %98 = arith.addf %92, %97 : vector<128x64xf32>
    %c0_113 = arith.constant 0 : index
    %c1_114 = arith.constant 1 : index
    %c0_115 = arith.constant 0 : index
    %c0_116 = arith.constant 0 : index
    %99 = vector.load %arg9[%c0_113, %c1_114, %c0_115, %c0_116] : memref<2x10x10x64xf32, #tpu.memory_space<vmem>>, vector<2x8x8x64xf32>
    %100 = vector.shape_cast %99 : vector<2x8x8x64xf32> to vector<128x64xf32>
    %c3_117 = arith.constant 3 : index
    %c0_118 = arith.constant 0 : index
    %c0_119 = arith.constant 0 : index
    %101 = vector.load %arg5[%c3_117, %c0_118, %c0_119] : memref<9x64x64xf32, #tpu.memory_space<vmem>>, vector<1x64x64xf32>
    %102 = vector.shape_cast %101 : vector<1x64x64xf32> to vector<64x64xf32>
    %cst_120 = arith.constant dense<0.000000e+00> : vector<128x64xf32>
    %103 = tpu.matmul %100, %102, %cst_120 {dimension_numbers = #tpu.dot_dimension_numbers<[1], [0], [0], [1], [0, 0, 1, 1], [], []>} : vector<128x64xf32>, vector<64x64xf32>, vector<128x64xf32> -> vector<128x64xf32>
    %104 = arith.addf %98, %103 : vector<128x64xf32>
    %c0_121 = arith.constant 0 : index
    %c1_122 = arith.constant 1 : index
    %c1_123 = arith.constant 1 : index
    %c0_124 = arith.constant 0 : index
    %105 = vector.load %arg9[%c0_121, %c1_122, %c1_123, %c0_124] : memref<2x10x10x64xf32, #tpu.memory_space<vmem>>, vector<2x8x8x64xf32>
    %106 = vector.shape_cast %105 : vector<2x8x8x64xf32> to vector<128x64xf32>
    %c4_125 = arith.constant 4 : index
    %c0_126 = arith.constant 0 : index
    %c0_127 = arith.constant 0 : index
    %107 = vector.load %arg5[%c4_125, %c0_126, %c0_127] : memref<9x64x64xf32, #tpu.memory_space<vmem>>, vector<1x64x64xf32>
    %108 = vector.shape_cast %107 : vector<1x64x64xf32> to vector<64x64xf32>
    %cst_128 = arith.constant dense<0.000000e+00> : vector<128x64xf32>
    %109 = tpu.matmul %106, %108, %cst_128 {dimension_numbers = #tpu.dot_dimension_numbers<[1], [0], [0], [1], [0, 0, 1, 1], [], []>} : vector<128x64xf32>, vector<64x64xf32>, vector<128x64xf32> -> vector<128x64xf32>
    %110 = arith.addf %104, %109 : vector<128x64xf32>
    %c0_129 = arith.constant 0 : index
    %c1_130 = arith.constant 1 : index
    %c2_131 = arith.constant 2 : index
    %c0_132 = arith.constant 0 : index
    %111 = vector.load %arg9[%c0_129, %c1_130, %c2_131, %c0_132] : memref<2x10x10x64xf32, #tpu.memory_space<vmem>>, vector<2x8x8x64xf32>
    %112 = vector.shape_cast %111 : vector<2x8x8x64xf32> to vector<128x64xf32>
    %c5_133 = arith.constant 5 : index
    %c0_134 = arith.constant 0 : index
    %c0_135 = arith.constant 0 : index
    %113 = vector.load %arg5[%c5_133, %c0_134, %c0_135] : memref<9x64x64xf32, #tpu.memory_space<vmem>>, vector<1x64x64xf32>
    %114 = vector.shape_cast %113 : vector<1x64x64xf32> to vector<64x64xf32>
    %cst_136 = arith.constant dense<0.000000e+00> : vector<128x64xf32>
    %115 = tpu.matmul %112, %114, %cst_136 {dimension_numbers = #tpu.dot_dimension_numbers<[1], [0], [0], [1], [0, 0, 1, 1], [], []>} : vector<128x64xf32>, vector<64x64xf32>, vector<128x64xf32> -> vector<128x64xf32>
    %116 = arith.addf %110, %115 : vector<128x64xf32>
    %c0_137 = arith.constant 0 : index
    %c2_138 = arith.constant 2 : index
    %c0_139 = arith.constant 0 : index
    %c0_140 = arith.constant 0 : index
    %117 = vector.load %arg9[%c0_137, %c2_138, %c0_139, %c0_140] : memref<2x10x10x64xf32, #tpu.memory_space<vmem>>, vector<2x8x8x64xf32>
    %118 = vector.shape_cast %117 : vector<2x8x8x64xf32> to vector<128x64xf32>
    %c6_141 = arith.constant 6 : index
    %c0_142 = arith.constant 0 : index
    %c0_143 = arith.constant 0 : index
    %119 = vector.load %arg5[%c6_141, %c0_142, %c0_143] : memref<9x64x64xf32, #tpu.memory_space<vmem>>, vector<1x64x64xf32>
    %120 = vector.shape_cast %119 : vector<1x64x64xf32> to vector<64x64xf32>
    %cst_144 = arith.constant dense<0.000000e+00> : vector<128x64xf32>
    %121 = tpu.matmul %118, %120, %cst_144 {dimension_numbers = #tpu.dot_dimension_numbers<[1], [0], [0], [1], [0, 0, 1, 1], [], []>} : vector<128x64xf32>, vector<64x64xf32>, vector<128x64xf32> -> vector<128x64xf32>
    %122 = arith.addf %116, %121 : vector<128x64xf32>
    %c0_145 = arith.constant 0 : index
    %c2_146 = arith.constant 2 : index
    %c1_147 = arith.constant 1 : index
    %c0_148 = arith.constant 0 : index
    %123 = vector.load %arg9[%c0_145, %c2_146, %c1_147, %c0_148] : memref<2x10x10x64xf32, #tpu.memory_space<vmem>>, vector<2x8x8x64xf32>
    %124 = vector.shape_cast %123 : vector<2x8x8x64xf32> to vector<128x64xf32>
    %c7_149 = arith.constant 7 : index
    %c0_150 = arith.constant 0 : index
    %c0_151 = arith.constant 0 : index
    %125 = vector.load %arg5[%c7_149, %c0_150, %c0_151] : memref<9x64x64xf32, #tpu.memory_space<vmem>>, vector<1x64x64xf32>
    %126 = vector.shape_cast %125 : vector<1x64x64xf32> to vector<64x64xf32>
    %cst_152 = arith.constant dense<0.000000e+00> : vector<128x64xf32>
    %127 = tpu.matmul %124, %126, %cst_152 {dimension_numbers = #tpu.dot_dimension_numbers<[1], [0], [0], [1], [0, 0, 1, 1], [], []>} : vector<128x64xf32>, vector<64x64xf32>, vector<128x64xf32> -> vector<128x64xf32>
    %128 = arith.addf %122, %127 : vector<128x64xf32>
    %c0_153 = arith.constant 0 : index
    %c2_154 = arith.constant 2 : index
    %c2_155 = arith.constant 2 : index
    %c0_156 = arith.constant 0 : index
    %129 = vector.load %arg9[%c0_153, %c2_154, %c2_155, %c0_156] : memref<2x10x10x64xf32, #tpu.memory_space<vmem>>, vector<2x8x8x64xf32>
    %130 = vector.shape_cast %129 : vector<2x8x8x64xf32> to vector<128x64xf32>
    %c8_157 = arith.constant 8 : index
    %c0_158 = arith.constant 0 : index
    %c0_159 = arith.constant 0 : index
    %131 = vector.load %arg5[%c8_157, %c0_158, %c0_159] : memref<9x64x64xf32, #tpu.memory_space<vmem>>, vector<1x64x64xf32>
    %132 = vector.shape_cast %131 : vector<1x64x64xf32> to vector<64x64xf32>
    %cst_160 = arith.constant dense<0.000000e+00> : vector<128x64xf32>
    %133 = tpu.matmul %130, %132, %cst_160 {dimension_numbers = #tpu.dot_dimension_numbers<[1], [0], [0], [1], [0, 0, 1, 1], [], []>} : vector<128x64xf32>, vector<64x64xf32>, vector<128x64xf32> -> vector<128x64xf32>
    %134 = arith.addf %128, %133 : vector<128x64xf32>
    %cst_161 = arith.constant dense<0.000000e+00> : vector<64xf32>
    %135 = vector.multi_reduction <add>, %134, %cst_161 [0] : vector<128x64xf32> to vector<64xf32>
    %136 = vector.shape_cast %135 : vector<64xf32> to vector<1x64xf32>
    %cst_162 = arith.constant 1.280000e+02 : f32
    %137 = vector.broadcast %cst_162 : f32 to vector<1x64xf32>
    %138 = arith.divf %136, %137 : vector<1x64xf32>
    %139 = vector.broadcast %138 : vector<1x64xf32> to vector<128x64xf32>
    %140 = arith.subf %134, %139 : vector<128x64xf32>
    %141 = arith.mulf %140, %140 : vector<128x64xf32>
    %cst_163 = arith.constant dense<0.000000e+00> : vector<64xf32>
    %142 = vector.multi_reduction <add>, %141, %cst_163 [0] : vector<128x64xf32> to vector<64xf32>
    %143 = vector.shape_cast %142 : vector<64xf32> to vector<1x64xf32>
    %cst_164 = arith.constant 1.280000e+02 : f32
    %144 = vector.broadcast %cst_164 : f32 to vector<1x64xf32>
    %145 = arith.divf %143, %144 : vector<1x64xf32>
    %cst_165 = arith.constant 9.99999974E-6 : f32
    %146 = vector.broadcast %cst_165 : f32 to vector<1x64xf32>
    %147 = arith.addf %145, %146 : vector<1x64xf32>
    %148 = math.rsqrt %147 : vector<1x64xf32>
    %c0_166 = arith.constant 0 : index
    %c0_167 = arith.constant 0 : index
    %149 = vector.load %arg6[%c0_166, %c0_167] : memref<1x64xf32, #tpu.memory_space<vmem>>, vector<1x64xf32>
    %150 = arith.mulf %148, %149 : vector<1x64xf32>
    %151 = vector.broadcast %150 : vector<1x64xf32> to vector<128x64xf32>
    %152 = arith.mulf %140, %151 : vector<128x64xf32>
    %c0_168 = arith.constant 0 : index
    %c0_169 = arith.constant 0 : index
    %153 = vector.load %arg7[%c0_168, %c0_169] : memref<1x64xf32, #tpu.memory_space<vmem>>, vector<1x64xf32>
    %154 = vector.broadcast %153 : vector<1x64xf32> to vector<128x64xf32>
    %155 = arith.addf %152, %154 : vector<128x64xf32>
    %cst_170 = arith.constant 0.000000e+00 : f32
    %156 = vector.broadcast %cst_170 : f32 to vector<128x64xf32>
    %157 = arith.maximumf %155, %156 : vector<128x64xf32>
    %c0_171 = arith.constant 0 : index
    %c0_172 = arith.constant 0 : index
    %c0_173 = arith.constant 0 : index
    %c0_174 = arith.constant 0 : index
    %158 = vector.load %arg1[%c0_171, %c0_172, %c0_173, %c0_174] : memref<2x8x8x64xf32, #tpu.memory_space<vmem>>, vector<2x8x8x64xf32>
    %159 = vector.shape_cast %158 : vector<2x8x8x64xf32> to vector<128x64xf32>
    %160 = arith.addf %159, %157 : vector<128x64xf32>
    %cst_175 = arith.constant 0.000000e+00 : f32
    %161 = vector.broadcast %cst_175 : f32 to vector<128x64xf32>
    %162 = arith.maximumf %160, %161 : vector<128x64xf32>
    %163 = vector.shape_cast %162 : vector<128x64xf32> to vector<2x8x8x64xf32>
    %c0_176 = arith.constant 0 : index
    %c0_177 = arith.constant 0 : index
    %c0_178 = arith.constant 0 : index
    %c0_179 = arith.constant 0 : index
    %164 = vector.load %arg8[%c0_176, %c0_177, %c0_178, %c0_179] : memref<2x8x8x64xf32, #tpu.memory_space<vmem>>, vector<2x8x8x64xf32>
    tpu.vector_store %arg8[%c0_176, %c0_177, %c0_178, %c0_179], %163 {strides = array<i32>} : memref<2x8x8x64xf32, #tpu.memory_space<vmem>>, vector<2x8x8x64xf32>,
    return
  }
  func.func @transform_0(%arg0: i32) -> (i32, i32, i32, i32) {
    %c0_i32 = arith.constant 0 : i32
    %c0_i32_0 = arith.constant 0 : i32
    %c0_i32_1 = arith.constant 0 : i32
    %c0_i32_2 = arith.constant 0 : i32
    %c0_i32_3 = arith.constant 0 : i32
    return %c0_i32, %c0_i32_0, %c0_i32_1, %c0_i32_2 : i32, i32, i32, i32
  }
  func.func @transform_1(%arg0: i32) -> (i32, i32, i32) {
    %c0_i32 = arith.constant 0 : i32
    %c0_i32_0 = arith.constant 0 : i32
    %c0_i32_1 = arith.constant 0 : i32
    %c0_i32_2 = arith.constant 0 : i32
    return %c0_i32, %c0_i32_0, %c0_i32_1 : i32, i32, i32
  }
  func.func @transform_2(%arg0: i32) -> (i32, i32) {
    %c0_i32 = arith.constant 0 : i32
    %c0_i32_0 = arith.constant 0 : i32
    %c0_i32_1 = arith.constant 0 : i32
    return %c0_i32, %c0_i32_0 : i32, i32
  }
  func.func @transform_3(%arg0: i32) -> (i32, i32) {
    %c0_i32 = arith.constant 0 : i32
    %c0_i32_0 = arith.constant 0 : i32
    %c0_i32_1 = arith.constant 0 : i32
    return %c0_i32, %c0_i32_0 : i32, i32
  }
  func.func @transform_4(%arg0: i32) -> (i32, i32, i32) {
    %c0_i32 = arith.constant 0 : i32
    %c0_i32_0 = arith.constant 0 : i32
    %c0_i32_1 = arith.constant 0 : i32
    %c0_i32_2 = arith.constant 0 : i32
    return %c0_i32, %c0_i32_0, %c0_i32_1 : i32, i32, i32
  }
  func.func @transform_5(%arg0: i32) -> (i32, i32) {
    %c0_i32 = arith.constant 0 : i32
    %c0_i32_0 = arith.constant 0 : i32
    %c0_i32_1 = arith.constant 0 : i32
    return %c0_i32, %c0_i32_0 : i32, i32
  }
  func.func @transform_6(%arg0: i32) -> (i32, i32) {
    %c0_i32 = arith.constant 0 : i32
    %c0_i32_0 = arith.constant 0 : i32
    %c0_i32_1 = arith.constant 0 : i32
    return %c0_i32, %c0_i32_0 : i32, i32
  }
  func.func @transform_7(%arg0: i32) -> (i32, i32, i32, i32) {
    %c0_i32 = arith.constant 0 : i32
    %c0_i32_0 = arith.constant 0 : i32
    %c0_i32_1 = arith.constant 0 : i32
    %c0_i32_2 = arith.constant 0 : i32
    %c0_i32_3 = arith.constant 0 : i32
    return %c0_i32, %c0_i32_0, %c0_i32_1, %c0_i32_2 : i32, i32, i32, i32
  }
}

</mosaic_0001>

<llo_original>
// kernel: tpu_custom_call.1
$region0: #{tpu_custom_call.1}
  #allocation0 [shape = 'u32[]', space=smem, size = 0x4, offset = 0x4, fixed_abs, tag = 'smem constant byte address 0x4 - core index']
  #allocation1 [shape = 'u32[144,128]{1,0:T(1,128)}', space=vmem, size = 0x12000, scoped, tag = 'internal scratch']
  #allocation2 [shape = 'f32[2,10,10,64]{3,2,1,0:T(8,128)}', space=vmem, size = 0x28000, scoped, tag = 'scratch operand']
  %s0 = inlined_call_operand.hbm [shape: f32[2,8,8,64], index: 0, kind: input, shape index: {}]
  %s1 = inlined_call_operand.hbm [shape: f32[9,64,64], index: 1, kind: input, shape index: {}]
  %s2 = inlined_call_operand.vmem [shape: f32[1,64], index: 2, kind: input, shape index: {}]
  %s3 = inlined_call_operand.vmem [shape: f32[1,64], index: 3, kind: input, shape index: {}]
  %s4 = inlined_call_operand.hbm [shape: f32[9,64,64], index: 4, kind: input, shape index: {}]
  %s5 = inlined_call_operand.vmem [shape: f32[1,64], index: 5, kind: input, shape index: {}]
  %s6 = inlined_call_operand.vmem [shape: f32[1,64], index: 6, kind: input, shape index: {}]
  %s7 = inlined_call_operand.hbm [shape: f32[2,8,8,64], index: 7, kind: output, shape index: {}]
  %s8 = sld [smem:[#allocation0]]
  $region50: #{tpu_custom_call.1} parent=0
    _
  %s10 = ssub.s32 1, %s8
  %s11 = scalar_select 0, %s10, %s8
  $region1: #{tpu_custom_call.1} parent=0
    #allocation3 [shape = 'u8[65536]{0}', space=vmem, size = 0x10000, scoped, tag = 'input window, operand 0, single buffered']
    #allocation4 [shape = 's32[1]{0}', space=sflag, size = 0x4, scoped, tag = 'scoped memory for tpu_custom_call.1']
    #allocation5 [shape = 's32[1]{0}', space=sflag, size = 0x4, scoped, tag = 'scoped memory for tpu_custom_call.1']
    #allocation6 [shape = 'u8[294912]{0}', space=vmem, size = 0x48000, scoped, tag = 'input window, operand 1, single buffered']
    #allocation7 [shape = 's32[1]{0}', space=sflag, size = 0x4, scoped, tag = 'scoped memory for tpu_custom_call.1']
    #allocation8 [shape = 'u8[294912]{0}', space=vmem, size = 0x48000, scoped, tag = 'input window, operand 4, single buffered']
    #allocation9 [shape = 'u8[65536]{0}', space=vmem, size = 0x10000, scoped, tag = 'output window, operand 0, single buffered']
    %12 = vsyncpa [#allocation4], 0
    %13 = vsyncpa [#allocation7], 0
    %14 = vsyncpa [#allocation5], 0
    // Predicated region
    $region2: #{tpu_custom_call.1} parent=1 // pred_check
      _
    $region3: #{tpu_custom_call.1} parent=1 // pred_check_branch
      %16 = sbr.rel (0) target = $region5
    $region4: #{tpu_custom_call.1} parent=1 // pred_region
      %s18 = ssub.s32 2048, 2048
      %19 = vsyncadd [#allocation4], %s18
      %s20 = sshll.u32 [#allocation3], 4
      %s21 = int_to_ptr.vmem [resolvable:$true] %s20
      %26 = dma.hbm_to_vmem [thread:$0]  %s0, 2048, %s21, [#allocation4], 128, 128, 8
    $region5: #{tpu_custom_call.1} parent=1 // pred_fallthru
      _
    // Predicated region
    $region6: #{tpu_custom_call.1} parent=1 // pred_check
      _
    $region7: #{tpu_custom_call.1} parent=1 // pred_check_branch
      %28 = sbr.rel (0) target = $region9
    $region8: #{tpu_custom_call.1} parent=1 // pred_region
      %s30 = ssub.s32 9216, 9216
      %31 = vsyncadd [#allocation7], %s30
      %s32 = sshll.u32 [#allocation6], 4
      %s33 = int_to_ptr.vmem [resolvable:$true] %s32
      %38 = dma.hbm_to_vmem [thread:$0]  %s1, 9216, %s33, [#allocation7], 128, 128, 8
    $region9: #{tpu_custom_call.1} parent=1 // pred_fallthru
      _
    // Predicated region
    $region10: #{tpu_custom_call.1} parent=1 // pred_check
      _
    $region11: #{tpu_custom_call.1} parent=1 // pred_check_branch
      %40 = sbr.rel (0) target = $region13
    $region12: #{tpu_custom_call.1} parent=1 // pred_region
      _
    $region13: #{tpu_custom_call.1} parent=1 // pred_fallthru
      _
    // Predicated region
    $region14: #{tpu_custom_call.1} parent=1 // pred_check
      _
    $region15: #{tpu_custom_call.1} parent=1 // pred_check_branch
      %42 = sbr.rel (0) target = $region17
    $region16: #{tpu_custom_call.1} parent=1 // pred_region
      _
    $region17: #{tpu_custom_call.1} parent=1 // pred_fallthru
      _
    // Predicated region
    $region18: #{tpu_custom_call.1} parent=1 // pred_check
      _
    $region19: #{tpu_custom_call.1} parent=1 // pred_check_branch
      %44 = sbr.rel (0) target = $region21
    $region20: #{tpu_custom_call.1} parent=1 // pred_region
      %s46 = ssub.s32 9216, 9216
      %47 = vsyncadd [#allocation7], %s46
      %s48 = sshll.u32 [#allocation8], 4
      %s49 = int_to_ptr.vmem [resolvable:$true] %s48
      %54 = dma.hbm_to_vmem [thread:$0]  %s4, 9216, %s49, [#allocation7], 128, 128, 8
    $region21: #{tpu_custom_call.1} parent=1 // pred_fallthru
      _
    // Predicated region
    $region22: #{tpu_custom_call.1} parent=1 // pred_check
      _
    $region23: #{tpu_custom_call.1} parent=1 // pred_check_branch
      %56 = sbr.rel (0) target = $region25
    $region24: #{tpu_custom_call.1} parent=1 // pred_region
      _
    $region25: #{tpu_custom_call.1} parent=1 // pred_fallthru
      _
    // Predicated region
    $region26: #{tpu_custom_call.1} parent=1 // pred_check
      _
    $region27: #{tpu_custom_call.1} parent=1 // pred_check_branch
      %58 = sbr.rel (0) target = $region29
    $region28: #{tpu_custom_call.1} parent=1 // pred_region
      _
    $region29: #{tpu_custom_call.1} parent=1 // pred_fallthru
      _
    // Predicated region
    $region30: #{tpu_custom_call.1} parent=1 // pred_check
      _
    $region31: #{tpu_custom_call.1} parent=1 // pred_check_branch
      %60 = sbr.rel (0) target = $region33
    $region32: #{tpu_custom_call.1} parent=1 // pred_region
      %61 = dma.done [#allocation4], 2048
    $region33: #{tpu_custom_call.1} parent=1 // pred_fallthru
      _
    // Predicated region
    $region34: #{tpu_custom_call.1} parent=1 // pred_check
      _
    $region35: #{tpu_custom_call.1} parent=1 // pred_check_branch
      %63 = sbr.rel (0) target = $region37
    $region36: #{tpu_custom_call.1} parent=1 // pred_region
      %64 = dma.done [#allocation7], 9216
    $region37: #{tpu_custom_call.1} parent=1 // pred_fallthru
      _
    // Predicated region
    $region38: #{tpu_custom_call.1} parent=1 // pred_check
      _
    $region39: #{tpu_custom_call.1} parent=1 // pred_check_branch
      %66 = sbr.rel (0) target = $region41
    $region40: #{tpu_custom_call.1} parent=1 // pred_region
      %67 = dma.done [#allocation7], 9216
    $region41: #{tpu_custom_call.1} parent=1 // pred_fallthru
      _
    %vm68 = vcmask 523264
    %69 = vst.msk [vmem:[#allocation2] sm:$0xff] %vm68, 0.0
    %vm70 = vcmask 517120
    %71 = vst.msk [vmem:[#allocation2 + $0x8] sm:$0x3] %vm70, 0.0
    %72 = vst.msk [vmem:[#allocation2 + $0x10] sm:$0xff] %vm68, 0.0
    %73 = vst.msk [vmem:[#allocation2 + $0x18] sm:$0x3] %vm70, 0.0
    %74 = vst.msk [vmem:[#allocation2 + $0x20] sm:$0xff] %vm68, 0.0
    %75 = vst.msk [vmem:[#allocation2 + $0x28] sm:$0x3] %vm70, 0.0
    %76 = vst.msk [vmem:[#allocation2 + $0x30] sm:$0xff] %vm68, 0.0
    %77 = vst.msk [vmem:[#allocation2 + $0x38] sm:$0x3] %vm70, 0.0
    %78 = vst.msk [vmem:[#allocation2 + $0x40] sm:$0xff] %vm68, 0.0
    %79 = vst.msk [vmem:[#allocation2 + $0x48] sm:$0x3] %vm70, 0.0
    %80 = vst.msk [vmem:[#allocation2 + $0x50] sm:$0xff] %vm68, 0.0
    %81 = vst.msk [vmem:[#allocation2 + $0x58] sm:$0x3] %vm70, 0.0
    %82 = vst.msk [vmem:[#allocation2 + $0x60] sm:$0xff] %vm68, 0.0
    %83 = vst.msk [vmem:[#allocation2 + $0x68] sm:$0x3] %vm70, 0.0
    %84 = vst.msk [vmem:[#allocation2 + $0x70] sm:$0xff] %vm68, 0.0
    %85 = vst.msk [vmem:[#allocation2 + $0x78] sm:$0x3] %vm70, 0.0
    %86 = vst.msk [vmem:[#allocation2 + $0x80] sm:$0xff] %vm68, 0.0
    %87 = vst.msk [vmem:[#allocation2 + $0x88] sm:$0x3] %vm70, 0.0
    %88 = vst.msk [vmem:[#allocation2 + $0x90] sm:$0xff] %vm68, 0.0
    %89 = vst.msk [vmem:[#allocation2 + $0x98] sm:$0x3] %vm70, 0.0
    %90 = vst.msk [vmem:[#allocation2 + $0xa0] sm:$0xff] %vm68, 0.0
    %91 = vst.msk [vmem:[#allocation2 + $0xa8] sm:$0x3] %vm70, 0.0
    %92 = vst.msk [vmem:[#allocation2 + $0xb0] sm:$0xff] %vm68, 0.0
    %93 = vst.msk [vmem:[#allocation2 + $0xb8] sm:$0x3] %vm70, 0.0
    %94 = vst.msk [vmem:[#allocation2 + $0xc0] sm:$0xff] %vm68, 0.0
    %95 = vst.msk [vmem:[#allocation2 + $0xc8] sm:$0x3] %vm70, 0.0
    %96 = vst.msk [vmem:[#allocation2 + $0xd0] sm:$0xff] %vm68, 0.0
    %97 = vst.msk [vmem:[#allocation2 + $0xd8] sm:$0x3] %vm70, 0.0
    %98 = vst.msk [vmem:[#allocation2 + $0xe0] sm:$0xff] %vm68, 0.0
    %99 = vst.msk [vmem:[#allocation2 + $0xe8] sm:$0x3] %vm70, 0.0
    %100 = vst.msk [vmem:[#allocation2 + $0xf0] sm:$0xff] %vm68, 0.0
    %101 = vst.msk [vmem:[#allocation2 + $0xf8] sm:$0x3] %vm70, 0.0
    %102 = vst.msk [vmem:[#allocation2 + $0x100] sm:$0xff] %vm68, 0.0
    %103 = vst.msk [vmem:[#allocation2 + $0x108] sm:$0x3] %vm70, 0.0
    %104 = vst.msk [vmem:[#allocation2 + $0x110] sm:$0xff] %vm68, 0.0
    %105 = vst.msk [vmem:[#allocation2 + $0x118] sm:$0x3] %vm70, 0.0
    %106 = vst.msk [vmem:[#allocation2 + $0x120] sm:$0xff] %vm68, 0.0
    %107 = vst.msk [vmem:[#allocation2 + $0x128] sm:$0x3] %vm70, 0.0
    %108 = vst.msk [vmem:[#allocation2 + $0x130] sm:$0xff] %vm68, 0.0
    %109 = vst.msk [vmem:[#allocation2 + $0x138] sm:$0x3] %vm70, 0.0
    %v110 = vld [vmem:[#allocation3] sm:$0xff]
    %v111 = vld [vmem:[#allocation3 + $0x8] sm:$0xff]
    %v112 = vld [vmem:[#allocation3 + $0x10] sm:$0xff]
    %v113 = vld [vmem:[#allocation3 + $0x18] sm:$0xff]
    %v114 = vld [vmem:[#allocation3 + $0x20] sm:$0xff]
    %v115 = vld [vmem:[#allocation3 + $0x28] sm:$0xff]
    %v116 = vld [vmem:[#allocation3 + $0x30] sm:$0xff]
    %v117 = vld [vmem:[#allocation3 + $0x38] sm:$0xff]
    %v118 = vld [vmem:[#allocation3 + $0x40] sm:$0xff]
    %v119 = vld [vmem:[#allocation3 + $0x48] sm:$0xff]
    %v120 = vld [vmem:[#allocation3 + $0x50] sm:$0xff]
    %v121 = vld [vmem:[#allocation3 + $0x58] sm:$0xff]
    %v122 = vld [vmem:[#allocation3 + $0x60] sm:$0xff]
    %v123 = vld [vmem:[#allocation3 + $0x68] sm:$0xff]
    %v124 = vld [vmem:[#allocation3 + $0x70] sm:$0xff]
    %v125 = vld [vmem:[#allocation3 + $0x78] sm:$0xff]
    %s126 = scalar_lea.vmem [#allocation2], 16
    %127 = vst.msk [vmem:[%s126 + $0x1] sm:$0xff] %vm68, %v110
    %128 = vst.msk [vmem:[%s126 + $0x11] sm:$0xff] %vm68, %v111
    %129 = vst.msk [vmem:[%s126 + $0x21] sm:$0xff] %vm68, %v112
    %130 = vst.msk [vmem:[%s126 + $0x31] sm:$0xff] %vm68, %v113
    %131 = vst.msk [vmem:[%s126 + $0x41] sm:$0xff] %vm68, %v114
    %132 = vst.msk [vmem:[%s126 + $0x51] sm:$0xff] %vm68, %v115
    %133 = vst.msk [vmem:[%s126 + $0x61] sm:$0xff] %vm68, %v116
    %134 = vst.msk [vmem:[%s126 + $0x71] sm:$0xff] %vm68, %v117
    %135 = vst.msk [vmem:[%s126 + $0xa1] sm:$0xff] %vm68, %v118
    %136 = vst.msk [vmem:[%s126 + $0xb1] sm:$0xff] %vm68, %v119
    %137 = vst.msk [vmem:[%s126 + $0xc1] sm:$0xff] %vm68, %v120
    %138 = vst.msk [vmem:[%s126 + $0xd1] sm:$0xff] %vm68, %v121
    %139 = vst.msk [vmem:[%s126 + $0xe1] sm:$0xff] %vm68, %v122
    %140 = vst.msk [vmem:[%s126 + $0xf1] sm:$0xff] %vm68, %v123
    %141 = vst.msk [vmem:[%s126 + $0x101] sm:$0xff] %vm68, %v124
    %142 = vst.msk [vmem:[%s126 + $0x111] sm:$0xff] %vm68, %v125
    %v143 = vld [vmem:[#allocation2] sm:$0xff]
    %v144 = vld [vmem:[#allocation2 + $0x10] sm:$0xff]
    %v145 = vld [vmem:[#allocation2 + $0x20] sm:$0xff]
    %v146 = vld [vmem:[#allocation2 + $0x30] sm:$0xff]
    %v147 = vld [vmem:[#allocation2 + $0x40] sm:$0xff]
    %v148 = vld [vmem:[#allocation2 + $0x50] sm:$0xff]
    %v149 = vld [vmem:[#allocation2 + $0x60] sm:$0xff]
    %v150 = vld [vmem:[#allocation2 + $0x70] sm:$0xff]
    %v151 = vld [vmem:[#allocation2 + $0xa0] sm:$0xff]
    %v152 = vld [vmem:[#allocation2 + $0xb0] sm:$0xff]
    %v153 = vld [vmem:[#allocation2 + $0xc0] sm:$0xff]
    %v154 = vld [vmem:[#allocation2 + $0xd0] sm:$0xff]
    %v155 = vld [vmem:[#allocation2 + $0xe0] sm:$0xff]
    %v156 = vld [vmem:[#allocation2 + $0xf0] sm:$0xff]
    %v157 = vld [vmem:[#allocation2 + $0x100] sm:$0xff]
    %v158 = vld [vmem:[#allocation2 + $0x110] sm:$0xff]
    %v159 = vld [vmem:[#allocation6] sm:$0xff]
    %v160 = vld [vmem:[#allocation6 + $0x8] sm:$0xff]
    %v161 = vld [vmem:[#allocation6 + $0x10] sm:$0xff]
    %v162 = vld [vmem:[#allocation6 + $0x18] sm:$0xff]
    %v163 = vld [vmem:[#allocation6 + $0x20] sm:$0xff]
    %v164 = vld [vmem:[#allocation6 + $0x28] sm:$0xff]
    %v165 = vld [vmem:[#allocation6 + $0x30] sm:$0xff]
    %v166 = vld [vmem:[#allocation6 + $0x38] sm:$0xff]
    %v167 = vld [vmem:[#allocation2 + $0x1] sm:$0xff]
    %v168 = vld [vmem:[#allocation2 + $0x11] sm:$0xff]
    %v169 = vld [vmem:[#allocation2 + $0x21] sm:$0xff]
    %v170 = vld [vmem:[#allocation2 + $0x31] sm:$0xff]
    %v171 = vld [vmem:[#allocation2 + $0x41] sm:$0xff]
    %v172 = vld [vmem:[#allocation2 + $0x51] sm:$0xff]
    %v173 = vld [vmem:[#allocation2 + $0x61] sm:$0xff]
    %v174 = vld [vmem:[#allocation2 + $0x71] sm:$0xff]
    %v175 = vld [vmem:[#allocation2 + $0xa1] sm:$0xff]
    %v176 = vld [vmem:[#allocation2 + $0xb1] sm:$0xff]
    %v177 = vld [vmem:[#allocation2 + $0xc1] sm:$0xff]
    %v178 = vld [vmem:[#allocation2 + $0xd1] sm:$0xff]
    %v179 = vld [vmem:[#allocation2 + $0xe1] sm:$0xff]
    %v180 = vld [vmem:[#allocation2 + $0xf1] sm:$0xff]
    %v181 = vld [vmem:[#allocation2 + $0x101] sm:$0xff]
    %v182 = vld [vmem:[#allocation2 + $0x111] sm:$0xff]
    %s183 = scalar_lea.vmem [#allocation6], 64
    %v184 = vld [vmem:[%s183] sm:$0xff]
    %v185 = vld [vmem:[%s183 + $0x8] sm:$0xff]
    %v186 = vld [vmem:[%s183 + $0x10] sm:$0xff]
    %v187 = vld [vmem:[%s183 + $0x18] sm:$0xff]
    %v188 = vld [vmem:[%s183 + $0x20] sm:$0xff]
    %v189 = vld [vmem:[%s183 + $0x28] sm:$0xff]
    %v190 = vld [vmem:[%s183 + $0x30] sm:$0xff]
    %v191 = vld [vmem:[%s183 + $0x38] sm:$0xff]
    %v193 = vsel %vm68, %v167, 0
    %v196 = vsel %vm68, %v168, 0
    %v199 = vsel %vm68, %v169, 0
    %v202 = vsel %vm68, %v170, 0
    %v205 = vsel %vm68, %v171, 0
    %v208 = vsel %vm68, %v172, 0
    %v211 = vsel %vm68, %v173, 0
    %v214 = vsel %vm68, %v174, 0
    %v217 = vsel %vm68, %v175, 0
    %v220 = vsel %vm68, %v176, 0
    %v223 = vsel %vm68, %v177, 0
    %v226 = vsel %vm68, %v178, 0
    %v229 = vsel %vm68, %v179, 0
    %v232 = vsel %vm68, %v180, 0
    %v235 = vsel %vm68, %v181, 0
    %v238 = vsel %vm68, %v182, 0
    %240 = vmatprep.subr.mxu0 0.0
    %241 = vmatpush1.msra.mxu0 %v184
    %242 = vmatprep.subr.mxu0 0.0
    %243 = vmatpush1.msra.mxu0 %v185
    %244 = vmatprep.subr.mxu0 0.0
    %245 = vmatpush1.msra.mxu0 %v186
    %246 = vmatprep.subr.mxu0 0.0
    %247 = vmatpush1.msra.mxu0 %v187
    %248 = vmatprep.subr.mxu0 0.0
    %249 = vmatpush1.msra.mxu0 %v188
    %250 = vmatprep.subr.mxu0 0.0
    %251 = vmatpush1.msra.mxu0 %v189
    %252 = vmatprep.subr.mxu0 0.0
    %253 = vmatpush1.msra.mxu0 %v190
    %254 = vmatprep.subr.mxu0 0.0
    %255 = vmatpush1.msra.mxu0 %v191
    %256 = vmatprep.subr.mxu0 0.0
    %257 = vmatpush1.msra.mxu0 0.0
    %258 = vmatprep.subr.mxu0 0.0
    %259 = vmatpush1.msra.mxu0 0.0
    %260 = vmatprep.subr.mxu0 0.0
    %261 = vmatpush1.msra.mxu0 0.0
    %262 = vmatprep.subr.mxu0 0.0
    %263 = vmatpush1.msra.mxu0 0.0
    %264 = vmatprep.subr.mxu0 0.0
    %265 = vmatpush1.msra.mxu0 0.0
    %266 = vmatprep.subr.mxu0 0.0
    %267 = vmatpush1.msra.mxu0 0.0
    %268 = vmatprep.subr.mxu0 0.0
    %269 = vmatpush1.msra.mxu0 0.0
    %270 = vmatprep.subr.mxu0 0.0
    %271 = vmatpush1.msra.mxu0 0.0
    %272 = vmatprep.subr.mxu0 0.0
    %273 = vmatpush1.msra.mxu0 0.0
    %274 = vmatprep.subr.mxu0 0.0
    %275 = vmatpush1.msra.mxu0 0.0
    %276 = vmatprep.subr.mxu0 0.0
    %277 = vmatpush1.msra.mxu0 0.0
    %278 = vmatprep.subr.mxu0 0.0
    %279 = vmatpush1.msra.mxu0 0.0
    %280 = vmatprep.subr.mxu0 0.0
    %281 = vmatpush1.msra.mxu0 0.0
    %282 = vmatprep.subr.mxu0 0.0
    %283 = vmatpush1.msra.mxu0 0.0
    %284 = vmatprep.subr.mxu0 0.0
    %285 = vmatpush1.msra.mxu0 0.0
    %286 = vmatprep.subr.mxu0 0.0
    %287 = vmatpush1.msra.mxu0 0.0
    %288 = vmatprep.subr.mxu0 0.0
    %289 = vmatpush1.msra.mxu0 0.0
    %290 = vmatprep.subr.mxu0 0.0
    %291 = vmatpush1.msra.mxu0 0.0
    %292 = vmatprep.subr.mxu0 0.0
    %293 = vmatpush1.msra.mxu0 0.0
    %294 = vmatprep.subr.mxu0 0.0
    %295 = vmatpush1.msra.mxu0 0.0
    %296 = vmatprep.subr.mxu0 0.0
    %297 = vmatpush1.msra.mxu0 0.0
    %298 = vmatprep.subr.mxu0 0.0
    %299 = vmatpush1.msra.mxu0 0.0
    %300 = vmatprep.subr.mxu0 0.0
    %301 = vmatpush1.msra.mxu0 0.0
    %302 = vmatprep.subr.mxu0 0.0
    %303 = vmatpush1.msra.mxu0 0.0
    %304 = vmatprep.mubr.f32.mxu0 0.0
    %305 = vmatmul.mubr.f32.gmra.mrb[0].mxu0 %v193
    %v306 = vpop.f32.mrb[0].mxu0
    %v307 = vadd.f32 0.0, %v306
    %v308 = vpop.f32.mrb[0].mxu0
    %309 = vmatprep.mubr.f32.mxu0 0.0
    %310 = vmatmul.mubr.f32.gmra.mrb[0].mxu0 %v196
    %v311 = vpop.f32.mrb[0].mxu0
    %v312 = vadd.f32 0.0, %v311
    %v313 = vpop.f32.mrb[0].mxu0
    %314 = vmatprep.mubr.f32.mxu0 0.0
    %315 = vmatmul.mubr.f32.gmra.mrb[0].mxu0 %v199
    %v316 = vpop.f32.mrb[0].mxu0
    %v317 = vadd.f32 0.0, %v316
    %v318 = vpop.f32.mrb[0].mxu0
    %319 = vmatprep.mubr.f32.mxu0 0.0
    %320 = vmatmul.mubr.f32.gmra.mrb[0].mxu0 %v202
    %v321 = vpop.f32.mrb[0].mxu0
    %v322 = vadd.f32 0.0, %v321
    %v323 = vpop.f32.mrb[0].mxu0
    %324 = vmatprep.mubr.f32.mxu0 0.0
    %325 = vmatmul.mubr.f32.gmra.mrb[0].mxu0 %v205
    %v326 = vpop.f32.mrb[0].mxu0
    %v327 = vadd.f32 0.0, %v326
    %v328 = vpop.f32.mrb[0].mxu0
    %329 = vmatprep.mubr.f32.mxu0 0.0
    %330 = vmatmul.mubr.f32.gmra.mrb[0].mxu0 %v208
    %v331 = vpop.f32.mrb[0].mxu0
    %v332 = vadd.f32 0.0, %v331
    %v333 = vpop.f32.mrb[0].mxu0
    %334 = vmatprep.mubr.f32.mxu0 0.0
    %335 = vmatmul.mubr.f32.gmra.mrb[0].mxu0 %v211
    %v336 = vpop.f32.mrb[0].mxu0
    %v337 = vadd.f32 0.0, %v336
    %v338 = vpop.f32.mrb[0].mxu0
    %339 = vmatprep.mubr.f32.mxu0 0.0
    %340 = vmatmul.mubr.f32.gmra.mrb[0].mxu0 %v214
    %v341 = vpop.f32.mrb[0].mxu0
    %v342 = vadd.f32 0.0, %v341
    %v343 = vpop.f32.mrb[0].mxu0
    %344 = vmatprep.mubr.f32.mxu0 0.0
    %345 = vmatmul.mubr.f32.gmra.mrb[0].mxu0 %v217
    %v346 = vpop.f32.mrb[0].mxu0
    %v347 = vadd.f32 0.0, %v346
    %v348 = vpop.f32.mrb[0].mxu0
    %349 = vmatprep.mubr.f32.mxu0 0.0
    %350 = vmatmul.mubr.f32.gmra.mrb[0].mxu0 %v220
    %v351 = vpop.f32.mrb[0].mxu0
    %v352 = vadd.f32 0.0, %v351
    %v353 = vpop.f32.mrb[0].mxu0
    %354 = vmatprep.mubr.f32.mxu0 0.0
    %355 = vmatmul.mubr.f32.gmra.mrb[0].mxu0 %v223
    %v356 = vpop.f32.mrb[0].mxu0
    %v357 = vadd.f32 0.0, %v356
    %v358 = vpop.f32.mrb[0].mxu0
    %359 = vmatprep.mubr.f32.mxu0 0.0
    %360 = vmatmul.mubr.f32.gmra.mrb[0].mxu0 %v226
    %v361 = vpop.f32.mrb[0].mxu0
    %v362 = vadd.f32 0.0, %v361
    %v363 = vpop.f32.mrb[0].mxu0
    %364 = vmatprep.mubr.f32.mxu0 0.0
    %365 = vmatmul.mubr.f32.gmra.mrb[0].mxu0 %v229
    %v366 = vpop.f32.mrb[0].mxu0
    %v367 = vadd.f32 0.0, %v366
    %v368 = vpop.f32.mrb[0].mxu0
    %369 = vmatprep.mubr.f32.mxu0 0.0
    %370 = vmatmul.mubr.f32.gmra.mrb[0].mxu0 %v232
    %v371 = vpop.f32.mrb[0].mxu0
    %v372 = vadd.f32 0.0, %v371
    %v373 = vpop.f32.mrb[0].mxu0
    %374 = vmatprep.mubr.f32.mxu0 0.0
    %375 = vmatmul.mubr.f32.gmra.mrb[0].mxu0 %v235
    %v376 = vpop.f32.mrb[0].mxu0
    %v377 = vadd.f32 0.0, %v376
    %v378 = vpop.f32.mrb[0].mxu0
    %379 = vmatprep.mubr.f32.mxu0 0.0
    %380 = vmatmul.mubr.f32.gmra.mrb[0].mxu0 %v238
    %v381 = vpop.f32.mrb[0].mxu0
    %v382 = vadd.f32 0.0, %v381
    %v383 = vpop.f32.mrb[0].mxu0
    %384 = vdwg.mxu0
    %v386 = vsel %vm68, %v143, 0
    %v389 = vsel %vm68, %v144, 0
    %v392 = vsel %vm68, %v145, 0
    %v395 = vsel %vm68, %v146, 0
    %v398 = vsel %vm68, %v147, 0
    %v401 = vsel %vm68, %v148, 0
    %v404 = vsel %vm68, %v149, 0
    %v407 = vsel %vm68, %v150, 0
    %v410 = vsel %vm68, %v151, 0
    %v413 = vsel %vm68, %v152, 0
    %v416 = vsel %vm68, %v153, 0
    %v419 = vsel %vm68, %v154, 0
    %v422 = vsel %vm68, %v155, 0
    %v425 = vsel %vm68, %v156, 0
    %v428 = vsel %vm68, %v157, 0
    %v431 = vsel %vm68, %v158, 0
    %433 = vmatprep.subr.mxu0 0.0
    %434 = vmatpush1.msra.mxu0 %v159
    %435 = vmatprep.subr.mxu0 0.0
    %436 = vmatpush1.msra.mxu0 %v160
    %437 = vmatprep.subr.mxu0 0.0
    %438 = vmatpush1.msra.mxu0 %v161
    %439 = vmatprep.subr.mxu0 0.0
    %440 = vmatpush1.msra.mxu0 %v162
    %441 = vmatprep.subr.mxu0 0.0
    %442 = vmatpush1.msra.mxu0 %v163
    %443 = vmatprep.subr.mxu0 0.0
    %444 = vmatpush1.msra.mxu0 %v164
    %445 = vmatprep.subr.mxu0 0.0
    %446 = vmatpush1.msra.mxu0 %v165
    %447 = vmatprep.subr.mxu0 0.0
    %448 = vmatpush1.msra.mxu0 %v166
    %449 = vmatprep.subr.mxu0 0.0
    %450 = vmatpush1.msra.mxu0 0.0
    %451 = vmatprep.subr.mxu0 0.0
    %452 = vmatpush1.msra.mxu0 0.0
    %453 = vmatprep.subr.mxu0 0.0
    %454 = vmatpush1.msra.mxu0 0.0
    %455 = vmatprep.subr.mxu0 0.0
    %456 = vmatpush1.msra.mxu0 0.0
    %457 = vmatprep.subr.mxu0 0.0
    %458 = vmatpush1.msra.mxu0 0.0
    %459 = vmatprep.subr.mxu0 0.0
    %460 = vmatpush1.msra.mxu0 0.0
    %461 = vmatprep.subr.mxu0 0.0
    %462 = vmatpush1.msra.mxu0 0.0
    %463 = vmatprep.subr.mxu0 0.0
    %464 = vmatpush1.msra.mxu0 0.0
    %465 = vmatprep.subr.mxu0 0.0
    %466 = vmatpush1.msra.mxu0 0.0
    %467 = vmatprep.subr.mxu0 0.0
    %468 = vmatpush1.msra.mxu0 0.0
    %469 = vmatprep.subr.mxu0 0.0
    %470 = vmatpush1.msra.mxu0 0.0
    %471 = vmatprep.subr.mxu0 0.0
    %472 = vmatpush1.msra.mxu0 0.0
    %473 = vmatprep.subr.mxu0 0.0
    %474 = vmatpush1.msra.mxu0 0.0
    %475 = vmatprep.subr.mxu0 0.0
    %476 = vmatpush1.msra.mxu0 0.0
    %477 = vmatprep.subr.mxu0 0.0
    %478 = vmatpush1.msra.mxu0 0.0
    %479 = vmatprep.subr.mxu0 0.0
    %480 = vmatpush1.msra.mxu0 0.0
    %481 = vmatprep.subr.mxu0 0.0
    %482 = vmatpush1.msra.mxu0 0.0
    %483 = vmatprep.subr.mxu0 0.0
    %484 = vmatpush1.msra.mxu0 0.0
    %485 = vmatprep.subr.mxu0 0.0
    %486 = vmatpush1.msra.mxu0 0.0
    %487 = vmatprep.subr.mxu0 0.0
    %488 = vmatpush1.msra.mxu0 0.0
    %489 = vmatprep.subr.mxu0 0.0
    %490 = vmatpush1.msra.mxu0 0.0
    %491 = vmatprep.subr.mxu0 0.0
    %492 = vmatpush1.msra.mxu0 0.0
    %493 = vmatprep.subr.mxu0 0.0
    %494 = vmatpush1.msra.mxu0 0.0
    %495 = vmatprep.subr.mxu0 0.0
    %496 = vmatpush1.msra.mxu0 0.0
    %497 = vmatprep.mubr.f32.mxu0 0.0
    %498 = vmatmul.mubr.f32.gmra.mrb[0].mxu0 %v386
    %v499 = vpop.f32.mrb[0].mxu0
    %v500 = vadd.f32 %v307, %v499
    %v501 = vpop.f32.mrb[0].mxu0
    %502 = vmatprep.mubr.f32.mxu0 0.0
    %503 = vmatmul.mubr.f32.gmra.mrb[0].mxu0 %v389
    %v504 = vpop.f32.mrb[0].mxu0
    %v505 = vadd.f32 %v312, %v504
    %v506 = vpop.f32.mrb[0].mxu0
    %507 = vmatprep.mubr.f32.mxu0 0.0
    %508 = vmatmul.mubr.f32.gmra.mrb[0].mxu0 %v392
    %v509 = vpop.f32.mrb[0].mxu0
    %v510 = vadd.f32 %v317, %v509
    %v511 = vpop.f32.mrb[0].mxu0
    %512 = vmatprep.mubr.f32.mxu0 0.0
    %513 = vmatmul.mubr.f32.gmra.mrb[0].mxu0 %v395
    %v514 = vpop.f32.mrb[0].mxu0
    %v515 = vadd.f32 %v322, %v514
    %v516 = vpop.f32.mrb[0].mxu0
    %517 = vmatprep.mubr.f32.mxu0 0.0
    %518 = vmatmul.mubr.f32.gmra.mrb[0].mxu0 %v398
    %v519 = vpop.f32.mrb[0].mxu0
    %v520 = vadd.f32 %v327, %v519
    %v521 = vpop.f32.mrb[0].mxu0
    %522 = vmatprep.mubr.f32.mxu0 0.0
    %523 = vmatmul.mubr.f32.gmra.mrb[0].mxu0 %v401
    %v524 = vpop.f32.mrb[0].mxu0
    %v525 = vadd.f32 %v332, %v524
    %v526 = vpop.f32.mrb[0].mxu0
    %527 = vmatprep.mubr.f32.mxu0 0.0
    %528 = vmatmul.mubr.f32.gmra.mrb[0].mxu0 %v404
    %v529 = vpop.f32.mrb[0].mxu0
    %v530 = vadd.f32 %v337, %v529
    %v531 = vpop.f32.mrb[0].mxu0
    %532 = vmatprep.mubr.f32.mxu0 0.0
    %533 = vmatmul.mubr.f32.gmra.mrb[0].mxu0 %v407
    %v534 = vpop.f32.mrb[0].mxu0
    %v535 = vadd.f32 %v342, %v534
    %v536 = vpop.f32.mrb[0].mxu0
    %537 = vmatprep.mubr.f32.mxu0 0.0
    %538 = vmatmul.mubr.f32.gmra.mrb[0].mxu0 %v410
    %v539 = vpop.f32.mrb[0].mxu0
    %v540 = vadd.f32 %v347, %v539
    %v541 = vpop.f32.mrb[0].mxu0
    %542 = vmatprep.mubr.f32.mxu0 0.0
    %543 = vmatmul.mubr.f32.gmra.mrb[0].mxu0 %v413
    %v544 = vpop.f32.mrb[0].mxu0
    %v545 = vadd.f32 %v352, %v544
    %v546 = vpop.f32.mrb[0].mxu0
    %547 = vmatprep.mubr.f32.mxu0 0.0
    %548 = vmatmul.mubr.f32.gmra.mrb[0].mxu0 %v416
    %v549 = vpop.f32.mrb[0].mxu0
    %v550 = vadd.f32 %v357, %v549
    %v551 = vpop.f32.mrb[0].mxu0
    %552 = vmatprep.mubr.f32.mxu0 0.0
    %553 = vmatmul.mubr.f32.gmra.mrb[0].mxu0 %v419
    %v554 = vpop.f32.mrb[0].mxu0
    %v555 = vadd.f32 %v362, %v554
    %v556 = vpop.f32.mrb[0].mxu0
    %557 = vmatprep.mubr.f32.mxu0 0.0
    %558 = vmatmul.mubr.f32.gmra.mrb[0].mxu0 %v422
    %v559 = vpop.f32.mrb[0].mxu0
    %v560 = vadd.f32 %v367, %v559
    %v561 = vpop.f32.mrb[0].mxu0
    %562 = vmatprep.mubr.f32.mxu0 0.0
    %563 = vmatmul.mubr.f32.gmra.mrb[0].mxu0 %v425
    %v564 = vpop.f32.mrb[0].mxu0
    %v565 = vadd.f32 %v372, %v564
    %v566 = vpop.f32.mrb[0].mxu0
    %567 = vmatprep.mubr.f32.mxu0 0.0
    %568 = vmatmul.mubr.f32.gmra.mrb[0].mxu0 %v428
    %v569 = vpop.f32.mrb[0].mxu0
    %v570 = vadd.f32 %v377, %v569
    %v571 = vpop.f32.mrb[0].mxu0
    %572 = vmatprep.mubr.f32.mxu0 0.0
    %573 = vmatmul.mubr.f32.gmra.mrb[0].mxu0 %v431
    %v574 = vpop.f32.mrb[0].mxu0
    %v575 = vadd.f32 %v382, %v574
    %v576 = vpop.f32.mrb[0].mxu0
    %577 = vdwg.mxu0
    %v578 = vld [vmem:[#allocation2 + $0x2] sm:$0xff]
    %v579 = vld [vmem:[#allocation2 + $0x12] sm:$0xff]
    %v580 = vld [vmem:[#allocation2 + $0x22] sm:$0xff]
    %v581 = vld [vmem:[#allocation2 + $0x32] sm:$0xff]
    %v582 = vld [vmem:[#allocation2 + $0x42] sm:$0xff]
    %v583 = vld [vmem:[#allocation2 + $0x52] sm:$0xff]
    %v584 = vld [vmem:[#allocation2 + $0x62] sm:$0xff]
    %v585 = vld [vmem:[#allocation2 + $0x72] sm:$0xff]
    %v586 = vld [vmem:[#allocation2 + $0xa2] sm:$0xff]
    %v587 = vld [vmem:[#allocation2 + $0xb2] sm:$0xff]
    %v588 = vld [vmem:[#allocation2 + $0xc2] sm:$0xff]
    %v589 = vld [vmem:[#allocation2 + $0xd2] sm:$0xff]
    %v590 = vld [vmem:[#allocation2 + $0xe2] sm:$0xff]
    %v591 = vld [vmem:[#allocation2 + $0xf2] sm:$0xff]
    %v592 = vld [vmem:[#allocation2 + $0x102] sm:$0xff]
    %v593 = vld [vmem:[#allocation2 + $0x112] sm:$0xff]
    %s594 = scalar_lea.vmem [#allocation6], 128
    %v595 = vld [vmem:[%s594] sm:$0xff]
    %v596 = vld [vmem:[%s594 + $0x8] sm:$0xff]
    %v597 = vld [vmem:[%s594 + $0x10] sm:$0xff]
    %v598 = vld [vmem:[%s594 + $0x18] sm:$0xff]
    %v599 = vld [vmem:[%s594 + $0x20] sm:$0xff]
    %v600 = vld [vmem:[%s594 + $0x28] sm:$0xff]
    %v601 = vld [vmem:[%s594 + $0x30] sm:$0xff]
    %v602 = vld [vmem:[%s594 + $0x38] sm:$0xff]
    %v604 = vsel %vm68, %v578, 0
    %v607 = vsel %vm68, %v579, 0
    %v610 = vsel %vm68, %v580, 0
    %v613 = vsel %vm68, %v581, 0
    %v616 = vsel %vm68, %v582, 0
    %v619 = vsel %vm68, %v583, 0
    %v622 = vsel %vm68, %v584, 0
    %v625 = vsel %vm68, %v585, 0
    %v628 = vsel %vm68, %v586, 0
    %v631 = vsel %vm68, %v587, 0
    %v634 = vsel %vm68, %v588, 0
    %v637 = vsel %vm68, %v589, 0
    %v640 = vsel %vm68, %v590, 0
    %v643 = vsel %vm68, %v591, 0
    %v646 = vsel %vm68, %v592, 0
    %v649 = vsel %vm68, %v593, 0
    %651 = vmatprep.subr.mxu0 0.0
    %652 = vmatpush1.msra.mxu0 %v595
    %653 = vmatprep.subr.mxu0 0.0
    %654 = vmatpush1.msra.mxu0 %v596
    %655 = vmatprep.subr.mxu0 0.0
    %656 = vmatpush1.msra.mxu0 %v597
    %657 = vmatprep.subr.mxu0 0.0
    %658 = vmatpush1.msra.mxu0 %v598
    %659 = vmatprep.subr.mxu0 0.0
    %660 = vmatpush1.msra.mxu0 %v599
    %661 = vmatprep.subr.mxu0 0.0
    %662 = vmatpush1.msra.mxu0 %v600
    %663 = vmatprep.subr.mxu0 0.0
    %664 = vmatpush1.msra.mxu0 %v601
    %665 = vmatprep.subr.mxu0 0.0
    %666 = vmatpush1.msra.mxu0 %v602
    %667 = vmatprep.subr.mxu0 0.0
    %668 = vmatpush1.msra.mxu0 0.0
    %669 = vmatprep.subr.mxu0 0.0
    %670 = vmatpush1.msra.mxu0 0.0
    %671 = vmatprep.subr.mxu0 0.0
    %672 = vmatpush1.msra.mxu0 0.0
    %673 = vmatprep.subr.mxu0 0.0
    %674 = vmatpush1.msra.mxu0 0.0
    %675 = vmatprep.subr.mxu0 0.0
    %676 = vmatpush1.msra.mxu0 0.0
    %677 = vmatprep.subr.mxu0 0.0
    %678 = vmatpush1.msra.mxu0 0.0
    %679 = vmatprep.subr.mxu0 0.0
    %680 = vmatpush1.msra.mxu0 0.0
    %681 = vmatprep.subr.mxu0 0.0
    %682 = vmatpush1.msra.mxu0 0.0
    %683 = vmatprep.subr.mxu0 0.0
    %684 = vmatpush1.msra.mxu0 0.0
    %685 = vmatprep.subr.mxu0 0.0
    %686 = vmatpush1.msra.mxu0 0.0
    %687 = vmatprep.subr.mxu0 0.0
    %688 = vmatpush1.msra.mxu0 0.0
    %689 = vmatprep.subr.mxu0 0.0
    %690 = vmatpush1.msra.mxu0 0.0
    %691 = vmatprep.subr.mxu0 0.0
    %692 = vmatpush1.msra.mxu0 0.0
    %693 = vmatprep.subr.mxu0 0.0
    %694 = vmatpush1.msra.mxu0 0.0
    %695 = vmatprep.subr.mxu0 0.0
    %696 = vmatpush1.msra.mxu0 0.0
    %697 = vmatprep.subr.mxu0 0.0
    %698 = vmatpush1.msra.mxu0 0.0
    %699 = vmatprep.subr.mxu0 0.0
    %700 = vmatpush1.msra.mxu0 0.0
    %701 = vmatprep.subr.mxu0 0.0
    %702 = vmatpush1.msra.mxu0 0.0
    %703 = vmatprep.subr.mxu0 0.0
    %704 = vmatpush1.msra.mxu0 0.0
    %705 = vmatprep.subr.mxu0 0.0
    %706 = vmatpush1.msra.mxu0 0.0
    %707 = vmatprep.subr.mxu0 0.0
    %708 = vmatpush1.msra.mxu0 0.0
    %709 = vmatprep.subr.mxu0 0.0
    %710 = vmatpush1.msra.mxu0 0.0
    %711 = vmatprep.subr.mxu0 0.0
    %712 = vmatpush1.msra.mxu0 0.0
    %713 = vmatprep.subr.mxu0 0.0
    %714 = vmatpush1.msra.mxu0 0.0
    %715 = vmatprep.mubr.f32.mxu0 0.0
    %716 = vmatmul.mubr.f32.gmra.mrb[0].mxu0 %v604
    %v717 = vpop.f32.mrb[0].mxu0
    %v718 = vadd.f32 0.0, %v717
    %v719 = vpop.f32.mrb[0].mxu0
    %720 = vmatprep.mubr.f32.mxu0 0.0
    %721 = vmatmul.mubr.f32.gmra.mrb[0].mxu0 %v607
    %v722 = vpop.f32.mrb[0].mxu0
    %v723 = vadd.f32 0.0, %v722
    %v724 = vpop.f32.mrb[0].mxu0
    %725 = vmatprep.mubr.f32.mxu0 0.0
    %726 = vmatmul.mubr.f32.gmra.mrb[0].mxu0 %v610
    %v727 = vpop.f32.mrb[0].mxu0
    %v728 = vadd.f32 0.0, %v727
    %v729 = vpop.f32.mrb[0].mxu0
    %730 = vmatprep.mubr.f32.mxu0 0.0
    %731 = vmatmul.mubr.f32.gmra.mrb[0].mxu0 %v613
    %v732 = vpop.f32.mrb[0].mxu0
    %v733 = vadd.f32 0.0, %v732
    %v734 = vpop.f32.mrb[0].mxu0
    %735 = vmatprep.mubr.f32.mxu0 0.0
    %736 = vmatmul.mubr.f32.gmra.mrb[0].mxu0 %v616
    %v737 = vpop.f32.mrb[0].mxu0
    %v738 = vadd.f32 0.0, %v737
    %v739 = vpop.f32.mrb[0].mxu0
    %740 = vmatprep.mubr.f32.mxu0 0.0
    %741 = vmatmul.mubr.f32.gmra.mrb[0].mxu0 %v619
    %v742 = vpop.f32.mrb[0].mxu0
    %v743 = vadd.f32 0.0, %v742
    %v744 = vpop.f32.mrb[0].mxu0
    %745 = vmatprep.mubr.f32.mxu0 0.0
    %746 = vmatmul.mubr.f32.gmra.mrb[0].mxu0 %v622
    %v747 = vpop.f32.mrb[0].mxu0
    %v748 = vadd.f32 0.0, %v747
    %v749 = vpop.f32.mrb[0].mxu0
    %750 = vmatprep.mubr.f32.mxu0 0.0
    %751 = vmatmul.mubr.f32.gmra.mrb[0].mxu0 %v625
    %v752 = vpop.f32.mrb[0].mxu0
    %v753 = vadd.f32 0.0, %v752
    %v754 = vpop.f32.mrb[0].mxu0
    %755 = vmatprep.mubr.f32.mxu0 0.0
    %756 = vmatmul.mubr.f32.gmra.mrb[0].mxu0 %v628
    %v757 = vpop.f32.mrb[0].mxu0
    %v758 = vadd.f32 0.0, %v757
    %v759 = vpop.f32.mrb[0].mxu0
    %760 = vmatprep.mubr.f32.mxu0 0.0
    %761 = vmatmul.mubr.f32.gmra.mrb[0].mxu0 %v631
    %v762 = vpop.f32.mrb[0].mxu0
    %v763 = vadd.f32 0.0, %v762
    %v764 = vpop.f32.mrb[0].mxu0
    %765 = vmatprep.mubr.f32.mxu0 0.0
    %766 = vmatmul.mubr.f32.gmra.mrb[0].mxu0 %v634
    %v767 = vpop.f32.mrb[0].mxu0
    %v768 = vadd.f32 0.0, %v767
    %v769 = vpop.f32.mrb[0].mxu0
    %770 = vmatprep.mubr.f32.mxu0 0.0
    %771 = vmatmul.mubr.f32.gmra.mrb[0].mxu0 %v637
    %v772 = vpop.f32.mrb[0].mxu0
    %v773 = vadd.f32 0.0, %v772
    %v774 = vpop.f32.mrb[0].mxu0
    %775 = vmatprep.mubr.f32.mxu0 0.0
    %776 = vmatmul.mubr.f32.gmra.mrb[0].mxu0 %v640
    %v777 = vpop.f32.mrb[0].mxu0
    %v778 = vadd.f32 0.0, %v777
    %v779 = vpop.f32.mrb[0].mxu0
    %780 = vmatprep.mubr.f32.mxu0 0.0
    %781 = vmatmul.mubr.f32.gmra.mrb[0].mxu0 %v643
    %v782 = vpop.f32.mrb[0].mxu0
    %v783 = vadd.f32 0.0, %v782
    %v784 = vpop.f32.mrb[0].mxu0
    %785 = vmatprep.mubr.f32.mxu0 0.0
    %786 = vmatmul.mubr.f32.gmra.mrb[0].mxu0 %v646
    %v787 = vpop.f32.mrb[0].mxu0
    %v788 = vadd.f32 0.0, %v787
    %v789 = vpop.f32.mrb[0].mxu0
    %790 = vmatprep.mubr.f32.mxu0 0.0
    %791 = vmatmul.mubr.f32.gmra.mrb[0].mxu0 %v649
    %v792 = vpop.f32.mrb[0].mxu0
    %v793 = vadd.f32 0.0, %v792
    %v794 = vpop.f32.mrb[0].mxu0
    %795 = vdwg.mxu0
    %v796 = vadd.f32 %v500, %v718
    %v797 = vadd.f32 %v505, %v723
    %v798 = vadd.f32 %v510, %v728
    %v799 = vadd.f32 %v515, %v733
    %v800 = vadd.f32 %v520, %v738
    %v801 = vadd.f32 %v525, %v743
    %v802 = vadd.f32 %v530, %v748
    %v803 = vadd.f32 %v535, %v753
    %v804 = vadd.f32 %v540, %v758
    %v805 = vadd.f32 %v545, %v763
    %v806 = vadd.f32 %v550, %v768
    %v807 = vadd.f32 %v555, %v773
    %v808 = vadd.f32 %v560, %v778
    %v809 = vadd.f32 %v565, %v783
    %v810 = vadd.f32 %v570, %v788
    %v811 = vadd.f32 %v575, %v793
    %v812 = vld [vmem:[%s126] sm:$0xff]
    %v813 = vld [vmem:[%s126 + $0x10] sm:$0xff]
    %v814 = vld [vmem:[%s126 + $0x20] sm:$0xff]
    %v815 = vld [vmem:[%s126 + $0x30] sm:$0xff]
    %v816 = vld [vmem:[%s126 + $0x40] sm:$0xff]
    %v817 = vld [vmem:[%s126 + $0x50] sm:$0xff]
    %v818 = vld [vmem:[%s126 + $0x60] sm:$0xff]
    %v819 = vld [vmem:[%s126 + $0x70] sm:$0xff]
    %v820 = vld [vmem:[%s126 + $0xa0] sm:$0xff]
    %v821 = vld [vmem:[%s126 + $0xb0] sm:$0xff]
    %v822 = vld [vmem:[%s126 + $0xc0] sm:$0xff]
    %v823 = vld [vmem:[%s126 + $0xd0] sm:$0xff]
    %v824 = vld [vmem:[%s126 + $0xe0] sm:$0xff]
    %v825 = vld [vmem:[%s126 + $0xf0] sm:$0xff]
    %v826 = vld [vmem:[%s126 + $0x100] sm:$0xff]
    %v827 = vld [vmem:[%s126 + $0x110] sm:$0xff]
    %s828 = scalar_lea.vmem [#allocation6], 192
    %v829 = vld [vmem:[%s828] sm:$0xff]
    %v830 = vld [vmem:[%s828 + $0x8] sm:$0xff]
    %v831 = vld [vmem:[%s828 + $0x10] sm:$0xff]
    %v832 = vld [vmem:[%s828 + $0x18] sm:$0xff]
    %v833 = vld [vmem:[%s828 + $0x20] sm:$0xff]
    %v834 = vld [vmem:[%s828 + $0x28] sm:$0xff]
    %v835 = vld [vmem:[%s828 + $0x30] sm:$0xff]
    %v836 = vld [vmem:[%s828 + $0x38] sm:$0xff]
    %v838 = vsel %vm68, %v812, 0
    %v841 = vsel %vm68, %v813, 0
    %v844 = vsel %vm68, %v814, 0
    %v847 = vsel %vm68, %v815, 0
    %v850 = vsel %vm68, %v816, 0
    %v853 = vsel %vm68, %v817, 0
    %v856 = vsel %vm68, %v818, 0
    %v859 = vsel %vm68, %v819, 0
    %v862 = vsel %vm68, %v820, 0
    %v865 = vsel %vm68, %v821, 0
    %v868 = vsel %vm68, %v822, 0
    %v871 = vsel %vm68, %v823, 0
    %v874 = vsel %vm68, %v824, 0
    %v877 = vsel %vm68, %v825, 0
    %v880 = vsel %vm68, %v826, 0
    %v883 = vsel %vm68, %v827, 0
    %885 = vmatprep.subr.mxu0 0.0
    %886 = vmatpush1.msra.mxu0 %v829
    %887 = vmatprep.subr.mxu0 0.0
    %888 = vmatpush1.msra.mxu0 %v830
    %889 = vmatprep.subr.mxu0 0.0
    %890 = vmatpush1.msra.mxu0 %v831
    %891 = vmatprep.subr.mxu0 0.0
    %892 = vmatpush1.msra.mxu0 %v832
    %893 = vmatprep.subr.mxu0 0.0
    %894 = vmatpush1.msra.mxu0 %v833
    %895 = vmatprep.subr.mxu0 0.0
    %896 = vmatpush1.msra.mxu0 %v834
    %897 = vmatprep.subr.mxu0 0.0
    %898 = vmatpush1.msra.mxu0 %v835
    %899 = vmatprep.subr.mxu0 0.0
    %900 = vmatpush1.msra.mxu0 %v836
    %901 = vmatprep.subr.mxu0 0.0
    %902 = vmatpush1.msra.mxu0 0.0
    %903 = vmatprep.subr.mxu0 0.0
    %904 = vmatpush1.msra.mxu0 0.0
    %905 = vmatprep.subr.mxu0 0.0
    %906 = vmatpush1.msra.mxu0 0.0
    %907 = vmatprep.subr.mxu0 0.0
    %908 = vmatpush1.msra.mxu0 0.0
    %909 = vmatprep.subr.mxu0 0.0
    %910 = vmatpush1.msra.mxu0 0.0
    %911 = vmatprep.subr.mxu0 0.0
    %912 = vmatpush1.msra.mxu0 0.0
    %913 = vmatprep.subr.mxu0 0.0
    %914 = vmatpush1.msra.mxu0 0.0
    %915 = vmatprep.subr.mxu0 0.0
    %916 = vmatpush1.msra.mxu0 0.0
    %917 = vmatprep.subr.mxu0 0.0
    %918 = vmatpush1.msra.mxu0 0.0
    %919 = vmatprep.subr.mxu0 0.0
    %920 = vmatpush1.msra.mxu0 0.0
    %921 = vmatprep.subr.mxu0 0.0
    %922 = vmatpush1.msra.mxu0 0.0
    %923 = vmatprep.subr.mxu0 0.0
    %924 = vmatpush1.msra.mxu0 0.0
    %925 = vmatprep.subr.mxu0 0.0
    %926 = vmatpush1.msra.mxu0 0.0
    %927 = vmatprep.subr.mxu0 0.0
    %928 = vmatpush1.msra.mxu0 0.0
    %929 = vmatprep.subr.mxu0 0.0
    %930 = vmatpush1.msra.mxu0 0.0
    %931 = vmatprep.subr.mxu0 0.0
    %932 = vmatpush1.msra.mxu0 0.0
    %933 = vmatprep.subr.mxu0 0.0
    %934 = vmatpush1.msra.mxu0 0.0
    %935 = vmatprep.subr.mxu0 0.0
    %936 = vmatpush1.msra.mxu0 0.0
    %937 = vmatprep.subr.mxu0 0.0
    %938 = vmatpush1.msra.mxu0 0.0
    %939 = vmatprep.subr.mxu0 0.0
    %940 = vmatpush1.msra.mxu0 0.0
    %941 = vmatprep.subr.mxu0 0.0
    %942 = vmatpush1.msra.mxu0 0.0
    %943 = vmatprep.subr.mxu0 0.0
    %944 = vmatpush1.msra.mxu0 0.0
    %945 = vmatprep.subr.mxu0 0.0
    %946 = vmatpush1.msra.mxu0 0.0
    %947 = vmatprep.subr.mxu0 0.0
    %948 = vmatpush1.msra.mxu0 0.0
    %949 = vmatprep.mubr.f32.mxu0 0.0
    %950 = vmatmul.mubr.f32.gmra.mrb[0].mxu0 %v838
    %v951 = vpop.f32.mrb[0].mxu0
    %v952 = vadd.f32 0.0, %v951
    %v953 = vpop.f32.mrb[0].mxu0
    %954 = vmatprep.mubr.f32.mxu0 0.0
    %955 = vmatmul.mubr.f32.gmra.mrb[0].mxu0 %v841
    %v956 = vpop.f32.mrb[0].mxu0
    %v957 = vadd.f32 0.0, %v956
    %v958 = vpop.f32.mrb[0].mxu0
    %959 = vmatprep.mubr.f32.mxu0 0.0
    %960 = vmatmul.mubr.f32.gmra.mrb[0].mxu0 %v844
    %v961 = vpop.f32.mrb[0].mxu0
    %v962 = vadd.f32 0.0, %v961
    %v963 = vpop.f32.mrb[0].mxu0
    %964 = vmatprep.mubr.f32.mxu0 0.0
    %965 = vmatmul.mubr.f32.gmra.mrb[0].mxu0 %v847
    %v966 = vpop.f32.mrb[0].mxu0
    %v967 = vadd.f32 0.0, %v966
    %v968 = vpop.f32.mrb[0].mxu0
    %969 = vmatprep.mubr.f32.mxu0 0.0
    %970 = vmatmul.mubr.f32.gmra.mrb[0].mxu0 %v850
    %v971 = vpop.f32.mrb[0].mxu0
    %v972 = vadd.f32 0.0, %v971
    %v973 = vpop.f32.mrb[0].mxu0
    %974 = vmatprep.mubr.f32.mxu0 0.0
    %975 = vmatmul.mubr.f32.gmra.mrb[0].mxu0 %v853
    %v976 = vpop.f32.mrb[0].mxu0
    %v977 = vadd.f32 0.0, %v976
    %v978 = vpop.f32.mrb[0].mxu0
    %979 = vmatprep.mubr.f32.mxu0 0.0
    %980 = vmatmul.mubr.f32.gmra.mrb[0].mxu0 %v856
    %v981 = vpop.f32.mrb[0].mxu0
    %v982 = vadd.f32 0.0, %v981
    %v983 = vpop.f32.mrb[0].mxu0
    %984 = vmatprep.mubr.f32.mxu0 0.0
    %985 = vmatmul.mubr.f32.gmra.mrb[0].mxu0 %v859
    %v986 = vpop.f32.mrb[0].mxu0
    %v987 = vadd.f32 0.0, %v986
    %v988 = vpop.f32.mrb[0].mxu0
    %989 = vmatprep.mubr.f32.mxu0 0.0
    %990 = vmatmul.mubr.f32.gmra.mrb[0].mxu0 %v862
    %v991 = vpop.f32.mrb[0].mxu0
    %v992 = vadd.f32 0.0, %v991
    %v993 = vpop.f32.mrb[0].mxu0
    %994 = vmatprep.mubr.f32.mxu0 0.0
    %995 = vmatmul.mubr.f32.gmra.mrb[0].mxu0 %v865
    %v996 = vpop.f32.mrb[0].mxu0
    %v997 = vadd.f32 0.0, %v996
    %v998 = vpop.f32.mrb[0].mxu0
    %999 = vmatprep.mubr.f32.mxu0 0.0
    %1000 = vmatmul.mubr.f32.gmra.mrb[0].mxu0 %v868
    %v1001 = vpop.f32.mrb[0].mxu0
    %v1002 = vadd.f32 0.0, %v1001
    %v1003 = vpop.f32.mrb[0].mxu0
    %1004 = vmatprep.mubr.f32.mxu0 0.0
    %1005 = vmatmul.mubr.f32.gmra.mrb[0].mxu0 %v871
    %v1006 = vpop.f32.mrb[0].mxu0
    %v1007 = vadd.f32 0.0, %v1006
    %v1008 = vpop.f32.mrb[0].mxu0
    %1009 = vmatprep.mubr.f32.mxu0 0.0
    %1010 = vmatmul.mubr.f32.gmra.mrb[0].mxu0 %v874
    %v1011 = vpop.f32.mrb[0].mxu0
    %v1012 = vadd.f32 0.0, %v1011
    %v1013 = vpop.f32.mrb[0].mxu0
    %1014 = vmatprep.mubr.f32.mxu0 0.0
    %1015 = vmatmul.mubr.f32.gmra.mrb[0].mxu0 %v877
    %v1016 = vpop.f32.mrb[0].mxu0
    %v1017 = vadd.f32 0.0, %v1016
    %v1018 = vpop.f32.mrb[0].mxu0
    %1019 = vmatprep.mubr.f32.mxu0 0.0
    %1020 = vmatmul.mubr.f32.gmra.mrb[0].mxu0 %v880
    %v1021 = vpop.f32.mrb[0].mxu0
    %v1022 = vadd.f32 0.0, %v1021
    %v1023 = vpop.f32.mrb[0].mxu0
    %1024 = vmatprep.mubr.f32.mxu0 0.0
    %1025 = vmatmul.mubr.f32.gmra.mrb[0].mxu0 %v883
    %v1026 = vpop.f32.mrb[0].mxu0
    %v1027 = vadd.f32 0.0, %v1026
    %v1028 = vpop.f32.mrb[0].mxu0
    %1029 = vdwg.mxu0
    %v1030 = vadd.f32 %v796, %v952
    %v1031 = vadd.f32 %v797, %v957
    %v1032 = vadd.f32 %v798, %v962
    %v1033 = vadd.f32 %v799, %v967
    %v1034 = vadd.f32 %v800, %v972
    %v1035 = vadd.f32 %v801, %v977
    %v1036 = vadd.f32 %v802, %v982
    %v1037 = vadd.f32 %v803, %v987
    %v1038 = vadd.f32 %v804, %v992
    %v1039 = vadd.f32 %v805, %v997
    %v1040 = vadd.f32 %v806, %v1002
    %v1041 = vadd.f32 %v807, %v1007
    %v1042 = vadd.f32 %v808, %v1012
    %v1043 = vadd.f32 %v809, %v1017
    %v1044 = vadd.f32 %v810, %v1022
    %v1045 = vadd.f32 %v811, %v1027
    %v1046 = vld [vmem:[%s126 + $0x1] sm:$0xff]
    %v1047 = vld [vmem:[%s126 + $0x11] sm:$0xff]
    %v1048 = vld [vmem:[%s126 + $0x21] sm:$0xff]
    %v1049 = vld [vmem:[%s126 + $0x31] sm:$0xff]
    %v1050 = vld [vmem:[%s126 + $0x41] sm:$0xff]
    %v1051 = vld [vmem:[%s126 + $0x51] sm:$0xff]
    %v1052 = vld [vmem:[%s126 + $0x61] sm:$0xff]
    %v1053 = vld [vmem:[%s126 + $0x71] sm:$0xff]
    %v1054 = vld [vmem:[%s126 + $0xa1] sm:$0xff]
    %v1055 = vld [vmem:[%s126 + $0xb1] sm:$0xff]
    %v1056 = vld [vmem:[%s126 + $0xc1] sm:$0xff]
    %v1057 = vld [vmem:[%s126 + $0xd1] sm:$0xff]
    %v1058 = vld [vmem:[%s126 + $0xe1] sm:$0xff]
    %v1059 = vld [vmem:[%s126 + $0xf1] sm:$0xff]
    %v1060 = vld [vmem:[%s126 + $0x101] sm:$0xff]
    %v1061 = vld [vmem:[%s126 + $0x111] sm:$0xff]
    %s1062 = scalar_lea.vmem [#allocation6], 256
    %v1063 = vld [vmem:[%s1062] sm:$0xff]
    %v1064 = vld [vmem:[%s1062 + $0x8] sm:$0xff]
    %v1065 = vld [vmem:[%s1062 + $0x10] sm:$0xff]
    %v1066 = vld [vmem:[%s1062 + $0x18] sm:$0xff]
    %v1067 = vld [vmem:[%s1062 + $0x20] sm:$0xff]
    %v1068 = vld [vmem:[%s1062 + $0x28] sm:$0xff]
    %v1069 = vld [vmem:[%s1062 + $0x30] sm:$0xff]
    %v1070 = vld [vmem:[%s1062 + $0x38] sm:$0xff]
    %v1072 = vsel %vm68, %v1046, 0
    %v1075 = vsel %vm68, %v1047, 0
    %v1078 = vsel %vm68, %v1048, 0
    %v1081 = vsel %vm68, %v1049, 0
    %v1084 = vsel %vm68, %v1050, 0
    %v1087 = vsel %vm68, %v1051, 0
    %v1090 = vsel %vm68, %v1052, 0
    %v1093 = vsel %vm68, %v1053, 0
    %v1096 = vsel %vm68, %v1054, 0
    %v1099 = vsel %vm68, %v1055, 0
    %v1102 = vsel %vm68, %v1056, 0
    %v1105 = vsel %vm68, %v1057, 0
    %v1108 = vsel %vm68, %v1058, 0
    %v1111 = vsel %vm68, %v1059, 0
    %v1114 = vsel %vm68, %v1060, 0
    %v1117 = vsel %vm68, %v1061, 0
    %1119 = vmatprep.subr.mxu0 0.0
    %1120 = vmatpush1.msra.mxu0 %v1063
    %1121 = vmatprep.subr.mxu0 0.0
    %1122 = vmatpush1.msra.mxu0 %v1064
    %1123 = vmatprep.subr.mxu0 0.0
    %1124 = vmatpush1.msra.mxu0 %v1065
    %1125 = vmatprep.subr.mxu0 0.0
    %1126 = vmatpush1.msra.mxu0 %v1066
    %1127 = vmatprep.subr.mxu0 0.0
    %1128 = vmatpush1.msra.mxu0 %v1067
    %1129 = vmatprep.subr.mxu0 0.0
    %1130 = vmatpush1.msra.mxu0 %v1068
    %1131 = vmatprep.subr.mxu0 0.0
    %1132 = vmatpush1.msra.mxu0 %v1069
    %1133 = vmatprep.subr.mxu0 0.0
    %1134 = vmatpush1.msra.mxu0 %v1070
    %1135 = vmatprep.subr.mxu0 0.0
    %1136 = vmatpush1.msra.mxu0 0.0
    %1137 = vmatprep.subr.mxu0 0.0
    %1138 = vmatpush1.msra.mxu0 0.0
    %1139 = vmatprep.subr.mxu0 0.0
    %1140 = vmatpush1.msra.mxu0 0.0
    %1141 = vmatprep.subr.mxu0 0.0
    %1142 = vmatpush1.msra.mxu0 0.0
    %1143 = vmatprep.subr.mxu0 0.0
    %1144 = vmatpush1.msra.mxu0 0.0
    %1145 = vmatprep.subr.mxu0 0.0
    %1146 = vmatpush1.msra.mxu0 0.0
    %1147 = vmatprep.subr.mxu0 0.0
    %1148 = vmatpush1.msra.mxu0 0.0
    %1149 = vmatprep.subr.mxu0 0.0
    %1150 = vmatpush1.msra.mxu0 0.0
    %1151 = vmatprep.subr.mxu0 0.0
    %1152 = vmatpush1.msra.mxu0 0.0
    %1153 = vmatprep.subr.mxu0 0.0
    %1154 = vmatpush1.msra.mxu0 0.0
    %1155 = vmatprep.subr.mxu0 0.0
    %1156 = vmatpush1.msra.mxu0 0.0
    %1157 = vmatprep.subr.mxu0 0.0
    %1158 = vmatpush1.msra.mxu0 0.0
    %1159 = vmatprep.subr.mxu0 0.0
    %1160 = vmatpush1.msra.mxu0 0.0
    %1161 = vmatprep.subr.mxu0 0.0
    %1162 = vmatpush1.msra.mxu0 0.0
    %1163 = vmatprep.subr.mxu0 0.0
    %1164 = vmatpush1.msra.mxu0 0.0
    %1165 = vmatprep.subr.mxu0 0.0
    %1166 = vmatpush1.msra.mxu0 0.0
    %1167 = vmatprep.subr.mxu0 0.0
    %1168 = vmatpush1.msra.mxu0 0.0
    %1169 = vmatprep.subr.mxu0 0.0
    %1170 = vmatpush1.msra.mxu0 0.0
    %1171 = vmatprep.subr.mxu0 0.0
    %1172 = vmatpush1.msra.mxu0 0.0
    %1173 = vmatprep.subr.mxu0 0.0
    %1174 = vmatpush1.msra.mxu0 0.0
    %1175 = vmatprep.subr.mxu0 0.0
    %1176 = vmatpush1.msra.mxu0 0.0
    %1177 = vmatprep.subr.mxu0 0.0
    %1178 = vmatpush1.msra.mxu0 0.0
    %1179 = vmatprep.subr.mxu0 0.0
    %1180 = vmatpush1.msra.mxu0 0.0
    %1181 = vmatprep.subr.mxu0 0.0
    %1182 = vmatpush1.msra.mxu0 0.0
    %1183 = vmatprep.mubr.f32.mxu0 0.0
    %1184 = vmatmul.mubr.f32.gmra.mrb[0].mxu0 %v1072
    %v1185 = vpop.f32.mrb[0].mxu0
    %v1186 = vadd.f32 0.0, %v1185
    %v1187 = vpop.f32.mrb[0].mxu0
    %1188 = vmatprep.mubr.f32.mxu0 0.0
    %1189 = vmatmul.mubr.f32.gmra.mrb[0].mxu0 %v1075
    %v1190 = vpop.f32.mrb[0].mxu0
    %v1191 = vadd.f32 0.0, %v1190
    %v1192 = vpop.f32.mrb[0].mxu0
    %1193 = vmatprep.mubr.f32.mxu0 0.0
    %1194 = vmatmul.mubr.f32.gmra.mrb[0].mxu0 %v1078
    %v1195 = vpop.f32.mrb[0].mxu0
    %v1196 = vadd.f32 0.0, %v1195
    %v1197 = vpop.f32.mrb[0].mxu0
    %1198 = vmatprep.mubr.f32.mxu0 0.0
    %1199 = vmatmul.mubr.f32.gmra.mrb[0].mxu0 %v1081
    %v1200 = vpop.f32.mrb[0].mxu0
    %v1201 = vadd.f32 0.0, %v1200
    %v1202 = vpop.f32.mrb[0].mxu0
    %1203 = vmatprep.mubr.f32.mxu0 0.0
    %1204 = vmatmul.mubr.f32.gmra.mrb[0].mxu0 %v1084
    %v1205 = vpop.f32.mrb[0].mxu0
    %v1206 = vadd.f32 0.0, %v1205
    %v1207 = vpop.f32.mrb[0].mxu0
    %1208 = vmatprep.mubr.f32.mxu0 0.0
    %1209 = vmatmul.mubr.f32.gmra.mrb[0].mxu0 %v1087
    %v1210 = vpop.f32.mrb[0].mxu0
    %v1211 = vadd.f32 0.0, %v1210
    %v1212 = vpop.f32.mrb[0].mxu0
    %1213 = vmatprep.mubr.f32.mxu0 0.0
    %1214 = vmatmul.mubr.f32.gmra.mrb[0].mxu0 %v1090
    %v1215 = vpop.f32.mrb[0].mxu0
    %v1216 = vadd.f32 0.0, %v1215
    %v1217 = vpop.f32.mrb[0].mxu0
    %1218 = vmatprep.mubr.f32.mxu0 0.0
    %1219 = vmatmul.mubr.f32.gmra.mrb[0].mxu0 %v1093
    %v1220 = vpop.f32.mrb[0].mxu0
    %v1221 = vadd.f32 0.0, %v1220
    %v1222 = vpop.f32.mrb[0].mxu0
    %1223 = vmatprep.mubr.f32.mxu0 0.0
    %1224 = vmatmul.mubr.f32.gmra.mrb[0].mxu0 %v1096
    %v1225 = vpop.f32.mrb[0].mxu0
    %v1226 = vadd.f32 0.0, %v1225
    %v1227 = vpop.f32.mrb[0].mxu0
    %1228 = vmatprep.mubr.f32.mxu0 0.0
    %1229 = vmatmul.mubr.f32.gmra.mrb[0].mxu0 %v1099
    %v1230 = vpop.f32.mrb[0].mxu0
    %v1231 = vadd.f32 0.0, %v1230
    %v1232 = vpop.f32.mrb[0].mxu0
    %1233 = vmatprep.mubr.f32.mxu0 0.0
    %1234 = vmatmul.mubr.f32.gmra.mrb[0].mxu0 %v1102
    %v1235 = vpop.f32.mrb[0].mxu0
    %v1236 = vadd.f32 0.0, %v1235
    %v1237 = vpop.f32.mrb[0].mxu0
    %1238 = vmatprep.mubr.f32.mxu0 0.0
    %1239 = vmatmul.mubr.f32.gmra.mrb[0].mxu0 %v1105
    %v1240 = vpop.f32.mrb[0].mxu0
    %v1241 = vadd.f32 0.0, %v1240
    %v1242 = vpop.f32.mrb[0].mxu0
    %1243 = vmatprep.mubr.f32.mxu0 0.0
    %1244 = vmatmul.mubr.f32.gmra.mrb[0].mxu0 %v1108
    %v1245 = vpop.f32.mrb[0].mxu0
    %v1246 = vadd.f32 0.0, %v1245
    %v1247 = vpop.f32.mrb[0].mxu0
    %1248 = vmatprep.mubr.f32.mxu0 0.0
    %1249 = vmatmul.mubr.f32.gmra.mrb[0].mxu0 %v1111
    %v1250 = vpop.f32.mrb[0].mxu0
    %v1251 = vadd.f32 0.0, %v1250
    %v1252 = vpop.f32.mrb[0].mxu0
    %1253 = vmatprep.mubr.f32.mxu0 0.0
    %1254 = vmatmul.mubr.f32.gmra.mrb[0].mxu0 %v1114
    %v1255 = vpop.f32.mrb[0].mxu0
    %v1256 = vadd.f32 0.0, %v1255
    %v1257 = vpop.f32.mrb[0].mxu0
    %1258 = vmatprep.mubr.f32.mxu0 0.0
    %1259 = vmatmul.mubr.f32.gmra.mrb[0].mxu0 %v1117
    %v1260 = vpop.f32.mrb[0].mxu0
    %v1261 = vadd.f32 0.0, %v1260
    %v1262 = vpop.f32.mrb[0].mxu0
    %1263 = vdwg.mxu0
    %v1264 = vadd.f32 %v1030, %v1186
    %v1265 = vadd.f32 %v1031, %v1191
    %v1266 = vadd.f32 %v1032, %v1196
    %v1267 = vadd.f32 %v1033, %v1201
    %v1268 = vadd.f32 %v1034, %v1206
    %v1269 = vadd.f32 %v1035, %v1211
    %v1270 = vadd.f32 %v1036, %v1216
    %v1271 = vadd.f32 %v1037, %v1221
    %v1272 = vadd.f32 %v1038, %v1226
    %v1273 = vadd.f32 %v1039, %v1231
    %v1274 = vadd.f32 %v1040, %v1236
    %v1275 = vadd.f32 %v1041, %v1241
    %v1276 = vadd.f32 %v1042, %v1246
    %v1277 = vadd.f32 %v1043, %v1251
    %v1278 = vadd.f32 %v1044, %v1256
    %v1279 = vadd.f32 %v1045, %v1261
    %v1280 = vld [vmem:[%s126 + $0x2] sm:$0xff]
    %v1281 = vld [vmem:[%s126 + $0x12] sm:$0xff]
    %v1282 = vld [vmem:[%s126 + $0x22] sm:$0xff]
    %v1283 = vld [vmem:[%s126 + $0x32] sm:$0xff]
    %v1284 = vld [vmem:[%s126 + $0x42] sm:$0xff]
    %v1285 = vld [vmem:[%s126 + $0x52] sm:$0xff]
    %v1286 = vld [vmem:[%s126 + $0x62] sm:$0xff]
    %v1287 = vld [vmem:[%s126 + $0x72] sm:$0xff]
    %v1288 = vld [vmem:[%s126 + $0xa2] sm:$0xff]
    %v1289 = vld [vmem:[%s126 + $0xb2] sm:$0xff]
    %v1290 = vld [vmem:[%s126 + $0xc2] sm:$0xff]
    %v1291 = vld [vmem:[%s126 + $0xd2] sm:$0xff]
    %v1292 = vld [vmem:[%s126 + $0xe2] sm:$0xff]
    %v1293 = vld [vmem:[%s126 + $0xf2] sm:$0xff]
    %v1294 = vld [vmem:[%s126 + $0x102] sm:$0xff]
    %v1295 = vld [vmem:[%s126 + $0x112] sm:$0xff]
    %s1296 = scalar_lea.vmem [#allocation6], 320
    %v1297 = vld [vmem:[%s1296] sm:$0xff]
    %v1298 = vld [vmem:[%s1296 + $0x8] sm:$0xff]
    %v1299 = vld [vmem:[%s1296 + $0x10] sm:$0xff]
    %v1300 = vld [vmem:[%s1296 + $0x18] sm:$0xff]
    %v1301 = vld [vmem:[%s1296 + $0x20] sm:$0xff]
    %v1302 = vld [vmem:[%s1296 + $0x28] sm:$0xff]
    %v1303 = vld [vmem:[%s1296 + $0x30] sm:$0xff]
    %v1304 = vld [vmem:[%s1296 + $0x38] sm:$0xff]
    %v1306 = vsel %vm68, %v1280, 0
    %v1309 = vsel %vm68, %v1281, 0
    %v1312 = vsel %vm68, %v1282, 0
    %v1315 = vsel %vm68, %v1283, 0
    %v1318 = vsel %vm68, %v1284, 0
    %v1321 = vsel %vm68, %v1285, 0
    %v1324 = vsel %vm68, %v1286, 0
    %v1327 = vsel %vm68, %v1287, 0
    %v1330 = vsel %vm68, %v1288, 0
    %v1333 = vsel %vm68, %v1289, 0
    %v1336 = vsel %vm68, %v1290, 0
    %v1339 = vsel %vm68, %v1291, 0
    %v1342 = vsel %vm68, %v1292, 0
    %v1345 = vsel %vm68, %v1293, 0
    %v1348 = vsel %vm68, %v1294, 0
    %v1351 = vsel %vm68, %v1295, 0
    %1353 = vmatprep.subr.mxu0 0.0
    %1354 = vmatpush1.msra.mxu0 %v1297
    %1355 = vmatprep.subr.mxu0 0.0
    %1356 = vmatpush1.msra.mxu0 %v1298
    %1357 = vmatprep.subr.mxu0 0.0
    %1358 = vmatpush1.msra.mxu0 %v1299
    %1359 = vmatprep.subr.mxu0 0.0
    %1360 = vmatpush1.msra.mxu0 %v1300
    %1361 = vmatprep.subr.mxu0 0.0
    %1362 = vmatpush1.msra.mxu0 %v1301
    %1363 = vmatprep.subr.mxu0 0.0
    %1364 = vmatpush1.msra.mxu0 %v1302
    %1365 = vmatprep.subr.mxu0 0.0
    %1366 = vmatpush1.msra.mxu0 %v1303
    %1367 = vmatprep.subr.mxu0 0.0
    %1368 = vmatpush1.msra.mxu0 %v1304
    %1369 = vmatprep.subr.mxu0 0.0
    %1370 = vmatpush1.msra.mxu0 0.0
    %1371 = vmatprep.subr.mxu0 0.0
    %1372 = vmatpush1.msra.mxu0 0.0
    %1373 = vmatprep.subr.mxu0 0.0
    %1374 = vmatpush1.msra.mxu0 0.0
    %1375 = vmatprep.subr.mxu0 0.0
    %1376 = vmatpush1.msra.mxu0 0.0
    %1377 = vmatprep.subr.mxu0 0.0
    %1378 = vmatpush1.msra.mxu0 0.0
    %1379 = vmatprep.subr.mxu0 0.0
    %1380 = vmatpush1.msra.mxu0 0.0
    %1381 = vmatprep.subr.mxu0 0.0
    %1382 = vmatpush1.msra.mxu0 0.0
    %1383 = vmatprep.subr.mxu0 0.0
    %1384 = vmatpush1.msra.mxu0 0.0
    %1385 = vmatprep.subr.mxu0 0.0
    %1386 = vmatpush1.msra.mxu0 0.0
    %1387 = vmatprep.subr.mxu0 0.0
    %1388 = vmatpush1.msra.mxu0 0.0
    %1389 = vmatprep.subr.mxu0 0.0
    %1390 = vmatpush1.msra.mxu0 0.0
    %1391 = vmatprep.subr.mxu0 0.0
    %1392 = vmatpush1.msra.mxu0 0.0
    %1393 = vmatprep.subr.mxu0 0.0
    %1394 = vmatpush1.msra.mxu0 0.0
    %1395 = vmatprep.subr.mxu0 0.0
    %1396 = vmatpush1.msra.mxu0 0.0
    %1397 = vmatprep.subr.mxu0 0.0
    %1398 = vmatpush1.msra.mxu0 0.0
    %1399 = vmatprep.subr.mxu0 0.0
    %1400 = vmatpush1.msra.mxu0 0.0
    %1401 = vmatprep.subr.mxu0 0.0
    %1402 = vmatpush1.msra.mxu0 0.0
    %1403 = vmatprep.subr.mxu0 0.0
    %1404 = vmatpush1.msra.mxu0 0.0
    %1405 = vmatprep.subr.mxu0 0.0
    %1406 = vmatpush1.msra.mxu0 0.0
    %1407 = vmatprep.subr.mxu0 0.0
    %1408 = vmatpush1.msra.mxu0 0.0
    %1409 = vmatprep.subr.mxu0 0.0
    %1410 = vmatpush1.msra.mxu0 0.0
    %1411 = vmatprep.subr.mxu0 0.0
    %1412 = vmatpush1.msra.mxu0 0.0
    %1413 = vmatprep.subr.mxu0 0.0
    %1414 = vmatpush1.msra.mxu0 0.0
    %1415 = vmatprep.subr.mxu0 0.0
    %1416 = vmatpush1.msra.mxu0 0.0
    %1417 = vmatprep.mubr.f32.mxu0 0.0
    %1418 = vmatmul.mubr.f32.gmra.mrb[0].mxu0 %v1306
    %v1419 = vpop.f32.mrb[0].mxu0
    %v1420 = vadd.f32 0.0, %v1419
    %v1421 = vpop.f32.mrb[0].mxu0
    %1422 = vmatprep.mubr.f32.mxu0 0.0
    %1423 = vmatmul.mubr.f32.gmra.mrb[0].mxu0 %v1309
    %v1424 = vpop.f32.mrb[0].mxu0
    %v1425 = vadd.f32 0.0, %v1424
    %v1426 = vpop.f32.mrb[0].mxu0
    %1427 = vmatprep.mubr.f32.mxu0 0.0
    %1428 = vmatmul.mubr.f32.gmra.mrb[0].mxu0 %v1312
    %v1429 = vpop.f32.mrb[0].mxu0
    %v1430 = vadd.f32 0.0, %v1429
    %v1431 = vpop.f32.mrb[0].mxu0
    %1432 = vmatprep.mubr.f32.mxu0 0.0
    %1433 = vmatmul.mubr.f32.gmra.mrb[0].mxu0 %v1315
    %v1434 = vpop.f32.mrb[0].mxu0
    %v1435 = vadd.f32 0.0, %v1434
    %v1436 = vpop.f32.mrb[0].mxu0
    %1437 = vmatprep.mubr.f32.mxu0 0.0
    %1438 = vmatmul.mubr.f32.gmra.mrb[0].mxu0 %v1318
    %v1439 = vpop.f32.mrb[0].mxu0
    %v1440 = vadd.f32 0.0, %v1439
    %v1441 = vpop.f32.mrb[0].mxu0
    %1442 = vmatprep.mubr.f32.mxu0 0.0
    %1443 = vmatmul.mubr.f32.gmra.mrb[0].mxu0 %v1321
    %v1444 = vpop.f32.mrb[0].mxu0
    %v1445 = vadd.f32 0.0, %v1444
    %v1446 = vpop.f32.mrb[0].mxu0
    %1447 = vmatprep.mubr.f32.mxu0 0.0
    %1448 = vmatmul.mubr.f32.gmra.mrb[0].mxu0 %v1324
    %v1449 = vpop.f32.mrb[0].mxu0
    %v1450 = vadd.f32 0.0, %v1449
    %v1451 = vpop.f32.mrb[0].mxu0
    %1452 = vmatprep.mubr.f32.mxu0 0.0
    %1453 = vmatmul.mubr.f32.gmra.mrb[0].mxu0 %v1327
    %v1454 = vpop.f32.mrb[0].mxu0
    %v1455 = vadd.f32 0.0, %v1454
    %v1456 = vpop.f32.mrb[0].mxu0
    %1457 = vmatprep.mubr.f32.mxu0 0.0
    %1458 = vmatmul.mubr.f32.gmra.mrb[0].mxu0 %v1330
    %v1459 = vpop.f32.mrb[0].mxu0
    %v1460 = vadd.f32 0.0, %v1459
    %v1461 = vpop.f32.mrb[0].mxu0
    %1462 = vmatprep.mubr.f32.mxu0 0.0
    %1463 = vmatmul.mubr.f32.gmra.mrb[0].mxu0 %v1333
    %v1464 = vpop.f32.mrb[0].mxu0
    %v1465 = vadd.f32 0.0, %v1464
    %v1466 = vpop.f32.mrb[0].mxu0
    %1467 = vmatprep.mubr.f32.mxu0 0.0
    %1468 = vmatmul.mubr.f32.gmra.mrb[0].mxu0 %v1336
    %v1469 = vpop.f32.mrb[0].mxu0
    %v1470 = vadd.f32 0.0, %v1469
    %v1471 = vpop.f32.mrb[0].mxu0
    %1472 = vmatprep.mubr.f32.mxu0 0.0
    %1473 = vmatmul.mubr.f32.gmra.mrb[0].mxu0 %v1339
    %v1474 = vpop.f32.mrb[0].mxu0
    %v1475 = vadd.f32 0.0, %v1474
    %v1476 = vpop.f32.mrb[0].mxu0
    %1477 = vmatprep.mubr.f32.mxu0 0.0
    %1478 = vmatmul.mubr.f32.gmra.mrb[0].mxu0 %v1342
    %v1479 = vpop.f32.mrb[0].mxu0
    %v1480 = vadd.f32 0.0, %v1479
    %v1481 = vpop.f32.mrb[0].mxu0
    %1482 = vmatprep.mubr.f32.mxu0 0.0
    %1483 = vmatmul.mubr.f32.gmra.mrb[0].mxu0 %v1345
    %v1484 = vpop.f32.mrb[0].mxu0
    %v1485 = vadd.f32 0.0, %v1484
    %v1486 = vpop.f32.mrb[0].mxu0
    %1487 = vmatprep.mubr.f32.mxu0 0.0
    %1488 = vmatmul.mubr.f32.gmra.mrb[0].mxu0 %v1348
    %v1489 = vpop.f32.mrb[0].mxu0
    %v1490 = vadd.f32 0.0, %v1489
    %v1491 = vpop.f32.mrb[0].mxu0
    %1492 = vmatprep.mubr.f32.mxu0 0.0
    %1493 = vmatmul.mubr.f32.gmra.mrb[0].mxu0 %v1351
    %v1494 = vpop.f32.mrb[0].mxu0
    %v1495 = vadd.f32 0.0, %v1494
    %v1496 = vpop.f32.mrb[0].mxu0
    %1497 = vdwg.mxu0
    %v1498 = vadd.f32 %v1264, %v1420
    %v1499 = vadd.f32 %v1265, %v1425
    %v1500 = vadd.f32 %v1266, %v1430
    %v1501 = vadd.f32 %v1267, %v1435
    %v1502 = vadd.f32 %v1268, %v1440
    %v1503 = vadd.f32 %v1269, %v1445
    %v1504 = vadd.f32 %v1270, %v1450
    %v1505 = vadd.f32 %v1271, %v1455
    %v1506 = vadd.f32 %v1272, %v1460
    %v1507 = vadd.f32 %v1273, %v1465
    %v1508 = vadd.f32 %v1274, %v1470
    %v1509 = vadd.f32 %v1275, %v1475
    %v1510 = vadd.f32 %v1276, %v1480
    %v1511 = vadd.f32 %v1277, %v1485
    %v1512 = vadd.f32 %v1278, %v1490
    %v1513 = vadd.f32 %v1279, %v1495
    %s1514 = scalar_lea.vmem [#allocation2], 32
    %v1515 = vld [vmem:[%s1514] sm:$0xff]
    %v1516 = vld [vmem:[%s1514 + $0x10] sm:$0xff]
    %v1517 = vld [vmem:[%s1514 + $0x20] sm:$0xff]
    %v1518 = vld [vmem:[%s1514 + $0x30] sm:$0xff]
    %v1519 = vld [vmem:[%s1514 + $0x40] sm:$0xff]
    %v1520 = vld [vmem:[%s1514 + $0x50] sm:$0xff]
    %v1521 = vld [vmem:[%s1514 + $0x60] sm:$0xff]
    %v1522 = vld [vmem:[%s1514 + $0x70] sm:$0xff]
    %v1523 = vld [vmem:[%s1514 + $0xa0] sm:$0xff]
    %v1524 = vld [vmem:[%s1514 + $0xb0] sm:$0xff]
    %v1525 = vld [vmem:[%s1514 + $0xc0] sm:$0xff]
    %v1526 = vld [vmem:[%s1514 + $0xd0] sm:$0xff]
    %v1527 = vld [vmem:[%s1514 + $0xe0] sm:$0xff]
    %v1528 = vld [vmem:[%s1514 + $0xf0] sm:$0xff]
    %v1529 = vld [vmem:[%s1514 + $0x100] sm:$0xff]
    %v1530 = vld [vmem:[%s1514 + $0x110] sm:$0xff]
    %s1531 = scalar_lea.vmem [#allocation6], 384
    %v1532 = vld [vmem:[%s1531] sm:$0xff]
    %v1533 = vld [vmem:[%s1531 + $0x8] sm:$0xff]
    %v1534 = vld [vmem:[%s1531 + $0x10] sm:$0xff]
    %v1535 = vld [vmem:[%s1531 + $0x18] sm:$0xff]
    %v1536 = vld [vmem:[%s1531 + $0x20] sm:$0xff]
    %v1537 = vld [vmem:[%s1531 + $0x28] sm:$0xff]
    %v1538 = vld [vmem:[%s1531 + $0x30] sm:$0xff]
    %v1539 = vld [vmem:[%s1531 + $0x38] sm:$0xff]
    %v1541 = vsel %vm68, %v1515, 0
    %v1544 = vsel %vm68, %v1516, 0
    %v1547 = vsel %vm68, %v1517, 0
    %v1550 = vsel %vm68, %v1518, 0
    %v1553 = vsel %vm68, %v1519, 0
    %v1556 = vsel %vm68, %v1520, 0
    %v1559 = vsel %vm68, %v1521, 0
    %v1562 = vsel %vm68, %v1522, 0
    %v1565 = vsel %vm68, %v1523, 0
    %v1568 = vsel %vm68, %v1524, 0
    %v1571 = vsel %vm68, %v1525, 0
    %v1574 = vsel %vm68, %v1526, 0
    %v1577 = vsel %vm68, %v1527, 0
    %v1580 = vsel %vm68, %v1528, 0
    %v1583 = vsel %vm68, %v1529, 0
    %v1586 = vsel %vm68, %v1530, 0
    %1588 = vmatprep.subr.mxu0 0.0
    %1589 = vmatpush1.msra.mxu0 %v1532
    %1590 = vmatprep.subr.mxu0 0.0
    %1591 = vmatpush1.msra.mxu0 %v1533
    %1592 = vmatprep.subr.mxu0 0.0
    %1593 = vmatpush1.msra.mxu0 %v1534
    %1594 = vmatprep.subr.mxu0 0.0
    %1595 = vmatpush1.msra.mxu0 %v1535
    %1596 = vmatprep.subr.mxu0 0.0
    %1597 = vmatpush1.msra.mxu0 %v1536
    %1598 = vmatprep.subr.mxu0 0.0
    %1599 = vmatpush1.msra.mxu0 %v1537
    %1600 = vmatprep.subr.mxu0 0.0
    %1601 = vmatpush1.msra.mxu0 %v1538
    %1602 = vmatprep.subr.mxu0 0.0
    %1603 = vmatpush1.msra.mxu0 %v1539
    %1604 = vmatprep.subr.mxu0 0.0
    %1605 = vmatpush1.msra.mxu0 0.0
    %1606 = vmatprep.subr.mxu0 0.0
    %1607 = vmatpush1.msra.mxu0 0.0
    %1608 = vmatprep.subr.mxu0 0.0
    %1609 = vmatpush1.msra.mxu0 0.0
    %1610 = vmatprep.subr.mxu0 0.0
    %1611 = vmatpush1.msra.mxu0 0.0
    %1612 = vmatprep.subr.mxu0 0.0
    %1613 = vmatpush1.msra.mxu0 0.0
    %1614 = vmatprep.subr.mxu0 0.0
    %1615 = vmatpush1.msra.mxu0 0.0
    %1616 = vmatprep.subr.mxu0 0.0
    %1617 = vmatpush1.msra.mxu0 0.0
    %1618 = vmatprep.subr.mxu0 0.0
    %1619 = vmatpush1.msra.mxu0 0.0
    %1620 = vmatprep.subr.mxu0 0.0
    %1621 = vmatpush1.msra.mxu0 0.0
    %1622 = vmatprep.subr.mxu0 0.0
    %1623 = vmatpush1.msra.mxu0 0.0
    %1624 = vmatprep.subr.mxu0 0.0
    %1625 = vmatpush1.msra.mxu0 0.0
    %1626 = vmatprep.subr.mxu0 0.0
    %1627 = vmatpush1.msra.mxu0 0.0
    %1628 = vmatprep.subr.mxu0 0.0
    %1629 = vmatpush1.msra.mxu0 0.0
    %1630 = vmatprep.subr.mxu0 0.0
    %1631 = vmatpush1.msra.mxu0 0.0
    %1632 = vmatprep.subr.mxu0 0.0
    %1633 = vmatpush1.msra.mxu0 0.0
    %1634 = vmatprep.subr.mxu0 0.0
    %1635 = vmatpush1.msra.mxu0 0.0
    %1636 = vmatprep.subr.mxu0 0.0
    %1637 = vmatpush1.msra.mxu0 0.0
    %1638 = vmatprep.subr.mxu0 0.0
    %1639 = vmatpush1.msra.mxu0 0.0
    %1640 = vmatprep.subr.mxu0 0.0
    %1641 = vmatpush1.msra.mxu0 0.0
    %1642 = vmatprep.subr.mxu0 0.0
    %1643 = vmatpush1.msra.mxu0 0.0
    %1644 = vmatprep.subr.mxu0 0.0
    %1645 = vmatpush1.msra.mxu0 0.0
    %1646 = vmatprep.subr.mxu0 0.0
    %1647 = vmatpush1.msra.mxu0 0.0
    %1648 = vmatprep.subr.mxu0 0.0
    %1649 = vmatpush1.msra.mxu0 0.0
    %1650 = vmatprep.subr.mxu0 0.0
    %1651 = vmatpush1.msra.mxu0 0.0
    %1652 = vmatprep.mubr.f32.mxu0 0.0
    %1653 = vmatmul.mubr.f32.gmra.mrb[0].mxu0 %v1541
    %v1654 = vpop.f32.mrb[0].mxu0
    %v1655 = vadd.f32 0.0, %v1654
    %v1656 = vpop.f32.mrb[0].mxu0
    %1657 = vmatprep.mubr.f32.mxu0 0.0
    %1658 = vmatmul.mubr.f32.gmra.mrb[0].mxu0 %v1544
    %v1659 = vpop.f32.mrb[0].mxu0
    %v1660 = vadd.f32 0.0, %v1659
    %v1661 = vpop.f32.mrb[0].mxu0
    %1662 = vmatprep.mubr.f32.mxu0 0.0
    %1663 = vmatmul.mubr.f32.gmra.mrb[0].mxu0 %v1547
    %v1664 = vpop.f32.mrb[0].mxu0
    %v1665 = vadd.f32 0.0, %v1664
    %v1666 = vpop.f32.mrb[0].mxu0
    %1667 = vmatprep.mubr.f32.mxu0 0.0
    %1668 = vmatmul.mubr.f32.gmra.mrb[0].mxu0 %v1550
    %v1669 = vpop.f32.mrb[0].mxu0
    %v1670 = vadd.f32 0.0, %v1669
    %v1671 = vpop.f32.mrb[0].mxu0
    %1672 = vmatprep.mubr.f32.mxu0 0.0
    %1673 = vmatmul.mubr.f32.gmra.mrb[0].mxu0 %v1553
    %v1674 = vpop.f32.mrb[0].mxu0
    %v1675 = vadd.f32 0.0, %v1674
    %v1676 = vpop.f32.mrb[0].mxu0
    %1677 = vmatprep.mubr.f32.mxu0 0.0
    %1678 = vmatmul.mubr.f32.gmra.mrb[0].mxu0 %v1556
    %v1679 = vpop.f32.mrb[0].mxu0
    %v1680 = vadd.f32 0.0, %v1679
    %v1681 = vpop.f32.mrb[0].mxu0
    %1682 = vmatprep.mubr.f32.mxu0 0.0
    %1683 = vmatmul.mubr.f32.gmra.mrb[0].mxu0 %v1559
    %v1684 = vpop.f32.mrb[0].mxu0
    %v1685 = vadd.f32 0.0, %v1684
    %v1686 = vpop.f32.mrb[0].mxu0
    %1687 = vmatprep.mubr.f32.mxu0 0.0
    %1688 = vmatmul.mubr.f32.gmra.mrb[0].mxu0 %v1562
    %v1689 = vpop.f32.mrb[0].mxu0
    %v1690 = vadd.f32 0.0, %v1689
    %v1691 = vpop.f32.mrb[0].mxu0
    %1692 = vmatprep.mubr.f32.mxu0 0.0
    %1693 = vmatmul.mubr.f32.gmra.mrb[0].mxu0 %v1565
    %v1694 = vpop.f32.mrb[0].mxu0
    %v1695 = vadd.f32 0.0, %v1694
    %v1696 = vpop.f32.mrb[0].mxu0
    %1697 = vmatprep.mubr.f32.mxu0 0.0
    %1698 = vmatmul.mubr.f32.gmra.mrb[0].mxu0 %v1568
    %v1699 = vpop.f32.mrb[0].mxu0
    %v1700 = vadd.f32 0.0, %v1699
    %v1701 = vpop.f32.mrb[0].mxu0
    %1702 = vmatprep.mubr.f32.mxu0 0.0
    %1703 = vmatmul.mubr.f32.gmra.mrb[0].mxu0 %v1571
    %v1704 = vpop.f32.mrb[0].mxu0
    %v1705 = vadd.f32 0.0, %v1704
    %v1706 = vpop.f32.mrb[0].mxu0
    %1707 = vmatprep.mubr.f32.mxu0 0.0
    %1708 = vmatmul.mubr.f32.gmra.mrb[0].mxu0 %v1574
    %v1709 = vpop.f32.mrb[0].mxu0
    %v1710 = vadd.f32 0.0, %v1709
    %v1711 = vpop.f32.mrb[0].mxu0
    %1712 = vmatprep.mubr.f32.mxu0 0.0
    %1713 = vmatmul.mubr.f32.gmra.mrb[0].mxu0 %v1577
    %v1714 = vpop.f32.mrb[0].mxu0
    %v1715 = vadd.f32 0.0, %v1714
    %v1716 = vpop.f32.mrb[0].mxu0
    %1717 = vmatprep.mubr.f32.mxu0 0.0
    %1718 = vmatmul.mubr.f32.gmra.mrb[0].mxu0 %v1580
    %v1719 = vpop.f32.mrb[0].mxu0
    %v1720 = vadd.f32 0.0, %v1719
    %v1721 = vpop.f32.mrb[0].mxu0
    %1722 = vmatprep.mubr.f32.mxu0 0.0
    %1723 = vmatmul.mubr.f32.gmra.mrb[0].mxu0 %v1583
    %v1724 = vpop.f32.mrb[0].mxu0
    %v1725 = vadd.f32 0.0, %v1724
    %v1726 = vpop.f32.mrb[0].mxu0
    %1727 = vmatprep.mubr.f32.mxu0 0.0
    %1728 = vmatmul.mubr.f32.gmra.mrb[0].mxu0 %v1586
    %v1729 = vpop.f32.mrb[0].mxu0
    %v1730 = vadd.f32 0.0, %v1729
    %v1731 = vpop.f32.mrb[0].mxu0
    %1732 = vdwg.mxu0
    %v1733 = vadd.f32 %v1498, %v1655
    %v1734 = vadd.f32 %v1499, %v1660
    %v1735 = vadd.f32 %v1500, %v1665
    %v1736 = vadd.f32 %v1501, %v1670
    %v1737 = vadd.f32 %v1502, %v1675
    %v1738 = vadd.f32 %v1503, %v1680
    %v1739 = vadd.f32 %v1504, %v1685
    %v1740 = vadd.f32 %v1505, %v1690
    %v1741 = vadd.f32 %v1506, %v1695
    %v1742 = vadd.f32 %v1507, %v1700
    %v1743 = vadd.f32 %v1508, %v1705
    %v1744 = vadd.f32 %v1509, %v1710
    %v1745 = vadd.f32 %v1510, %v1715
    %v1746 = vadd.f32 %v1511, %v1720
    %v1747 = vadd.f32 %v1512, %v1725
    %v1748 = vadd.f32 %v1513, %v1730
    %v1749 = vld [vmem:[%s1514 + $0x1] sm:$0xff]
    %v1750 = vld [vmem:[%s1514 + $0x11] sm:$0xff]
    %v1751 = vld [vmem:[%s1514 + $0x21] sm:$0xff]
    %v1752 = vld [vmem:[%s1514 + $0x31] sm:$0xff]
    %v1753 = vld [vmem:[%s1514 + $0x41] sm:$0xff]
    %v1754 = vld [vmem:[%s1514 + $0x51] sm:$0xff]
    %v1755 = vld [vmem:[%s1514 + $0x61] sm:$0xff]
    %v1756 = vld [vmem:[%s1514 + $0x71] sm:$0xff]
    %v1757 = vld [vmem:[%s1514 + $0xa1] sm:$0xff]
    %v1758 = vld [vmem:[%s1514 + $0xb1] sm:$0xff]
    %v1759 = vld [vmem:[%s1514 + $0xc1] sm:$0xff]
    %v1760 = vld [vmem:[%s1514 + $0xd1] sm:$0xff]
    %v1761 = vld [vmem:[%s1514 + $0xe1] sm:$0xff]
    %v1762 = vld [vmem:[%s1514 + $0xf1] sm:$0xff]
    %v1763 = vld [vmem:[%s1514 + $0x101] sm:$0xff]
    %v1764 = vld [vmem:[%s1514 + $0x111] sm:$0xff]
    %s1765 = scalar_lea.vmem [#allocation6], 448
    %v1766 = vld [vmem:[%s1765] sm:$0xff]
    %v1767 = vld [vmem:[%s1765 + $0x8] sm:$0xff]
    %v1768 = vld [vmem:[%s1765 + $0x10] sm:$0xff]
    %v1769 = vld [vmem:[%s1765 + $0x18] sm:$0xff]
    %v1770 = vld [vmem:[%s1765 + $0x20] sm:$0xff]
    %v1771 = vld [vmem:[%s1765 + $0x28] sm:$0xff]
    %v1772 = vld [vmem:[%s1765 + $0x30] sm:$0xff]
    %v1773 = vld [vmem:[%s1765 + $0x38] sm:$0xff]
    %v1775 = vsel %vm68, %v1749, 0
    %v1778 = vsel %vm68, %v1750, 0
    %v1781 = vsel %vm68, %v1751, 0
    %v1784 = vsel %vm68, %v1752, 0
    %v1787 = vsel %vm68, %v1753, 0
    %v1790 = vsel %vm68, %v1754, 0
    %v1793 = vsel %vm68, %v1755, 0
    %v1796 = vsel %vm68, %v1756, 0
    %v1799 = vsel %vm68, %v1757, 0
    %v1802 = vsel %vm68, %v1758, 0
    %v1805 = vsel %vm68, %v1759, 0
    %v1808 = vsel %vm68, %v1760, 0
    %v1811 = vsel %vm68, %v1761, 0
    %v1814 = vsel %vm68, %v1762, 0
    %v1817 = vsel %vm68, %v1763, 0
    %v1820 = vsel %vm68, %v1764, 0
    %1822 = vmatprep.subr.mxu0 0.0
    %1823 = vmatpush1.msra.mxu0 %v1766
    %1824 = vmatprep.subr.mxu0 0.0
    %1825 = vmatpush1.msra.mxu0 %v1767
    %1826 = vmatprep.subr.mxu0 0.0
    %1827 = vmatpush1.msra.mxu0 %v1768
    %1828 = vmatprep.subr.mxu0 0.0
    %1829 = vmatpush1.msra.mxu0 %v1769
    %1830 = vmatprep.subr.mxu0 0.0
    %1831 = vmatpush1.msra.mxu0 %v1770
    %1832 = vmatprep.subr.mxu0 0.0
    %1833 = vmatpush1.msra.mxu0 %v1771
    %1834 = vmatprep.subr.mxu0 0.0
    %1835 = vmatpush1.msra.mxu0 %v1772
    %1836 = vmatprep.subr.mxu0 0.0
    %1837 = vmatpush1.msra.mxu0 %v1773
    %1838 = vmatprep.subr.mxu0 0.0
    %1839 = vmatpush1.msra.mxu0 0.0
    %1840 = vmatprep.subr.mxu0 0.0
    %1841 = vmatpush1.msra.mxu0 0.0
    %1842 = vmatprep.subr.mxu0 0.0
    %1843 = vmatpush1.msra.mxu0 0.0
    %1844 = vmatprep.subr.mxu0 0.0
    %1845 = vmatpush1.msra.mxu0 0.0
    %1846 = vmatprep.subr.mxu0 0.0
    %1847 = vmatpush1.msra.mxu0 0.0
    %1848 = vmatprep.subr.mxu0 0.0
    %1849 = vmatpush1.msra.mxu0 0.0
    %1850 = vmatprep.subr.mxu0 0.0
    %1851 = vmatpush1.msra.mxu0 0.0
    %1852 = vmatprep.subr.mxu0 0.0
    %1853 = vmatpush1.msra.mxu0 0.0
    %1854 = vmatprep.subr.mxu0 0.0
    %1855 = vmatpush1.msra.mxu0 0.0
    %1856 = vmatprep.subr.mxu0 0.0
    %1857 = vmatpush1.msra.mxu0 0.0
    %1858 = vmatprep.subr.mxu0 0.0
    %1859 = vmatpush1.msra.mxu0 0.0
    %1860 = vmatprep.subr.mxu0 0.0
    %1861 = vmatpush1.msra.mxu0 0.0
    %1862 = vmatprep.subr.mxu0 0.0
    %1863 = vmatpush1.msra.mxu0 0.0
    %1864 = vmatprep.subr.mxu0 0.0
    %1865 = vmatpush1.msra.mxu0 0.0
    %1866 = vmatprep.subr.mxu0 0.0
    %1867 = vmatpush1.msra.mxu0 0.0
    %1868 = vmatprep.subr.mxu0 0.0
    %1869 = vmatpush1.msra.mxu0 0.0
    %1870 = vmatprep.subr.mxu0 0.0
    %1871 = vmatpush1.msra.mxu0 0.0
    %1872 = vmatprep.subr.mxu0 0.0
    %1873 = vmatpush1.msra.mxu0 0.0
    %1874 = vmatprep.subr.mxu0 0.0
    %1875 = vmatpush1.msra.mxu0 0.0
    %1876 = vmatprep.subr.mxu0 0.0
    %1877 = vmatpush1.msra.mxu0 0.0
    %1878 = vmatprep.subr.mxu0 0.0
    %1879 = vmatpush1.msra.mxu0 0.0
    %1880 = vmatprep.subr.mxu0 0.0
    %1881 = vmatpush1.msra.mxu0 0.0
    %1882 = vmatprep.subr.mxu0 0.0
    %1883 = vmatpush1.msra.mxu0 0.0
    %1884 = vmatprep.subr.mxu0 0.0
    %1885 = vmatpush1.msra.mxu0 0.0
    %1886 = vmatprep.mubr.f32.mxu0 0.0
    %1887 = vmatmul.mubr.f32.gmra.mrb[0].mxu0 %v1775
    %v1888 = vpop.f32.mrb[0].mxu0
    %v1889 = vadd.f32 0.0, %v1888
    %v1890 = vpop.f32.mrb[0].mxu0
    %1891 = vmatprep.mubr.f32.mxu0 0.0
    %1892 = vmatmul.mubr.f32.gmra.mrb[0].mxu0 %v1778
    %v1893 = vpop.f32.mrb[0].mxu0
    %v1894 = vadd.f32 0.0, %v1893
    %v1895 = vpop.f32.mrb[0].mxu0
    %1896 = vmatprep.mubr.f32.mxu0 0.0
    %1897 = vmatmul.mubr.f32.gmra.mrb[0].mxu0 %v1781
    %v1898 = vpop.f32.mrb[0].mxu0
    %v1899 = vadd.f32 0.0, %v1898
    %v1900 = vpop.f32.mrb[0].mxu0
    %1901 = vmatprep.mubr.f32.mxu0 0.0
    %1902 = vmatmul.mubr.f32.gmra.mrb[0].mxu0 %v1784
    %v1903 = vpop.f32.mrb[0].mxu0
    %v1904 = vadd.f32 0.0, %v1903
    %v1905 = vpop.f32.mrb[0].mxu0
    %1906 = vmatprep.mubr.f32.mxu0 0.0
    %1907 = vmatmul.mubr.f32.gmra.mrb[0].mxu0 %v1787
    %v1908 = vpop.f32.mrb[0].mxu0
    %v1909 = vadd.f32 0.0, %v1908
    %v1910 = vpop.f32.mrb[0].mxu0
    %1911 = vmatprep.mubr.f32.mxu0 0.0
    %1912 = vmatmul.mubr.f32.gmra.mrb[0].mxu0 %v1790
    %v1913 = vpop.f32.mrb[0].mxu0
    %v1914 = vadd.f32 0.0, %v1913
    %v1915 = vpop.f32.mrb[0].mxu0
    %1916 = vmatprep.mubr.f32.mxu0 0.0
    %1917 = vmatmul.mubr.f32.gmra.mrb[0].mxu0 %v1793
    %v1918 = vpop.f32.mrb[0].mxu0
    %v1919 = vadd.f32 0.0, %v1918
    %v1920 = vpop.f32.mrb[0].mxu0
    %1921 = vmatprep.mubr.f32.mxu0 0.0
    %1922 = vmatmul.mubr.f32.gmra.mrb[0].mxu0 %v1796
    %v1923 = vpop.f32.mrb[0].mxu0
    %v1924 = vadd.f32 0.0, %v1923
    %v1925 = vpop.f32.mrb[0].mxu0
    %1926 = vmatprep.mubr.f32.mxu0 0.0
    %1927 = vmatmul.mubr.f32.gmra.mrb[0].mxu0 %v1799
    %v1928 = vpop.f32.mrb[0].mxu0
    %v1929 = vadd.f32 0.0, %v1928
    %v1930 = vpop.f32.mrb[0].mxu0
    %1931 = vmatprep.mubr.f32.mxu0 0.0
    %1932 = vmatmul.mubr.f32.gmra.mrb[0].mxu0 %v1802
    %v1933 = vpop.f32.mrb[0].mxu0
    %v1934 = vadd.f32 0.0, %v1933
    %v1935 = vpop.f32.mrb[0].mxu0
    %1936 = vmatprep.mubr.f32.mxu0 0.0
    %1937 = vmatmul.mubr.f32.gmra.mrb[0].mxu0 %v1805
    %v1938 = vpop.f32.mrb[0].mxu0
    %v1939 = vadd.f32 0.0, %v1938
    %v1940 = vpop.f32.mrb[0].mxu0
    %1941 = vmatprep.mubr.f32.mxu0 0.0
    %1942 = vmatmul.mubr.f32.gmra.mrb[0].mxu0 %v1808
    %v1943 = vpop.f32.mrb[0].mxu0
    %v1944 = vadd.f32 0.0, %v1943
    %v1945 = vpop.f32.mrb[0].mxu0
    %1946 = vmatprep.mubr.f32.mxu0 0.0
    %1947 = vmatmul.mubr.f32.gmra.mrb[0].mxu0 %v1811
    %v1948 = vpop.f32.mrb[0].mxu0
    %v1949 = vadd.f32 0.0, %v1948
    %v1950 = vpop.f32.mrb[0].mxu0
    %1951 = vmatprep.mubr.f32.mxu0 0.0
    %1952 = vmatmul.mubr.f32.gmra.mrb[0].mxu0 %v1814
    %v1953 = vpop.f32.mrb[0].mxu0
    %v1954 = vadd.f32 0.0, %v1953
    %v1955 = vpop.f32.mrb[0].mxu0
    %1956 = vmatprep.mubr.f32.mxu0 0.0
    %1957 = vmatmul.mubr.f32.gmra.mrb[0].mxu0 %v1817
    %v1958 = vpop.f32.mrb[0].mxu0
    %v1959 = vadd.f32 0.0, %v1958
    %v1960 = vpop.f32.mrb[0].mxu0
    %1961 = vmatprep.mubr.f32.mxu0 0.0
    %1962 = vmatmul.mubr.f32.gmra.mrb[0].mxu0 %v1820
    %v1963 = vpop.f32.mrb[0].mxu0
    %v1964 = vadd.f32 0.0, %v1963
    %v1965 = vpop.f32.mrb[0].mxu0
    %1966 = vdwg.mxu0
    %v1967 = vadd.f32 %v1733, %v1889
    %v1968 = vadd.f32 %v1734, %v1894
    %v1969 = vadd.f32 %v1735, %v1899
    %v1970 = vadd.f32 %v1736, %v1904
    %v1971 = vadd.f32 %v1737, %v1909
    %v1972 = vadd.f32 %v1738, %v1914
    %v1973 = vadd.f32 %v1739, %v1919
    %v1974 = vadd.f32 %v1740, %v1924
    %v1975 = vadd.f32 %v1741, %v1929
    %v1976 = vadd.f32 %v1742, %v1934
    %v1977 = vadd.f32 %v1743, %v1939
    %v1978 = vadd.f32 %v1744, %v1944
    %v1979 = vadd.f32 %v1745, %v1949
    %v1980 = vadd.f32 %v1746, %v1954
    %v1981 = vadd.f32 %v1747, %v1959
    %v1982 = vadd.f32 %v1748, %v1964
    %v1983 = vld [vmem:[%s1514 + $0x2] sm:$0xff]
    %v1984 = vld [vmem:[%s1514 + $0x12] sm:$0xff]
    %v1985 = vld [vmem:[%s1514 + $0x22] sm:$0xff]
    %v1986 = vld [vmem:[%s1514 + $0x32] sm:$0xff]
    %v1987 = vld [vmem:[%s1514 + $0x42] sm:$0xff]
    %v1988 = vld [vmem:[%s1514 + $0x52] sm:$0xff]
    %v1989 = vld [vmem:[%s1514 + $0x62] sm:$0xff]
    %v1990 = vld [vmem:[%s1514 + $0x72] sm:$0xff]
    %v1991 = vld [vmem:[%s1514 + $0xa2] sm:$0xff]
    %v1992 = vld [vmem:[%s1514 + $0xb2] sm:$0xff]
    %v1993 = vld [vmem:[%s1514 + $0xc2] sm:$0xff]
    %v1994 = vld [vmem:[%s1514 + $0xd2] sm:$0xff]
    %v1995 = vld [vmem:[%s1514 + $0xe2] sm:$0xff]
    %v1996 = vld [vmem:[%s1514 + $0xf2] sm:$0xff]
    %v1997 = vld [vmem:[%s1514 + $0x102] sm:$0xff]
    %v1998 = vld [vmem:[%s1514 + $0x112] sm:$0xff]
    %s1999 = scalar_lea.vmem [#allocation6], 512
    %v2000 = vld [vmem:[%s1999] sm:$0xff]
    %v2001 = vld [vmem:[%s1999 + $0x8] sm:$0xff]
    %v2002 = vld [vmem:[%s1999 + $0x10] sm:$0xff]
    %v2003 = vld [vmem:[%s1999 + $0x18] sm:$0xff]
    %v2004 = vld [vmem:[%s1999 + $0x20] sm:$0xff]
    %v2005 = vld [vmem:[%s1999 + $0x28] sm:$0xff]
    %v2006 = vld [vmem:[%s1999 + $0x30] sm:$0xff]
    %v2007 = vld [vmem:[%s1999 + $0x38] sm:$0xff]
    %v2009 = vsel %vm68, %v1983, 0
    %v2012 = vsel %vm68, %v1984, 0
    %v2015 = vsel %vm68, %v1985, 0
    %v2018 = vsel %vm68, %v1986, 0
    %v2021 = vsel %vm68, %v1987, 0
    %v2024 = vsel %vm68, %v1988, 0
    %v2027 = vsel %vm68, %v1989, 0
    %v2030 = vsel %vm68, %v1990, 0
    %v2033 = vsel %vm68, %v1991, 0
    %v2036 = vsel %vm68, %v1992, 0
    %v2039 = vsel %vm68, %v1993, 0
    %v2042 = vsel %vm68, %v1994, 0
    %v2045 = vsel %vm68, %v1995, 0
    %v2048 = vsel %vm68, %v1996, 0
    %v2051 = vsel %vm68, %v1997, 0
    %v2054 = vsel %vm68, %v1998, 0
    %2056 = vmatprep.subr.mxu0 0.0
    %2057 = vmatpush1.msra.mxu0 %v2000
    %2058 = vmatprep.subr.mxu0 0.0
    %2059 = vmatpush1.msra.mxu0 %v2001
    %2060 = vmatprep.subr.mxu0 0.0
    %2061 = vmatpush1.msra.mxu0 %v2002
    %2062 = vmatprep.subr.mxu0 0.0
    %2063 = vmatpush1.msra.mxu0 %v2003
    %2064 = vmatprep.subr.mxu0 0.0
    %2065 = vmatpush1.msra.mxu0 %v2004
    %2066 = vmatprep.subr.mxu0 0.0
    %2067 = vmatpush1.msra.mxu0 %v2005
    %2068 = vmatprep.subr.mxu0 0.0
    %2069 = vmatpush1.msra.mxu0 %v2006
    %2070 = vmatprep.subr.mxu0 0.0
    %2071 = vmatpush1.msra.mxu0 %v2007
    %2072 = vmatprep.subr.mxu0 0.0
    %2073 = vmatpush1.msra.mxu0 0.0
    %2074 = vmatprep.subr.mxu0 0.0
    %2075 = vmatpush1.msra.mxu0 0.0
    %2076 = vmatprep.subr.mxu0 0.0
    %2077 = vmatpush1.msra.mxu0 0.0
    %2078 = vmatprep.subr.mxu0 0.0
    %2079 = vmatpush1.msra.mxu0 0.0
    %2080 = vmatprep.subr.mxu0 0.0
    %2081 = vmatpush1.msra.mxu0 0.0
    %2082 = vmatprep.subr.mxu0 0.0
    %2083 = vmatpush1.msra.mxu0 0.0
    %2084 = vmatprep.subr.mxu0 0.0
    %2085 = vmatpush1.msra.mxu0 0.0
    %2086 = vmatprep.subr.mxu0 0.0
    %2087 = vmatpush1.msra.mxu0 0.0
    %2088 = vmatprep.subr.mxu0 0.0
    %2089 = vmatpush1.msra.mxu0 0.0
    %2090 = vmatprep.subr.mxu0 0.0
    %2091 = vmatpush1.msra.mxu0 0.0
    %2092 = vmatprep.subr.mxu0 0.0
    %2093 = vmatpush1.msra.mxu0 0.0
    %2094 = vmatprep.subr.mxu0 0.0
    %2095 = vmatpush1.msra.mxu0 0.0
    %2096 = vmatprep.subr.mxu0 0.0
    %2097 = vmatpush1.msra.mxu0 0.0
    %2098 = vmatprep.subr.mxu0 0.0
    %2099 = vmatpush1.msra.mxu0 0.0
    %2100 = vmatprep.subr.mxu0 0.0
    %2101 = vmatpush1.msra.mxu0 0.0
    %2102 = vmatprep.subr.mxu0 0.0
    %2103 = vmatpush1.msra.mxu0 0.0
    %2104 = vmatprep.subr.mxu0 0.0
    %2105 = vmatpush1.msra.mxu0 0.0
    %2106 = vmatprep.subr.mxu0 0.0
    %2107 = vmatpush1.msra.mxu0 0.0
    %2108 = vmatprep.subr.mxu0 0.0
    %2109 = vmatpush1.msra.mxu0 0.0
    %2110 = vmatprep.subr.mxu0 0.0
    %2111 = vmatpush1.msra.mxu0 0.0
    %2112 = vmatprep.subr.mxu0 0.0
    %2113 = vmatpush1.msra.mxu0 0.0
    %2114 = vmatprep.subr.mxu0 0.0
    %2115 = vmatpush1.msra.mxu0 0.0
    %2116 = vmatprep.subr.mxu0 0.0
    %2117 = vmatpush1.msra.mxu0 0.0
    %2118 = vmatprep.subr.mxu0 0.0
    %2119 = vmatpush1.msra.mxu0 0.0
    %2120 = vmatprep.mubr.f32.mxu0 0.0
    %2121 = vmatmul.mubr.f32.gmra.mrb[0].mxu0 %v2009
    %v2122 = vpop.f32.mrb[0].mxu0
    %v2123 = vadd.f32 0.0, %v2122
    %v2124 = vpop.f32.mrb[0].mxu0
    %2125 = vmatprep.mubr.f32.mxu0 0.0
    %2126 = vmatmul.mubr.f32.gmra.mrb[0].mxu0 %v2012
    %v2127 = vpop.f32.mrb[0].mxu0
    %v2128 = vadd.f32 0.0, %v2127
    %v2129 = vpop.f32.mrb[0].mxu0
    %2130 = vmatprep.mubr.f32.mxu0 0.0
    %2131 = vmatmul.mubr.f32.gmra.mrb[0].mxu0 %v2015
    %v2132 = vpop.f32.mrb[0].mxu0
    %v2133 = vadd.f32 0.0, %v2132
    %v2134 = vpop.f32.mrb[0].mxu0
    %2135 = vmatprep.mubr.f32.mxu0 0.0
    %2136 = vmatmul.mubr.f32.gmra.mrb[0].mxu0 %v2018
    %v2137 = vpop.f32.mrb[0].mxu0
    %v2138 = vadd.f32 0.0, %v2137
    %v2139 = vpop.f32.mrb[0].mxu0
    %2140 = vmatprep.mubr.f32.mxu0 0.0
    %2141 = vmatmul.mubr.f32.gmra.mrb[0].mxu0 %v2021
    %v2142 = vpop.f32.mrb[0].mxu0
    %v2143 = vadd.f32 0.0, %v2142
    %v2144 = vpop.f32.mrb[0].mxu0
    %2145 = vmatprep.mubr.f32.mxu0 0.0
    %2146 = vmatmul.mubr.f32.gmra.mrb[0].mxu0 %v2024
    %v2147 = vpop.f32.mrb[0].mxu0
    %v2148 = vadd.f32 0.0, %v2147
    %v2149 = vpop.f32.mrb[0].mxu0
    %2150 = vmatprep.mubr.f32.mxu0 0.0
    %2151 = vmatmul.mubr.f32.gmra.mrb[0].mxu0 %v2027
    %v2152 = vpop.f32.mrb[0].mxu0
    %v2153 = vadd.f32 0.0, %v2152
    %v2154 = vpop.f32.mrb[0].mxu0
    %2155 = vmatprep.mubr.f32.mxu0 0.0
    %2156 = vmatmul.mubr.f32.gmra.mrb[0].mxu0 %v2030
    %v2157 = vpop.f32.mrb[0].mxu0
    %v2158 = vadd.f32 0.0, %v2157
    %v2159 = vpop.f32.mrb[0].mxu0
    %2160 = vmatprep.mubr.f32.mxu0 0.0
    %2161 = vmatmul.mubr.f32.gmra.mrb[0].mxu0 %v2033
    %v2162 = vpop.f32.mrb[0].mxu0
    %v2163 = vadd.f32 0.0, %v2162
    %v2164 = vpop.f32.mrb[0].mxu0
    %2165 = vmatprep.mubr.f32.mxu0 0.0
    %2166 = vmatmul.mubr.f32.gmra.mrb[0].mxu0 %v2036
    %v2167 = vpop.f32.mrb[0].mxu0
    %v2168 = vadd.f32 0.0, %v2167
    %v2169 = vpop.f32.mrb[0].mxu0
    %2170 = vmatprep.mubr.f32.mxu0 0.0
    %2171 = vmatmul.mubr.f32.gmra.mrb[0].mxu0 %v2039
    %v2172 = vpop.f32.mrb[0].mxu0
    %v2173 = vadd.f32 0.0, %v2172
    %v2174 = vpop.f32.mrb[0].mxu0
    %2175 = vmatprep.mubr.f32.mxu0 0.0
    %2176 = vmatmul.mubr.f32.gmra.mrb[0].mxu0 %v2042
    %v2177 = vpop.f32.mrb[0].mxu0
    %v2178 = vadd.f32 0.0, %v2177
    %v2179 = vpop.f32.mrb[0].mxu0
    %2180 = vmatprep.mubr.f32.mxu0 0.0
    %2181 = vmatmul.mubr.f32.gmra.mrb[0].mxu0 %v2045
    %v2182 = vpop.f32.mrb[0].mxu0
    %v2183 = vadd.f32 0.0, %v2182
    %v2184 = vpop.f32.mrb[0].mxu0
    %2185 = vmatprep.mubr.f32.mxu0 0.0
    %2186 = vmatmul.mubr.f32.gmra.mrb[0].mxu0 %v2048
    %v2187 = vpop.f32.mrb[0].mxu0
    %v2188 = vadd.f32 0.0, %v2187
    %v2189 = vpop.f32.mrb[0].mxu0
    %2190 = vmatprep.mubr.f32.mxu0 0.0
    %2191 = vmatmul.mubr.f32.gmra.mrb[0].mxu0 %v2051
    %v2192 = vpop.f32.mrb[0].mxu0
    %v2193 = vadd.f32 0.0, %v2192
    %v2194 = vpop.f32.mrb[0].mxu0
    %2195 = vmatprep.mubr.f32.mxu0 0.0
    %2196 = vmatmul.mubr.f32.gmra.mrb[0].mxu0 %v2054
    %v2197 = vpop.f32.mrb[0].mxu0
    %v2198 = vadd.f32 0.0, %v2197
    %v2199 = vpop.f32.mrb[0].mxu0
    %2200 = vdwg.mxu0
    %v2201 = vadd.f32 %v1967, %v2123
    %v2202 = vadd.f32 %v1968, %v2128
    %v2203 = vadd.f32 %v1969, %v2133
    %v2204 = vadd.f32 %v1970, %v2138
    %v2205 = vadd.f32 %v1971, %v2143
    %v2206 = vadd.f32 %v1972, %v2148
    %v2207 = vadd.f32 %v1973, %v2153
    %v2208 = vadd.f32 %v1974, %v2158
    %v2209 = vadd.f32 %v1975, %v2163
    %v2210 = vadd.f32 %v1976, %v2168
    %v2211 = vadd.f32 %v1977, %v2173
    %v2212 = vadd.f32 %v1978, %v2178
    %v2213 = vadd.f32 %v1979, %v2183
    %v2214 = vadd.f32 %v1980, %v2188
    %v2215 = vadd.f32 %v1981, %v2193
    %v2216 = vadd.f32 %v1982, %v2198
    %v2217 = vsel %vm68, %v2201, 0.0
    %v2218 = vsel %vm68, %v2202, 0.0
    %v2219 = vadd.f32 %v2217, %v2218
    %v2220 = vsel %vm68, %v2203, 0.0
    %v2221 = vadd.f32 %v2219, %v2220
    %v2222 = vsel %vm68, %v2204, 0.0
    %v2223 = vadd.f32 %v2221, %v2222
    %v2224 = vsel %vm68, %v2205, 0.0
    %v2225 = vadd.f32 %v2223, %v2224
    %v2226 = vsel %vm68, %v2206, 0.0
    %v2227 = vadd.f32 %v2225, %v2226
    %v2228 = vsel %vm68, %v2207, 0.0
    %v2229 = vadd.f32 %v2227, %v2228
    %v2230 = vsel %vm68, %v2208, 0.0
    %v2231 = vadd.f32 %v2229, %v2230
    %v2232 = vsel %vm68, %v2209, 0.0
    %v2233 = vadd.f32 %v2231, %v2232
    %v2234 = vsel %vm68, %v2210, 0.0
    %v2235 = vadd.f32 %v2233, %v2234
    %v2236 = vsel %vm68, %v2211, 0.0
    %v2237 = vadd.f32 %v2235, %v2236
    %v2238 = vsel %vm68, %v2212, 0.0
    %v2239 = vadd.f32 %v2237, %v2238
    %v2240 = vsel %vm68, %v2213, 0.0
    %v2241 = vadd.f32 %v2239, %v2240
    %v2242 = vsel %vm68, %v2214, 0.0
    %v2243 = vadd.f32 %v2241, %v2242
    %v2244 = vsel %vm68, %v2215, 0.0
    %v2245 = vadd.f32 %v2243, %v2244
    %v2246 = vsel %vm68, %v2216, 0.0
    %v2247 = vadd.f32 %v2245, %v2246
    %v2248 = vrot.slane %v2247, 4
    %v2249 = vadd.f32 %v2247, %v2248
    %v2250 = vrot.slane %v2249, 2
    %v2251 = vadd.f32 %v2249, %v2250
    %v2252 = vrot.slane %v2251, 1
    %v2253 = vadd.f32 %v2251, %v2252
    %v2254 = vrcp.pop 128.0
    %v2255 = vmul.f32 %v2253, %v2254
    %v2256 = vsub.f32 %v2201, %v2255
    %v2257 = vsub.f32 %v2202, %v2255
    %v2258 = vsub.f32 %v2203, %v2255
    %v2259 = vsub.f32 %v2204, %v2255
    %v2260 = vsub.f32 %v2205, %v2255
    %v2261 = vsub.f32 %v2206, %v2255
    %v2262 = vsub.f32 %v2207, %v2255
    %v2263 = vsub.f32 %v2208, %v2255
    %v2264 = vsub.f32 %v2209, %v2255
    %v2265 = vsub.f32 %v2210, %v2255
    %v2266 = vsub.f32 %v2211, %v2255
    %v2267 = vsub.f32 %v2212, %v2255
    %v2268 = vsub.f32 %v2213, %v2255
    %v2269 = vsub.f32 %v2214, %v2255
    %v2270 = vsub.f32 %v2215, %v2255
    %v2271 = vsub.f32 %v2216, %v2255
    %v2272 = vmul.f32 %v2256, %v2256
    %v2273 = vmul.f32 %v2257, %v2257
    %v2274 = vmul.f32 %v2258, %v2258
    %v2275 = vmul.f32 %v2259, %v2259
    %v2276 = vmul.f32 %v2260, %v2260
    %v2277 = vmul.f32 %v2261, %v2261
    %v2278 = vmul.f32 %v2262, %v2262
    %v2279 = vmul.f32 %v2263, %v2263
    %v2280 = vmul.f32 %v2264, %v2264
    %v2281 = vmul.f32 %v2265, %v2265
    %v2282 = vmul.f32 %v2266, %v2266
    %v2283 = vmul.f32 %v2267, %v2267
    %v2284 = vmul.f32 %v2268, %v2268
    %v2285 = vmul.f32 %v2269, %v2269
    %v2286 = vmul.f32 %v2270, %v2270
    %v2287 = vmul.f32 %v2271, %v2271
    %v2288 = vsel %vm68, %v2272, 0.0
    %v2289 = vsel %vm68, %v2273, 0.0
    %v2290 = vadd.f32 %v2288, %v2289
    %v2291 = vsel %vm68, %v2274, 0.0
    %v2292 = vadd.f32 %v2290, %v2291
    %v2293 = vsel %vm68, %v2275, 0.0
    %v2294 = vadd.f32 %v2292, %v2293
    %v2295 = vsel %vm68, %v2276, 0.0
    %v2296 = vadd.f32 %v2294, %v2295
    %v2297 = vsel %vm68, %v2277, 0.0
    %v2298 = vadd.f32 %v2296, %v2297
    %v2299 = vsel %vm68, %v2278, 0.0
    %v2300 = vadd.f32 %v2298, %v2299
    %v2301 = vsel %vm68, %v2279, 0.0
    %v2302 = vadd.f32 %v2300, %v2301
    %v2303 = vsel %vm68, %v2280, 0.0
    %v2304 = vadd.f32 %v2302, %v2303
    %v2305 = vsel %vm68, %v2281, 0.0
    %v2306 = vadd.f32 %v2304, %v2305
    %v2307 = vsel %vm68, %v2282, 0.0
    %v2308 = vadd.f32 %v2306, %v2307
    %v2309 = vsel %vm68, %v2283, 0.0
    %v2310 = vadd.f32 %v2308, %v2309
    %v2311 = vsel %vm68, %v2284, 0.0
    %v2312 = vadd.f32 %v2310, %v2311
    %v2313 = vsel %vm68, %v2285, 0.0
    %v2314 = vadd.f32 %v2312, %v2313
    %v2315 = vsel %vm68, %v2286, 0.0
    %v2316 = vadd.f32 %v2314, %v2315
    %v2317 = vsel %vm68, %v2287, 0.0
    %v2318 = vadd.f32 %v2316, %v2317
    %v2319 = vrot.slane %v2318, 4
    %v2320 = vadd.f32 %v2318, %v2319
    %v2321 = vrot.slane %v2320, 2
    %v2322 = vadd.f32 %v2320, %v2321
    %v2323 = vrot.slane %v2322, 1
    %v2324 = vadd.f32 %v2322, %v2323
    %v2325 = vmul.f32 %v2324, %v2254
    %v2326 = vadd.f32 %v2325, 1e-05
    %v2327 = vrsqrt.pop %v2326
    %v2328 = vld [vmem:[%s2] sm:$0x1]
    %v2329 = vmul.f32 %v2327, %v2328
    %v2330 = vlaneseq
    %v2331 = vshrl.u32 %v2330, 7
    %v2332 = vsub.s32 0, %v2331
    %v2333 = vrot.slane %v2329, %v2332
    %v2334 = vmul.f32 %v2256, %v2333
    %v2335 = vmul.f32 %v2257, %v2333
    %v2336 = vmul.f32 %v2258, %v2333
    %v2337 = vmul.f32 %v2259, %v2333
    %v2338 = vmul.f32 %v2260, %v2333
    %v2339 = vmul.f32 %v2261, %v2333
    %v2340 = vmul.f32 %v2262, %v2333
    %v2341 = vmul.f32 %v2263, %v2333
    %v2342 = vmul.f32 %v2264, %v2333
    %v2343 = vmul.f32 %v2265, %v2333
    %v2344 = vmul.f32 %v2266, %v2333
    %v2345 = vmul.f32 %v2267, %v2333
    %v2346 = vmul.f32 %v2268, %v2333
    %v2347 = vmul.f32 %v2269, %v2333
    %v2348 = vmul.f32 %v2270, %v2333
    %v2349 = vmul.f32 %v2271, %v2333
    %v2350 = vld [vmem:[%s3] sm:$0x1]
    %v2352 = vlaneseq
    %v2353 = vshrl.u32 %v2352, 7
    %v2354 = vsub.s32 0, %v2353
    %v2355 = vrot.slane %v2350, %v2354
    %v2357 = vadd.f32 %v2334, %v2355
    %v2358 = vadd.f32 %v2335, %v2355
    %v2359 = vadd.f32 %v2336, %v2355
    %v2360 = vadd.f32 %v2337, %v2355
    %v2361 = vadd.f32 %v2338, %v2355
    %v2362 = vadd.f32 %v2339, %v2355
    %v2363 = vadd.f32 %v2340, %v2355
    %v2364 = vadd.f32 %v2341, %v2355
    %v2365 = vadd.f32 %v2342, %v2355
    %v2366 = vadd.f32 %v2343, %v2355
    %v2367 = vadd.f32 %v2344, %v2355
    %v2368 = vadd.f32 %v2345, %v2355
    %v2369 = vadd.f32 %v2346, %v2355
    %v2370 = vadd.f32 %v2347, %v2355
    %v2371 = vadd.f32 %v2348, %v2355
    %v2372 = vadd.f32 %v2349, %v2355
    %v2373 = vmax.f32 %v2357, 0.0
    %v2374 = vmax.f32 %v2358, 0.0
    %v2375 = vmax.f32 %v2359, 0.0
    %v2376 = vmax.f32 %v2360, 0.0
    %v2377 = vmax.f32 %v2361, 0.0
    %v2378 = vmax.f32 %v2362, 0.0
    %v2379 = vmax.f32 %v2363, 0.0
    %v2380 = vmax.f32 %v2364, 0.0
    %v2381 = vmax.f32 %v2365, 0.0
    %v2382 = vmax.f32 %v2366, 0.0
    %v2383 = vmax.f32 %v2367, 0.0
    %v2384 = vmax.f32 %v2368, 0.0
    %v2385 = vmax.f32 %v2369, 0.0
    %v2386 = vmax.f32 %v2370, 0.0
    %v2387 = vmax.f32 %v2371, 0.0
    %v2388 = vmax.f32 %v2372, 0.0
    %2389 = vst.msk [vmem:[%s126 + $0x1] sm:$0xff] %vm68, %v2373
    %2390 = vst.msk [vmem:[%s126 + $0x11] sm:$0xff] %vm68, %v2374
    %2391 = vst.msk [vmem:[%s126 + $0x21] sm:$0xff] %vm68, %v2375
    %2392 = vst.msk [vmem:[%s126 + $0x31] sm:$0xff] %vm68, %v2376
    %2393 = vst.msk [vmem:[%s126 + $0x41] sm:$0xff] %vm68, %v2377
    %2394 = vst.msk [vmem:[%s126 + $0x51] sm:$0xff] %vm68, %v2378
    %2395 = vst.msk [vmem:[%s126 + $0x61] sm:$0xff] %vm68, %v2379
    %2396 = vst.msk [vmem:[%s126 + $0x71] sm:$0xff] %vm68, %v2380
    %2397 = vst.msk [vmem:[%s126 + $0xa1] sm:$0xff] %vm68, %v2381
    %2398 = vst.msk [vmem:[%s126 + $0xb1] sm:$0xff] %vm68, %v2382
    %2399 = vst.msk [vmem:[%s126 + $0xc1] sm:$0xff] %vm68, %v2383
    %2400 = vst.msk [vmem:[%s126 + $0xd1] sm:$0xff] %vm68, %v2384
    %2401 = vst.msk [vmem:[%s126 + $0xe1] sm:$0xff] %vm68, %v2385
    %2402 = vst.msk [vmem:[%s126 + $0xf1] sm:$0xff] %vm68, %v2386
    %2403 = vst.msk [vmem:[%s126 + $0x101] sm:$0xff] %vm68, %v2387
    %2404 = vst.msk [vmem:[%s126 + $0x111] sm:$0xff] %vm68, %v2388
    %v2405 = vld [vmem:[#allocation2] sm:$0xff]
    %v2406 = vld [vmem:[#allocation2 + $0x10] sm:$0xff]
    %v2407 = vld [vmem:[#allocation2 + $0x20] sm:$0xff]
    %v2408 = vld [vmem:[#allocation2 + $0x30] sm:$0xff]
    %v2409 = vld [vmem:[#allocation2 + $0x40] sm:$0xff]
    %v2410 = vld [vmem:[#allocation2 + $0x50] sm:$0xff]
    %v2411 = vld [vmem:[#allocation2 + $0x60] sm:$0xff]
    %v2412 = vld [vmem:[#allocation2 + $0x70] sm:$0xff]
    %v2413 = vld [vmem:[#allocation2 + $0xa0] sm:$0xff]
    %v2414 = vld [vmem:[#allocation2 + $0xb0] sm:$0xff]
    %v2415 = vld [vmem:[#allocation2 + $0xc0] sm:$0xff]
    %v2416 = vld [vmem:[#allocation2 + $0xd0] sm:$0xff]
    %v2417 = vld [vmem:[#allocation2 + $0xe0] sm:$0xff]
    %v2418 = vld [vmem:[#allocation2 + $0xf0] sm:$0xff]
    %v2419 = vld [vmem:[#allocation2 + $0x100] sm:$0xff]
    %v2420 = vld [vmem:[#allocation2 + $0x110] sm:$0xff]
    %v2421 = vld [vmem:[#allocation8] sm:$0xff]
    %v2422 = vld [vmem:[#allocation8 + $0x8] sm:$0xff]
    %v2423 = vld [vmem:[#allocation8 + $0x10] sm:$0xff]
    %v2424 = vld [vmem:[#allocation8 + $0x18] sm:$0xff]
    %v2425 = vld [vmem:[#allocation8 + $0x20] sm:$0xff]
    %v2426 = vld [vmem:[#allocation8 + $0x28] sm:$0xff]
    %v2427 = vld [vmem:[#allocation8 + $0x30] sm:$0xff]
    %v2428 = vld [vmem:[#allocation8 + $0x38] sm:$0xff]
    %v2429 = vld [vmem:[#allocation2 + $0x1] sm:$0xff]
    %v2430 = vld [vmem:[#allocation2 + $0x11] sm:$0xff]
    %v2431 = vld [vmem:[#allocation2 + $0x21] sm:$0xff]
    %v2432 = vld [vmem:[#allocation2 + $0x31] sm:$0xff]
    %v2433 = vld [vmem:[#allocation2 + $0x41] sm:$0xff]
    %v2434 = vld [vmem:[#allocation2 + $0x51] sm:$0xff]
    %v2435 = vld [vmem:[#allocation2 + $0x61] sm:$0xff]
    %v2436 = vld [vmem:[#allocation2 + $0x71] sm:$0xff]
    %v2437 = vld [vmem:[#allocation2 + $0xa1] sm:$0xff]
    %v2438 = vld [vmem:[#allocation2 + $0xb1] sm:$0xff]
    %v2439 = vld [vmem:[#allocation2 + $0xc1] sm:$0xff]
    %v2440 = vld [vmem:[#allocation2 + $0xd1] sm:$0xff]
    %v2441 = vld [vmem:[#allocation2 + $0xe1] sm:$0xff]
    %v2442 = vld [vmem:[#allocation2 + $0xf1] sm:$0xff]
    %v2443 = vld [vmem:[#allocation2 + $0x101] sm:$0xff]
    %v2444 = vld [vmem:[#allocation2 + $0x111] sm:$0xff]
    %s2445 = scalar_lea.vmem [#allocation8], 64
    %v2446 = vld [vmem:[%s2445] sm:$0xff]
    %v2447 = vld [vmem:[%s2445 + $0x8] sm:$0xff]
    %v2448 = vld [vmem:[%s2445 + $0x10] sm:$0xff]
    %v2449 = vld [vmem:[%s2445 + $0x18] sm:$0xff]
    %v2450 = vld [vmem:[%s2445 + $0x20] sm:$0xff]
    %v2451 = vld [vmem:[%s2445 + $0x28] sm:$0xff]
    %v2452 = vld [vmem:[%s2445 + $0x30] sm:$0xff]
    %v2453 = vld [vmem:[%s2445 + $0x38] sm:$0xff]
    %v2455 = vsel %vm68, %v2429, 0
    %v2458 = vsel %vm68, %v2430, 0
    %v2461 = vsel %vm68, %v2431, 0
    %v2464 = vsel %vm68, %v2432, 0
    %v2467 = vsel %vm68, %v2433, 0
    %v2470 = vsel %vm68, %v2434, 0
    %v2473 = vsel %vm68, %v2435, 0
    %v2476 = vsel %vm68, %v2436, 0
    %v2479 = vsel %vm68, %v2437, 0
    %v2482 = vsel %vm68, %v2438, 0
    %v2485 = vsel %vm68, %v2439, 0
    %v2488 = vsel %vm68, %v2440, 0
    %v2491 = vsel %vm68, %v2441, 0
    %v2494 = vsel %vm68, %v2442, 0
    %v2497 = vsel %vm68, %v2443, 0
    %v2500 = vsel %vm68, %v2444, 0
    %2502 = vmatprep.subr.mxu0 0.0
    %2503 = vmatpush1.msra.mxu0 %v2446
    %2504 = vmatprep.subr.mxu0 0.0
    %2505 = vmatpush1.msra.mxu0 %v2447
    %2506 = vmatprep.subr.mxu0 0.0
    %2507 = vmatpush1.msra.mxu0 %v2448
    %2508 = vmatprep.subr.mxu0 0.0
    %2509 = vmatpush1.msra.mxu0 %v2449
    %2510 = vmatprep.subr.mxu0 0.0
    %2511 = vmatpush1.msra.mxu0 %v2450
    %2512 = vmatprep.subr.mxu0 0.0
    %2513 = vmatpush1.msra.mxu0 %v2451
    %2514 = vmatprep.subr.mxu0 0.0
    %2515 = vmatpush1.msra.mxu0 %v2452
    %2516 = vmatprep.subr.mxu0 0.0
    %2517 = vmatpush1.msra.mxu0 %v2453
    %2518 = vmatprep.subr.mxu0 0.0
    %2519 = vmatpush1.msra.mxu0 0.0
    %2520 = vmatprep.subr.mxu0 0.0
    %2521 = vmatpush1.msra.mxu0 0.0
    %2522 = vmatprep.subr.mxu0 0.0
    %2523 = vmatpush1.msra.mxu0 0.0
    %2524 = vmatprep.subr.mxu0 0.0
    %2525 = vmatpush1.msra.mxu0 0.0
    %2526 = vmatprep.subr.mxu0 0.0
    %2527 = vmatpush1.msra.mxu0 0.0
    %2528 = vmatprep.subr.mxu0 0.0
    %2529 = vmatpush1.msra.mxu0 0.0
    %2530 = vmatprep.subr.mxu0 0.0
    %2531 = vmatpush1.msra.mxu0 0.0
    %2532 = vmatprep.subr.mxu0 0.0
    %2533 = vmatpush1.msra.mxu0 0.0
    %2534 = vmatprep.subr.mxu0 0.0
    %2535 = vmatpush1.msra.mxu0 0.0
    %2536 = vmatprep.subr.mxu0 0.0
    %2537 = vmatpush1.msra.mxu0 0.0
    %2538 = vmatprep.subr.mxu0 0.0
    %2539 = vmatpush1.msra.mxu0 0.0
    %2540 = vmatprep.subr.mxu0 0.0
    %2541 = vmatpush1.msra.mxu0 0.0
    %2542 = vmatprep.subr.mxu0 0.0
    %2543 = vmatpush1.msra.mxu0 0.0
    %2544 = vmatprep.subr.mxu0 0.0
    %2545 = vmatpush1.msra.mxu0 0.0
    %2546 = vmatprep.subr.mxu0 0.0
    %2547 = vmatpush1.msra.mxu0 0.0
    %2548 = vmatprep.subr.mxu0 0.0
    %2549 = vmatpush1.msra.mxu0 0.0
    %2550 = vmatprep.subr.mxu0 0.0
    %2551 = vmatpush1.msra.mxu0 0.0
    %2552 = vmatprep.subr.mxu0 0.0
    %2553 = vmatpush1.msra.mxu0 0.0
    %2554 = vmatprep.subr.mxu0 0.0
    %2555 = vmatpush1.msra.mxu0 0.0
    %2556 = vmatprep.subr.mxu0 0.0
    %2557 = vmatpush1.msra.mxu0 0.0
    %2558 = vmatprep.subr.mxu0 0.0
    %2559 = vmatpush1.msra.mxu0 0.0
    %2560 = vmatprep.subr.mxu0 0.0
    %2561 = vmatpush1.msra.mxu0 0.0
    %2562 = vmatprep.subr.mxu0 0.0
    %2563 = vmatpush1.msra.mxu0 0.0
    %2564 = vmatprep.subr.mxu0 0.0
    %2565 = vmatpush1.msra.mxu0 0.0
    %2566 = vmatprep.mubr.f32.mxu0 0.0
    %2567 = vmatmul.mubr.f32.gmra.mrb[0].mxu0 %v2455
    %v2568 = vpop.f32.mrb[0].mxu0
    %v2569 = vadd.f32 0.0, %v2568
    %v2570 = vpop.f32.mrb[0].mxu0
    %2571 = vmatprep.mubr.f32.mxu0 0.0
    %2572 = vmatmul.mubr.f32.gmra.mrb[0].mxu0 %v2458
    %v2573 = vpop.f32.mrb[0].mxu0
    %v2574 = vadd.f32 0.0, %v2573
    %v2575 = vpop.f32.mrb[0].mxu0
    %2576 = vmatprep.mubr.f32.mxu0 0.0
    %2577 = vmatmul.mubr.f32.gmra.mrb[0].mxu0 %v2461
    %v2578 = vpop.f32.mrb[0].mxu0
    %v2579 = vadd.f32 0.0, %v2578
    %v2580 = vpop.f32.mrb[0].mxu0
    %2581 = vmatprep.mubr.f32.mxu0 0.0
    %2582 = vmatmul.mubr.f32.gmra.mrb[0].mxu0 %v2464
    %v2583 = vpop.f32.mrb[0].mxu0
    %v2584 = vadd.f32 0.0, %v2583
    %v2585 = vpop.f32.mrb[0].mxu0
    %2586 = vmatprep.mubr.f32.mxu0 0.0
    %2587 = vmatmul.mubr.f32.gmra.mrb[0].mxu0 %v2467
    %v2588 = vpop.f32.mrb[0].mxu0
    %v2589 = vadd.f32 0.0, %v2588
    %v2590 = vpop.f32.mrb[0].mxu0
    %2591 = vmatprep.mubr.f32.mxu0 0.0
    %2592 = vmatmul.mubr.f32.gmra.mrb[0].mxu0 %v2470
    %v2593 = vpop.f32.mrb[0].mxu0
    %v2594 = vadd.f32 0.0, %v2593
    %v2595 = vpop.f32.mrb[0].mxu0
    %2596 = vmatprep.mubr.f32.mxu0 0.0
    %2597 = vmatmul.mubr.f32.gmra.mrb[0].mxu0 %v2473
    %v2598 = vpop.f32.mrb[0].mxu0
    %v2599 = vadd.f32 0.0, %v2598
    %v2600 = vpop.f32.mrb[0].mxu0
    %2601 = vmatprep.mubr.f32.mxu0 0.0
    %2602 = vmatmul.mubr.f32.gmra.mrb[0].mxu0 %v2476
    %v2603 = vpop.f32.mrb[0].mxu0
    %v2604 = vadd.f32 0.0, %v2603
    %v2605 = vpop.f32.mrb[0].mxu0
    %2606 = vmatprep.mubr.f32.mxu0 0.0
    %2607 = vmatmul.mubr.f32.gmra.mrb[0].mxu0 %v2479
    %v2608 = vpop.f32.mrb[0].mxu0
    %v2609 = vadd.f32 0.0, %v2608
    %v2610 = vpop.f32.mrb[0].mxu0
    %2611 = vmatprep.mubr.f32.mxu0 0.0
    %2612 = vmatmul.mubr.f32.gmra.mrb[0].mxu0 %v2482
    %v2613 = vpop.f32.mrb[0].mxu0
    %v2614 = vadd.f32 0.0, %v2613
    %v2615 = vpop.f32.mrb[0].mxu0
    %2616 = vmatprep.mubr.f32.mxu0 0.0
    %2617 = vmatmul.mubr.f32.gmra.mrb[0].mxu0 %v2485
    %v2618 = vpop.f32.mrb[0].mxu0
    %v2619 = vadd.f32 0.0, %v2618
    %v2620 = vpop.f32.mrb[0].mxu0
    %2621 = vmatprep.mubr.f32.mxu0 0.0
    %2622 = vmatmul.mubr.f32.gmra.mrb[0].mxu0 %v2488
    %v2623 = vpop.f32.mrb[0].mxu0
    %v2624 = vadd.f32 0.0, %v2623
    %v2625 = vpop.f32.mrb[0].mxu0
    %2626 = vmatprep.mubr.f32.mxu0 0.0
    %2627 = vmatmul.mubr.f32.gmra.mrb[0].mxu0 %v2491
    %v2628 = vpop.f32.mrb[0].mxu0
    %v2629 = vadd.f32 0.0, %v2628
    %v2630 = vpop.f32.mrb[0].mxu0
    %2631 = vmatprep.mubr.f32.mxu0 0.0
    %2632 = vmatmul.mubr.f32.gmra.mrb[0].mxu0 %v2494
    %v2633 = vpop.f32.mrb[0].mxu0
    %v2634 = vadd.f32 0.0, %v2633
    %v2635 = vpop.f32.mrb[0].mxu0
    %2636 = vmatprep.mubr.f32.mxu0 0.0
    %2637 = vmatmul.mubr.f32.gmra.mrb[0].mxu0 %v2497
    %v2638 = vpop.f32.mrb[0].mxu0
    %v2639 = vadd.f32 0.0, %v2638
    %v2640 = vpop.f32.mrb[0].mxu0
    %2641 = vmatprep.mubr.f32.mxu0 0.0
    %2642 = vmatmul.mubr.f32.gmra.mrb[0].mxu0 %v2500
    %v2643 = vpop.f32.mrb[0].mxu0
    %v2644 = vadd.f32 0.0, %v2643
    %v2645 = vpop.f32.mrb[0].mxu0
    %2646 = vdwg.mxu0
    %v2648 = vsel %vm68, %v2405, 0
    %v2651 = vsel %vm68, %v2406, 0
    %v2654 = vsel %vm68, %v2407, 0
    %v2657 = vsel %vm68, %v2408, 0
    %v2660 = vsel %vm68, %v2409, 0
    %v2663 = vsel %vm68, %v2410, 0
    %v2666 = vsel %vm68, %v2411, 0
    %v2669 = vsel %vm68, %v2412, 0
    %v2672 = vsel %vm68, %v2413, 0
    %v2675 = vsel %vm68, %v2414, 0
    %v2678 = vsel %vm68, %v2415, 0
    %v2681 = vsel %vm68, %v2416, 0
    %v2684 = vsel %vm68, %v2417, 0
    %v2687 = vsel %vm68, %v2418, 0
    %v2690 = vsel %vm68, %v2419, 0
    %v2693 = vsel %vm68, %v2420, 0
    %2695 = vmatprep.subr.mxu0 0.0
    %2696 = vmatpush1.msra.mxu0 %v2421
    %2697 = vmatprep.subr.mxu0 0.0
    %2698 = vmatpush1.msra.mxu0 %v2422
    %2699 = vmatprep.subr.mxu0 0.0
    %2700 = vmatpush1.msra.mxu0 %v2423
    %2701 = vmatprep.subr.mxu0 0.0
    %2702 = vmatpush1.msra.mxu0 %v2424
    %2703 = vmatprep.subr.mxu0 0.0
    %2704 = vmatpush1.msra.mxu0 %v2425
    %2705 = vmatprep.subr.mxu0 0.0
    %2706 = vmatpush1.msra.mxu0 %v2426
    %2707 = vmatprep.subr.mxu0 0.0
    %2708 = vmatpush1.msra.mxu0 %v2427
    %2709 = vmatprep.subr.mxu0 0.0
    %2710 = vmatpush1.msra.mxu0 %v2428
    %2711 = vmatprep.subr.mxu0 0.0
    %2712 = vmatpush1.msra.mxu0 0.0
    %2713 = vmatprep.subr.mxu0 0.0
    %2714 = vmatpush1.msra.mxu0 0.0
    %2715 = vmatprep.subr.mxu0 0.0
    %2716 = vmatpush1.msra.mxu0 0.0
    %2717 = vmatprep.subr.mxu0 0.0
    %2718 = vmatpush1.msra.mxu0 0.0
    %2719 = vmatprep.subr.mxu0 0.0
    %2720 = vmatpush1.msra.mxu0 0.0
    %2721 = vmatprep.subr.mxu0 0.0
    %2722 = vmatpush1.msra.mxu0 0.0
    %2723 = vmatprep.subr.mxu0 0.0
    %2724 = vmatpush1.msra.mxu0 0.0
    %2725 = vmatprep.subr.mxu0 0.0
    %2726 = vmatpush1.msra.mxu0 0.0
    %2727 = vmatprep.subr.mxu0 0.0
    %2728 = vmatpush1.msra.mxu0 0.0
    %2729 = vmatprep.subr.mxu0 0.0
    %2730 = vmatpush1.msra.mxu0 0.0
    %2731 = vmatprep.subr.mxu0 0.0
    %2732 = vmatpush1.msra.mxu0 0.0
    %2733 = vmatprep.subr.mxu0 0.0
    %2734 = vmatpush1.msra.mxu0 0.0
    %2735 = vmatprep.subr.mxu0 0.0
    %2736 = vmatpush1.msra.mxu0 0.0
    %2737 = vmatprep.subr.mxu0 0.0
    %2738 = vmatpush1.msra.mxu0 0.0
    %2739 = vmatprep.subr.mxu0 0.0
    %2740 = vmatpush1.msra.mxu0 0.0
    %2741 = vmatprep.subr.mxu0 0.0
    %2742 = vmatpush1.msra.mxu0 0.0
    %2743 = vmatprep.subr.mxu0 0.0
    %2744 = vmatpush1.msra.mxu0 0.0
    %2745 = vmatprep.subr.mxu0 0.0
    %2746 = vmatpush1.msra.mxu0 0.0
    %2747 = vmatprep.subr.mxu0 0.0
    %2748 = vmatpush1.msra.mxu0 0.0
    %2749 = vmatprep.subr.mxu0 0.0
    %2750 = vmatpush1.msra.mxu0 0.0
    %2751 = vmatprep.subr.mxu0 0.0
    %2752 = vmatpush1.msra.mxu0 0.0
    %2753 = vmatprep.subr.mxu0 0.0
    %2754 = vmatpush1.msra.mxu0 0.0
    %2755 = vmatprep.subr.mxu0 0.0
    %2756 = vmatpush1.msra.mxu0 0.0
    %2757 = vmatprep.subr.mxu0 0.0
    %2758 = vmatpush1.msra.mxu0 0.0
    %2759 = vmatprep.mubr.f32.mxu0 0.0
    %2760 = vmatmul.mubr.f32.gmra.mrb[0].mxu0 %v2648
    %v2761 = vpop.f32.mrb[0].mxu0
    %v2762 = vadd.f32 %v2569, %v2761
    %v2763 = vpop.f32.mrb[0].mxu0
    %2764 = vmatprep.mubr.f32.mxu0 0.0
    %2765 = vmatmul.mubr.f32.gmra.mrb[0].mxu0 %v2651
    %v2766 = vpop.f32.mrb[0].mxu0
    %v2767 = vadd.f32 %v2574, %v2766
    %v2768 = vpop.f32.mrb[0].mxu0
    %2769 = vmatprep.mubr.f32.mxu0 0.0
    %2770 = vmatmul.mubr.f32.gmra.mrb[0].mxu0 %v2654
    %v2771 = vpop.f32.mrb[0].mxu0
    %v2772 = vadd.f32 %v2579, %v2771
    %v2773 = vpop.f32.mrb[0].mxu0
    %2774 = vmatprep.mubr.f32.mxu0 0.0
    %2775 = vmatmul.mubr.f32.gmra.mrb[0].mxu0 %v2657
    %v2776 = vpop.f32.mrb[0].mxu0
    %v2777 = vadd.f32 %v2584, %v2776
    %v2778 = vpop.f32.mrb[0].mxu0
    %2779 = vmatprep.mubr.f32.mxu0 0.0
    %2780 = vmatmul.mubr.f32.gmra.mrb[0].mxu0 %v2660
    %v2781 = vpop.f32.mrb[0].mxu0
    %v2782 = vadd.f32 %v2589, %v2781
    %v2783 = vpop.f32.mrb[0].mxu0
    %2784 = vmatprep.mubr.f32.mxu0 0.0
    %2785 = vmatmul.mubr.f32.gmra.mrb[0].mxu0 %v2663
    %v2786 = vpop.f32.mrb[0].mxu0
    %v2787 = vadd.f32 %v2594, %v2786
    %v2788 = vpop.f32.mrb[0].mxu0
    %2789 = vmatprep.mubr.f32.mxu0 0.0
    %2790 = vmatmul.mubr.f32.gmra.mrb[0].mxu0 %v2666
    %v2791 = vpop.f32.mrb[0].mxu0
    %v2792 = vadd.f32 %v2599, %v2791
    %v2793 = vpop.f32.mrb[0].mxu0
    %2794 = vmatprep.mubr.f32.mxu0 0.0
    %2795 = vmatmul.mubr.f32.gmra.mrb[0].mxu0 %v2669
    %v2796 = vpop.f32.mrb[0].mxu0
    %v2797 = vadd.f32 %v2604, %v2796
    %v2798 = vpop.f32.mrb[0].mxu0
    %2799 = vmatprep.mubr.f32.mxu0 0.0
    %2800 = vmatmul.mubr.f32.gmra.mrb[0].mxu0 %v2672
    %v2801 = vpop.f32.mrb[0].mxu0
    %v2802 = vadd.f32 %v2609, %v2801
    %v2803 = vpop.f32.mrb[0].mxu0
    %2804 = vmatprep.mubr.f32.mxu0 0.0
    %2805 = vmatmul.mubr.f32.gmra.mrb[0].mxu0 %v2675
    %v2806 = vpop.f32.mrb[0].mxu0
    %v2807 = vadd.f32 %v2614, %v2806
    %v2808 = vpop.f32.mrb[0].mxu0
    %2809 = vmatprep.mubr.f32.mxu0 0.0
    %2810 = vmatmul.mubr.f32.gmra.mrb[0].mxu0 %v2678
    %v2811 = vpop.f32.mrb[0].mxu0
    %v2812 = vadd.f32 %v2619, %v2811
    %v2813 = vpop.f32.mrb[0].mxu0
    %2814 = vmatprep.mubr.f32.mxu0 0.0
    %2815 = vmatmul.mubr.f32.gmra.mrb[0].mxu0 %v2681
    %v2816 = vpop.f32.mrb[0].mxu0
    %v2817 = vadd.f32 %v2624, %v2816
    %v2818 = vpop.f32.mrb[0].mxu0
    %2819 = vmatprep.mubr.f32.mxu0 0.0
    %2820 = vmatmul.mubr.f32.gmra.mrb[0].mxu0 %v2684
    %v2821 = vpop.f32.mrb[0].mxu0
    %v2822 = vadd.f32 %v2629, %v2821
    %v2823 = vpop.f32.mrb[0].mxu0
    %2824 = vmatprep.mubr.f32.mxu0 0.0
    %2825 = vmatmul.mubr.f32.gmra.mrb[0].mxu0 %v2687
    %v2826 = vpop.f32.mrb[0].mxu0
    %v2827 = vadd.f32 %v2634, %v2826
    %v2828 = vpop.f32.mrb[0].mxu0
    %2829 = vmatprep.mubr.f32.mxu0 0.0
    %2830 = vmatmul.mubr.f32.gmra.mrb[0].mxu0 %v2690
    %v2831 = vpop.f32.mrb[0].mxu0
    %v2832 = vadd.f32 %v2639, %v2831
    %v2833 = vpop.f32.mrb[0].mxu0
    %2834 = vmatprep.mubr.f32.mxu0 0.0
    %2835 = vmatmul.mubr.f32.gmra.mrb[0].mxu0 %v2693
    %v2836 = vpop.f32.mrb[0].mxu0
    %v2837 = vadd.f32 %v2644, %v2836
    %v2838 = vpop.f32.mrb[0].mxu0
    %2839 = vdwg.mxu0
    %v2840 = vld [vmem:[#allocation2 + $0x2] sm:$0xff]
    %v2841 = vld [vmem:[#allocation2 + $0x12] sm:$0xff]
    %v2842 = vld [vmem:[#allocation2 + $0x22] sm:$0xff]
    %v2843 = vld [vmem:[#allocation2 + $0x32] sm:$0xff]
    %v2844 = vld [vmem:[#allocation2 + $0x42] sm:$0xff]
    %v2845 = vld [vmem:[#allocation2 + $0x52] sm:$0xff]
    %v2846 = vld [vmem:[#allocation2 + $0x62] sm:$0xff]
    %v2847 = vld [vmem:[#allocation2 + $0x72] sm:$0xff]
    %v2848 = vld [vmem:[#allocation2 + $0xa2] sm:$0xff]
    %v2849 = vld [vmem:[#allocation2 + $0xb2] sm:$0xff]
    %v2850 = vld [vmem:[#allocation2 + $0xc2] sm:$0xff]
    %v2851 = vld [vmem:[#allocation2 + $0xd2] sm:$0xff]
    %v2852 = vld [vmem:[#allocation2 + $0xe2] sm:$0xff]
    %v2853 = vld [vmem:[#allocation2 + $0xf2] sm:$0xff]
    %v2854 = vld [vmem:[#allocation2 + $0x102] sm:$0xff]
    %v2855 = vld [vmem:[#allocation2 + $0x112] sm:$0xff]
    %s2856 = scalar_lea.vmem [#allocation8], 128
    %v2857 = vld [vmem:[%s2856] sm:$0xff]
    %v2858 = vld [vmem:[%s2856 + $0x8] sm:$0xff]
    %v2859 = vld [vmem:[%s2856 + $0x10] sm:$0xff]
    %v2860 = vld [vmem:[%s2856 + $0x18] sm:$0xff]
    %v2861 = vld [vmem:[%s2856 + $0x20] sm:$0xff]
    %v2862 = vld [vmem:[%s2856 + $0x28] sm:$0xff]
    %v2863 = vld [vmem:[%s2856 + $0x30] sm:$0xff]
    %v2864 = vld [vmem:[%s2856 + $0x38] sm:$0xff]
    %v2866 = vsel %vm68, %v2840, 0
    %v2869 = vsel %vm68, %v2841, 0
    %v2872 = vsel %vm68, %v2842, 0
    %v2875 = vsel %vm68, %v2843, 0
    %v2878 = vsel %vm68, %v2844, 0
    %v2881 = vsel %vm68, %v2845, 0
    %v2884 = vsel %vm68, %v2846, 0
    %v2887 = vsel %vm68, %v2847, 0
    %v2890 = vsel %vm68, %v2848, 0
    %v2893 = vsel %vm68, %v2849, 0
    %v2896 = vsel %vm68, %v2850, 0
    %v2899 = vsel %vm68, %v2851, 0
    %v2902 = vsel %vm68, %v2852, 0
    %v2905 = vsel %vm68, %v2853, 0
    %v2908 = vsel %vm68, %v2854, 0
    %v2911 = vsel %vm68, %v2855, 0
    %2913 = vmatprep.subr.mxu0 0.0
    %2914 = vmatpush1.msra.mxu0 %v2857
    %2915 = vmatprep.subr.mxu0 0.0
    %2916 = vmatpush1.msra.mxu0 %v2858
    %2917 = vmatprep.subr.mxu0 0.0
    %2918 = vmatpush1.msra.mxu0 %v2859
    %2919 = vmatprep.subr.mxu0 0.0
    %2920 = vmatpush1.msra.mxu0 %v2860
    %2921 = vmatprep.subr.mxu0 0.0
    %2922 = vmatpush1.msra.mxu0 %v2861
    %2923 = vmatprep.subr.mxu0 0.0
    %2924 = vmatpush1.msra.mxu0 %v2862
    %2925 = vmatprep.subr.mxu0 0.0
    %2926 = vmatpush1.msra.mxu0 %v2863
    %2927 = vmatprep.subr.mxu0 0.0
    %2928 = vmatpush1.msra.mxu0 %v2864
    %2929 = vmatprep.subr.mxu0 0.0
    %2930 = vmatpush1.msra.mxu0 0.0
    %2931 = vmatprep.subr.mxu0 0.0
    %2932 = vmatpush1.msra.mxu0 0.0
    %2933 = vmatprep.subr.mxu0 0.0
    %2934 = vmatpush1.msra.mxu0 0.0
    %2935 = vmatprep.subr.mxu0 0.0
    %2936 = vmatpush1.msra.mxu0 0.0
    %2937 = vmatprep.subr.mxu0 0.0
    %2938 = vmatpush1.msra.mxu0 0.0
    %2939 = vmatprep.subr.mxu0 0.0
    %2940 = vmatpush1.msra.mxu0 0.0
    %2941 = vmatprep.subr.mxu0 0.0
    %2942 = vmatpush1.msra.mxu0 0.0
    %2943 = vmatprep.subr.mxu0 0.0
    %2944 = vmatpush1.msra.mxu0 0.0
    %2945 = vmatprep.subr.mxu0 0.0
    %2946 = vmatpush1.msra.mxu0 0.0
    %2947 = vmatprep.subr.mxu0 0.0
    %2948 = vmatpush1.msra.mxu0 0.0
    %2949 = vmatprep.subr.mxu0 0.0
    %2950 = vmatpush1.msra.mxu0 0.0
    %2951 = vmatprep.subr.mxu0 0.0
    %2952 = vmatpush1.msra.mxu0 0.0
    %2953 = vmatprep.subr.mxu0 0.0
    %2954 = vmatpush1.msra.mxu0 0.0
    %2955 = vmatprep.subr.mxu0 0.0
    %2956 = vmatpush1.msra.mxu0 0.0
    %2957 = vmatprep.subr.mxu0 0.0
    %2958 = vmatpush1.msra.mxu0 0.0
    %2959 = vmatprep.subr.mxu0 0.0
    %2960 = vmatpush1.msra.mxu0 0.0
    %2961 = vmatprep.subr.mxu0 0.0
    %2962 = vmatpush1.msra.mxu0 0.0
    %2963 = vmatprep.subr.mxu0 0.0
    %2964 = vmatpush1.msra.mxu0 0.0
    %2965 = vmatprep.subr.mxu0 0.0
    %2966 = vmatpush1.msra.mxu0 0.0
    %2967 = vmatprep.subr.mxu0 0.0
    %2968 = vmatpush1.msra.mxu0 0.0
    %2969 = vmatprep.subr.mxu0 0.0
    %2970 = vmatpush1.msra.mxu0 0.0
    %2971 = vmatprep.subr.mxu0 0.0
    %2972 = vmatpush1.msra.mxu0 0.0
    %2973 = vmatprep.subr.mxu0 0.0
    %2974 = vmatpush1.msra.mxu0 0.0
    %2975 = vmatprep.subr.mxu0 0.0
    %2976 = vmatpush1.msra.mxu0 0.0
    %2977 = vmatprep.mubr.f32.mxu0 0.0
    %2978 = vmatmul.mubr.f32.gmra.mrb[0].mxu0 %v2866
    %v2979 = vpop.f32.mrb[0].mxu0
    %v2980 = vadd.f32 0.0, %v2979
    %v2981 = vpop.f32.mrb[0].mxu0
    %2982 = vmatprep.mubr.f32.mxu0 0.0
    %2983 = vmatmul.mubr.f32.gmra.mrb[0].mxu0 %v2869
    %v2984 = vpop.f32.mrb[0].mxu0
    %v2985 = vadd.f32 0.0, %v2984
    %v2986 = vpop.f32.mrb[0].mxu0
    %2987 = vmatprep.mubr.f32.mxu0 0.0
    %2988 = vmatmul.mubr.f32.gmra.mrb[0].mxu0 %v2872
    %v2989 = vpop.f32.mrb[0].mxu0
    %v2990 = vadd.f32 0.0, %v2989
    %v2991 = vpop.f32.mrb[0].mxu0
    %2992 = vmatprep.mubr.f32.mxu0 0.0
    %2993 = vmatmul.mubr.f32.gmra.mrb[0].mxu0 %v2875
    %v2994 = vpop.f32.mrb[0].mxu0
    %v2995 = vadd.f32 0.0, %v2994
    %v2996 = vpop.f32.mrb[0].mxu0
    %2997 = vmatprep.mubr.f32.mxu0 0.0
    %2998 = vmatmul.mubr.f32.gmra.mrb[0].mxu0 %v2878
    %v2999 = vpop.f32.mrb[0].mxu0
    %v3000 = vadd.f32 0.0, %v2999
    %v3001 = vpop.f32.mrb[0].mxu0
    %3002 = vmatprep.mubr.f32.mxu0 0.0
    %3003 = vmatmul.mubr.f32.gmra.mrb[0].mxu0 %v2881
    %v3004 = vpop.f32.mrb[0].mxu0
    %v3005 = vadd.f32 0.0, %v3004
    %v3006 = vpop.f32.mrb[0].mxu0
    %3007 = vmatprep.mubr.f32.mxu0 0.0
    %3008 = vmatmul.mubr.f32.gmra.mrb[0].mxu0 %v2884
    %v3009 = vpop.f32.mrb[0].mxu0
    %v3010 = vadd.f32 0.0, %v3009
    %v3011 = vpop.f32.mrb[0].mxu0
    %3012 = vmatprep.mubr.f32.mxu0 0.0
    %3013 = vmatmul.mubr.f32.gmra.mrb[0].mxu0 %v2887
    %v3014 = vpop.f32.mrb[0].mxu0
    %v3015 = vadd.f32 0.0, %v3014
    %v3016 = vpop.f32.mrb[0].mxu0
    %3017 = vmatprep.mubr.f32.mxu0 0.0
    %3018 = vmatmul.mubr.f32.gmra.mrb[0].mxu0 %v2890
    %v3019 = vpop.f32.mrb[0].mxu0
    %v3020 = vadd.f32 0.0, %v3019
    %v3021 = vpop.f32.mrb[0].mxu0
    %3022 = vmatprep.mubr.f32.mxu0 0.0
    %3023 = vmatmul.mubr.f32.gmra.mrb[0].mxu0 %v2893
    %v3024 = vpop.f32.mrb[0].mxu0
    %v3025 = vadd.f32 0.0, %v3024
    %v3026 = vpop.f32.mrb[0].mxu0
    %3027 = vmatprep.mubr.f32.mxu0 0.0
    %3028 = vmatmul.mubr.f32.gmra.mrb[0].mxu0 %v2896
    %v3029 = vpop.f32.mrb[0].mxu0
    %v3030 = vadd.f32 0.0, %v3029
    %v3031 = vpop.f32.mrb[0].mxu0
    %3032 = vmatprep.mubr.f32.mxu0 0.0
    %3033 = vmatmul.mubr.f32.gmra.mrb[0].mxu0 %v2899
    %v3034 = vpop.f32.mrb[0].mxu0
    %v3035 = vadd.f32 0.0, %v3034
    %v3036 = vpop.f32.mrb[0].mxu0
    %3037 = vmatprep.mubr.f32.mxu0 0.0
    %3038 = vmatmul.mubr.f32.gmra.mrb[0].mxu0 %v2902
    %v3039 = vpop.f32.mrb[0].mxu0
    %v3040 = vadd.f32 0.0, %v3039
    %v3041 = vpop.f32.mrb[0].mxu0
    %3042 = vmatprep.mubr.f32.mxu0 0.0
    %3043 = vmatmul.mubr.f32.gmra.mrb[0].mxu0 %v2905
    %v3044 = vpop.f32.mrb[0].mxu0
    %v3045 = vadd.f32 0.0, %v3044
    %v3046 = vpop.f32.mrb[0].mxu0
    %3047 = vmatprep.mubr.f32.mxu0 0.0
    %3048 = vmatmul.mubr.f32.gmra.mrb[0].mxu0 %v2908
    %v3049 = vpop.f32.mrb[0].mxu0
    %v3050 = vadd.f32 0.0, %v3049
    %v3051 = vpop.f32.mrb[0].mxu0
    %3052 = vmatprep.mubr.f32.mxu0 0.0
    %3053 = vmatmul.mubr.f32.gmra.mrb[0].mxu0 %v2911
    %v3054 = vpop.f32.mrb[0].mxu0
    %v3055 = vadd.f32 0.0, %v3054
    %v3056 = vpop.f32.mrb[0].mxu0
    %3057 = vdwg.mxu0
    %v3058 = vadd.f32 %v2762, %v2980
    %v3059 = vadd.f32 %v2767, %v2985
    %v3060 = vadd.f32 %v2772, %v2990
    %v3061 = vadd.f32 %v2777, %v2995
    %v3062 = vadd.f32 %v2782, %v3000
    %v3063 = vadd.f32 %v2787, %v3005
    %v3064 = vadd.f32 %v2792, %v3010
    %v3065 = vadd.f32 %v2797, %v3015
    %v3066 = vadd.f32 %v2802, %v3020
    %v3067 = vadd.f32 %v2807, %v3025
    %v3068 = vadd.f32 %v2812, %v3030
    %v3069 = vadd.f32 %v2817, %v3035
    %v3070 = vadd.f32 %v2822, %v3040
    %v3071 = vadd.f32 %v2827, %v3045
    %v3072 = vadd.f32 %v2832, %v3050
    %v3073 = vadd.f32 %v2837, %v3055
    %v3074 = vld [vmem:[%s126] sm:$0xff]
    %v3075 = vld [vmem:[%s126 + $0x10] sm:$0xff]
    %v3076 = vld [vmem:[%s126 + $0x20] sm:$0xff]
    %v3077 = vld [vmem:[%s126 + $0x30] sm:$0xff]
    %v3078 = vld [vmem:[%s126 + $0x40] sm:$0xff]
    %v3079 = vld [vmem:[%s126 + $0x50] sm:$0xff]
    %v3080 = vld [vmem:[%s126 + $0x60] sm:$0xff]
    %v3081 = vld [vmem:[%s126 + $0x70] sm:$0xff]
    %v3082 = vld [vmem:[%s126 + $0xa0] sm:$0xff]
    %v3083 = vld [vmem:[%s126 + $0xb0] sm:$0xff]
    %v3084 = vld [vmem:[%s126 + $0xc0] sm:$0xff]
    %v3085 = vld [vmem:[%s126 + $0xd0] sm:$0xff]
    %v3086 = vld [vmem:[%s126 + $0xe0] sm:$0xff]
    %v3087 = vld [vmem:[%s126 + $0xf0] sm:$0xff]
    %v3088 = vld [vmem:[%s126 + $0x100] sm:$0xff]
    %v3089 = vld [vmem:[%s126 + $0x110] sm:$0xff]
    %s3090 = scalar_lea.vmem [#allocation8], 192
    %v3091 = vld [vmem:[%s3090] sm:$0xff]
    %v3092 = vld [vmem:[%s3090 + $0x8] sm:$0xff]
    %v3093 = vld [vmem:[%s3090 + $0x10] sm:$0xff]
    %v3094 = vld [vmem:[%s3090 + $0x18] sm:$0xff]
    %v3095 = vld [vmem:[%s3090 + $0x20] sm:$0xff]
    %v3096 = vld [vmem:[%s3090 + $0x28] sm:$0xff]
    %v3097 = vld [vmem:[%s3090 + $0x30] sm:$0xff]
    %v3098 = vld [vmem:[%s3090 + $0x38] sm:$0xff]
    %v3100 = vsel %vm68, %v3074, 0
    %v3103 = vsel %vm68, %v3075, 0
    %v3106 = vsel %vm68, %v3076, 0
    %v3109 = vsel %vm68, %v3077, 0
    %v3112 = vsel %vm68, %v3078, 0
    %v3115 = vsel %vm68, %v3079, 0
    %v3118 = vsel %vm68, %v3080, 0
    %v3121 = vsel %vm68, %v3081, 0
    %v3124 = vsel %vm68, %v3082, 0
    %v3127 = vsel %vm68, %v3083, 0
    %v3130 = vsel %vm68, %v3084, 0
    %v3133 = vsel %vm68, %v3085, 0
    %v3136 = vsel %vm68, %v3086, 0
    %v3139 = vsel %vm68, %v3087, 0
    %v3142 = vsel %vm68, %v3088, 0
    %v3145 = vsel %vm68, %v3089, 0
    %3147 = vmatprep.subr.mxu0 0.0
    %3148 = vmatpush1.msra.mxu0 %v3091
    %3149 = vmatprep.subr.mxu0 0.0
    %3150 = vmatpush1.msra.mxu0 %v3092
    %3151 = vmatprep.subr.mxu0 0.0
    %3152 = vmatpush1.msra.mxu0 %v3093
    %3153 = vmatprep.subr.mxu0 0.0
    %3154 = vmatpush1.msra.mxu0 %v3094
    %3155 = vmatprep.subr.mxu0 0.0
    %3156 = vmatpush1.msra.mxu0 %v3095
    %3157 = vmatprep.subr.mxu0 0.0
    %3158 = vmatpush1.msra.mxu0 %v3096
    %3159 = vmatprep.subr.mxu0 0.0
    %3160 = vmatpush1.msra.mxu0 %v3097
    %3161 = vmatprep.subr.mxu0 0.0
    %3162 = vmatpush1.msra.mxu0 %v3098
    %3163 = vmatprep.subr.mxu0 0.0
    %3164 = vmatpush1.msra.mxu0 0.0
    %3165 = vmatprep.subr.mxu0 0.0
    %3166 = vmatpush1.msra.mxu0 0.0
    %3167 = vmatprep.subr.mxu0 0.0
    %3168 = vmatpush1.msra.mxu0 0.0
    %3169 = vmatprep.subr.mxu0 0.0
    %3170 = vmatpush1.msra.mxu0 0.0
    %3171 = vmatprep.subr.mxu0 0.0
    %3172 = vmatpush1.msra.mxu0 0.0
    %3173 = vmatprep.subr.mxu0 0.0
    %3174 = vmatpush1.msra.mxu0 0.0
    %3175 = vmatprep.subr.mxu0 0.0
    %3176 = vmatpush1.msra.mxu0 0.0
    %3177 = vmatprep.subr.mxu0 0.0
    %3178 = vmatpush1.msra.mxu0 0.0
    %3179 = vmatprep.subr.mxu0 0.0
    %3180 = vmatpush1.msra.mxu0 0.0
    %3181 = vmatprep.subr.mxu0 0.0
    %3182 = vmatpush1.msra.mxu0 0.0
    %3183 = vmatprep.subr.mxu0 0.0
    %3184 = vmatpush1.msra.mxu0 0.0
    %3185 = vmatprep.subr.mxu0 0.0
    %3186 = vmatpush1.msra.mxu0 0.0
    %3187 = vmatprep.subr.mxu0 0.0
    %3188 = vmatpush1.msra.mxu0 0.0
    %3189 = vmatprep.subr.mxu0 0.0
    %3190 = vmatpush1.msra.mxu0 0.0
    %3191 = vmatprep.subr.mxu0 0.0
    %3192 = vmatpush1.msra.mxu0 0.0
    %3193 = vmatprep.subr.mxu0 0.0
    %3194 = vmatpush1.msra.mxu0 0.0
    %3195 = vmatprep.subr.mxu0 0.0
    %3196 = vmatpush1.msra.mxu0 0.0
    %3197 = vmatprep.subr.mxu0 0.0
    %3198 = vmatpush1.msra.mxu0 0.0
    %3199 = vmatprep.subr.mxu0 0.0
    %3200 = vmatpush1.msra.mxu0 0.0
    %3201 = vmatprep.subr.mxu0 0.0
    %3202 = vmatpush1.msra.mxu0 0.0
    %3203 = vmatprep.subr.mxu0 0.0
    %3204 = vmatpush1.msra.mxu0 0.0
    %3205 = vmatprep.subr.mxu0 0.0
    %3206 = vmatpush1.msra.mxu0 0.0
    %3207 = vmatprep.subr.mxu0 0.0
    %3208 = vmatpush1.msra.mxu0 0.0
    %3209 = vmatprep.subr.mxu0 0.0
    %3210 = vmatpush1.msra.mxu0 0.0
    %3211 = vmatprep.mubr.f32.mxu0 0.0
    %3212 = vmatmul.mubr.f32.gmra.mrb[0].mxu0 %v3100
    %v3213 = vpop.f32.mrb[0].mxu0
    %v3214 = vadd.f32 0.0, %v3213
    %v3215 = vpop.f32.mrb[0].mxu0
    %3216 = vmatprep.mubr.f32.mxu0 0.0
    %3217 = vmatmul.mubr.f32.gmra.mrb[0].mxu0 %v3103
    %v3218 = vpop.f32.mrb[0].mxu0
    %v3219 = vadd.f32 0.0, %v3218
    %v3220 = vpop.f32.mrb[0].mxu0
    %3221 = vmatprep.mubr.f32.mxu0 0.0
    %3222 = vmatmul.mubr.f32.gmra.mrb[0].mxu0 %v3106
    %v3223 = vpop.f32.mrb[0].mxu0
    %v3224 = vadd.f32 0.0, %v3223
    %v3225 = vpop.f32.mrb[0].mxu0
    %3226 = vmatprep.mubr.f32.mxu0 0.0
    %3227 = vmatmul.mubr.f32.gmra.mrb[0].mxu0 %v3109
    %v3228 = vpop.f32.mrb[0].mxu0
    %v3229 = vadd.f32 0.0, %v3228
    %v3230 = vpop.f32.mrb[0].mxu0
    %3231 = vmatprep.mubr.f32.mxu0 0.0
    %3232 = vmatmul.mubr.f32.gmra.mrb[0].mxu0 %v3112
    %v3233 = vpop.f32.mrb[0].mxu0
    %v3234 = vadd.f32 0.0, %v3233
    %v3235 = vpop.f32.mrb[0].mxu0
    %3236 = vmatprep.mubr.f32.mxu0 0.0
    %3237 = vmatmul.mubr.f32.gmra.mrb[0].mxu0 %v3115
    %v3238 = vpop.f32.mrb[0].mxu0
    %v3239 = vadd.f32 0.0, %v3238
    %v3240 = vpop.f32.mrb[0].mxu0
    %3241 = vmatprep.mubr.f32.mxu0 0.0
    %3242 = vmatmul.mubr.f32.gmra.mrb[0].mxu0 %v3118
    %v3243 = vpop.f32.mrb[0].mxu0
    %v3244 = vadd.f32 0.0, %v3243
    %v3245 = vpop.f32.mrb[0].mxu0
    %3246 = vmatprep.mubr.f32.mxu0 0.0
    %3247 = vmatmul.mubr.f32.gmra.mrb[0].mxu0 %v3121
    %v3248 = vpop.f32.mrb[0].mxu0
    %v3249 = vadd.f32 0.0, %v3248
    %v3250 = vpop.f32.mrb[0].mxu0
    %3251 = vmatprep.mubr.f32.mxu0 0.0
    %3252 = vmatmul.mubr.f32.gmra.mrb[0].mxu0 %v3124
    %v3253 = vpop.f32.mrb[0].mxu0
    %v3254 = vadd.f32 0.0, %v3253
    %v3255 = vpop.f32.mrb[0].mxu0
    %3256 = vmatprep.mubr.f32.mxu0 0.0
    %3257 = vmatmul.mubr.f32.gmra.mrb[0].mxu0 %v3127
    %v3258 = vpop.f32.mrb[0].mxu0
    %v3259 = vadd.f32 0.0, %v3258
    %v3260 = vpop.f32.mrb[0].mxu0
    %3261 = vmatprep.mubr.f32.mxu0 0.0
    %3262 = vmatmul.mubr.f32.gmra.mrb[0].mxu0 %v3130
    %v3263 = vpop.f32.mrb[0].mxu0
    %v3264 = vadd.f32 0.0, %v3263
    %v3265 = vpop.f32.mrb[0].mxu0
    %3266 = vmatprep.mubr.f32.mxu0 0.0
    %3267 = vmatmul.mubr.f32.gmra.mrb[0].mxu0 %v3133
    %v3268 = vpop.f32.mrb[0].mxu0
    %v3269 = vadd.f32 0.0, %v3268
    %v3270 = vpop.f32.mrb[0].mxu0
    %3271 = vmatprep.mubr.f32.mxu0 0.0
    %3272 = vmatmul.mubr.f32.gmra.mrb[0].mxu0 %v3136
    %v3273 = vpop.f32.mrb[0].mxu0
    %v3274 = vadd.f32 0.0, %v3273
    %v3275 = vpop.f32.mrb[0].mxu0
    %3276 = vmatprep.mubr.f32.mxu0 0.0
    %3277 = vmatmul.mubr.f32.gmra.mrb[0].mxu0 %v3139
    %v3278 = vpop.f32.mrb[0].mxu0
    %v3279 = vadd.f32 0.0, %v3278
    %v3280 = vpop.f32.mrb[0].mxu0
    %3281 = vmatprep.mubr.f32.mxu0 0.0
    %3282 = vmatmul.mubr.f32.gmra.mrb[0].mxu0 %v3142
    %v3283 = vpop.f32.mrb[0].mxu0
    %v3284 = vadd.f32 0.0, %v3283
    %v3285 = vpop.f32.mrb[0].mxu0
    %3286 = vmatprep.mubr.f32.mxu0 0.0
    %3287 = vmatmul.mubr.f32.gmra.mrb[0].mxu0 %v3145
    %v3288 = vpop.f32.mrb[0].mxu0
    %v3289 = vadd.f32 0.0, %v3288
    %v3290 = vpop.f32.mrb[0].mxu0
    %3291 = vdwg.mxu0
    %v3292 = vadd.f32 %v3058, %v3214
    %v3293 = vadd.f32 %v3059, %v3219
    %v3294 = vadd.f32 %v3060, %v3224
    %v3295 = vadd.f32 %v3061, %v3229
    %v3296 = vadd.f32 %v3062, %v3234
    %v3297 = vadd.f32 %v3063, %v3239
    %v3298 = vadd.f32 %v3064, %v3244
    %v3299 = vadd.f32 %v3065, %v3249
    %v3300 = vadd.f32 %v3066, %v3254
    %v3301 = vadd.f32 %v3067, %v3259
    %v3302 = vadd.f32 %v3068, %v3264
    %v3303 = vadd.f32 %v3069, %v3269
    %v3304 = vadd.f32 %v3070, %v3274
    %v3305 = vadd.f32 %v3071, %v3279
    %v3306 = vadd.f32 %v3072, %v3284
    %v3307 = vadd.f32 %v3073, %v3289
    %v3308 = vld [vmem:[%s126 + $0x1] sm:$0xff]
    %v3309 = vld [vmem:[%s126 + $0x11] sm:$0xff]
    %v3310 = vld [vmem:[%s126 + $0x21] sm:$0xff]
    %v3311 = vld [vmem:[%s126 + $0x31] sm:$0xff]
    %v3312 = vld [vmem:[%s126 + $0x41] sm:$0xff]
    %v3313 = vld [vmem:[%s126 + $0x51] sm:$0xff]
    %v3314 = vld [vmem:[%s126 + $0x61] sm:$0xff]
    %v3315 = vld [vmem:[%s126 + $0x71] sm:$0xff]
    %v3316 = vld [vmem:[%s126 + $0xa1] sm:$0xff]
    %v3317 = vld [vmem:[%s126 + $0xb1] sm:$0xff]
    %v3318 = vld [vmem:[%s126 + $0xc1] sm:$0xff]
    %v3319 = vld [vmem:[%s126 + $0xd1] sm:$0xff]
    %v3320 = vld [vmem:[%s126 + $0xe1] sm:$0xff]
    %v3321 = vld [vmem:[%s126 + $0xf1] sm:$0xff]
    %v3322 = vld [vmem:[%s126 + $0x101] sm:$0xff]
    %v3323 = vld [vmem:[%s126 + $0x111] sm:$0xff]
    %s3324 = scalar_lea.vmem [#allocation8], 256
    %v3325 = vld [vmem:[%s3324] sm:$0xff]
    %v3326 = vld [vmem:[%s3324 + $0x8] sm:$0xff]
    %v3327 = vld [vmem:[%s3324 + $0x10] sm:$0xff]
    %v3328 = vld [vmem:[%s3324 + $0x18] sm:$0xff]
    %v3329 = vld [vmem:[%s3324 + $0x20] sm:$0xff]
    %v3330 = vld [vmem:[%s3324 + $0x28] sm:$0xff]
    %v3331 = vld [vmem:[%s3324 + $0x30] sm:$0xff]
    %v3332 = vld [vmem:[%s3324 + $0x38] sm:$0xff]
    %v3334 = vsel %vm68, %v3308, 0
    %v3337 = vsel %vm68, %v3309, 0
    %v3340 = vsel %vm68, %v3310, 0
    %v3343 = vsel %vm68, %v3311, 0
    %v3346 = vsel %vm68, %v3312, 0
    %v3349 = vsel %vm68, %v3313, 0
    %v3352 = vsel %vm68, %v3314, 0
    %v3355 = vsel %vm68, %v3315, 0
    %v3358 = vsel %vm68, %v3316, 0
    %v3361 = vsel %vm68, %v3317, 0
    %v3364 = vsel %vm68, %v3318, 0
    %v3367 = vsel %vm68, %v3319, 0
    %v3370 = vsel %vm68, %v3320, 0
    %v3373 = vsel %vm68, %v3321, 0
    %v3376 = vsel %vm68, %v3322, 0
    %v3379 = vsel %vm68, %v3323, 0
    %3381 = vmatprep.subr.mxu0 0.0
    %3382 = vmatpush1.msra.mxu0 %v3325
    %3383 = vmatprep.subr.mxu0 0.0
    %3384 = vmatpush1.msra.mxu0 %v3326
    %3385 = vmatprep.subr.mxu0 0.0
    %3386 = vmatpush1.msra.mxu0 %v3327
    %3387 = vmatprep.subr.mxu0 0.0
    %3388 = vmatpush1.msra.mxu0 %v3328
    %3389 = vmatprep.subr.mxu0 0.0
    %3390 = vmatpush1.msra.mxu0 %v3329
    %3391 = vmatprep.subr.mxu0 0.0
    %3392 = vmatpush1.msra.mxu0 %v3330
    %3393 = vmatprep.subr.mxu0 0.0
    %3394 = vmatpush1.msra.mxu0 %v3331
    %3395 = vmatprep.subr.mxu0 0.0
    %3396 = vmatpush1.msra.mxu0 %v3332
    %3397 = vmatprep.subr.mxu0 0.0
    %3398 = vmatpush1.msra.mxu0 0.0
    %3399 = vmatprep.subr.mxu0 0.0
    %3400 = vmatpush1.msra.mxu0 0.0
    %3401 = vmatprep.subr.mxu0 0.0
    %3402 = vmatpush1.msra.mxu0 0.0
    %3403 = vmatprep.subr.mxu0 0.0
    %3404 = vmatpush1.msra.mxu0 0.0
    %3405 = vmatprep.subr.mxu0 0.0
    %3406 = vmatpush1.msra.mxu0 0.0
    %3407 = vmatprep.subr.mxu0 0.0
    %3408 = vmatpush1.msra.mxu0 0.0
    %3409 = vmatprep.subr.mxu0 0.0
    %3410 = vmatpush1.msra.mxu0 0.0
    %3411 = vmatprep.subr.mxu0 0.0
    %3412 = vmatpush1.msra.mxu0 0.0
    %3413 = vmatprep.subr.mxu0 0.0
    %3414 = vmatpush1.msra.mxu0 0.0
    %3415 = vmatprep.subr.mxu0 0.0
    %3416 = vmatpush1.msra.mxu0 0.0
    %3417 = vmatprep.subr.mxu0 0.0
    %3418 = vmatpush1.msra.mxu0 0.0
    %3419 = vmatprep.subr.mxu0 0.0
    %3420 = vmatpush1.msra.mxu0 0.0
    %3421 = vmatprep.subr.mxu0 0.0
    %3422 = vmatpush1.msra.mxu0 0.0
    %3423 = vmatprep.subr.mxu0 0.0
    %3424 = vmatpush1.msra.mxu0 0.0
    %3425 = vmatprep.subr.mxu0 0.0
    %3426 = vmatpush1.msra.mxu0 0.0
    %3427 = vmatprep.subr.mxu0 0.0
    %3428 = vmatpush1.msra.mxu0 0.0
    %3429 = vmatprep.subr.mxu0 0.0
    %3430 = vmatpush1.msra.mxu0 0.0
    %3431 = vmatprep.subr.mxu0 0.0
    %3432 = vmatpush1.msra.mxu0 0.0
    %3433 = vmatprep.subr.mxu0 0.0
    %3434 = vmatpush1.msra.mxu0 0.0
    %3435 = vmatprep.subr.mxu0 0.0
    %3436 = vmatpush1.msra.mxu0 0.0
    %3437 = vmatprep.subr.mxu0 0.0
    %3438 = vmatpush1.msra.mxu0 0.0
    %3439 = vmatprep.subr.mxu0 0.0
    %3440 = vmatpush1.msra.mxu0 0.0
    %3441 = vmatprep.subr.mxu0 0.0
    %3442 = vmatpush1.msra.mxu0 0.0
    %3443 = vmatprep.subr.mxu0 0.0
    %3444 = vmatpush1.msra.mxu0 0.0
    %3445 = vmatprep.mubr.f32.mxu0 0.0
    %3446 = vmatmul.mubr.f32.gmra.mrb[0].mxu0 %v3334
    %v3447 = vpop.f32.mrb[0].mxu0
    %v3448 = vadd.f32 0.0, %v3447
    %v3449 = vpop.f32.mrb[0].mxu0
    %3450 = vmatprep.mubr.f32.mxu0 0.0
    %3451 = vmatmul.mubr.f32.gmra.mrb[0].mxu0 %v3337
    %v3452 = vpop.f32.mrb[0].mxu0
    %v3453 = vadd.f32 0.0, %v3452
    %v3454 = vpop.f32.mrb[0].mxu0
    %3455 = vmatprep.mubr.f32.mxu0 0.0
    %3456 = vmatmul.mubr.f32.gmra.mrb[0].mxu0 %v3340
    %v3457 = vpop.f32.mrb[0].mxu0
    %v3458 = vadd.f32 0.0, %v3457
    %v3459 = vpop.f32.mrb[0].mxu0
    %3460 = vmatprep.mubr.f32.mxu0 0.0
    %3461 = vmatmul.mubr.f32.gmra.mrb[0].mxu0 %v3343
    %v3462 = vpop.f32.mrb[0].mxu0
    %v3463 = vadd.f32 0.0, %v3462
    %v3464 = vpop.f32.mrb[0].mxu0
    %3465 = vmatprep.mubr.f32.mxu0 0.0
    %3466 = vmatmul.mubr.f32.gmra.mrb[0].mxu0 %v3346
    %v3467 = vpop.f32.mrb[0].mxu0
    %v3468 = vadd.f32 0.0, %v3467
    %v3469 = vpop.f32.mrb[0].mxu0
    %3470 = vmatprep.mubr.f32.mxu0 0.0
    %3471 = vmatmul.mubr.f32.gmra.mrb[0].mxu0 %v3349
    %v3472 = vpop.f32.mrb[0].mxu0
    %v3473 = vadd.f32 0.0, %v3472
    %v3474 = vpop.f32.mrb[0].mxu0
    %3475 = vmatprep.mubr.f32.mxu0 0.0
    %3476 = vmatmul.mubr.f32.gmra.mrb[0].mxu0 %v3352
    %v3477 = vpop.f32.mrb[0].mxu0
    %v3478 = vadd.f32 0.0, %v3477
    %v3479 = vpop.f32.mrb[0].mxu0
    %3480 = vmatprep.mubr.f32.mxu0 0.0
    %3481 = vmatmul.mubr.f32.gmra.mrb[0].mxu0 %v3355
    %v3482 = vpop.f32.mrb[0].mxu0
    %v3483 = vadd.f32 0.0, %v3482
    %v3484 = vpop.f32.mrb[0].mxu0
    %3485 = vmatprep.mubr.f32.mxu0 0.0
    %3486 = vmatmul.mubr.f32.gmra.mrb[0].mxu0 %v3358
    %v3487 = vpop.f32.mrb[0].mxu0
    %v3488 = vadd.f32 0.0, %v3487
    %v3489 = vpop.f32.mrb[0].mxu0
    %3490 = vmatprep.mubr.f32.mxu0 0.0
    %3491 = vmatmul.mubr.f32.gmra.mrb[0].mxu0 %v3361
    %v3492 = vpop.f32.mrb[0].mxu0
    %v3493 = vadd.f32 0.0, %v3492
    %v3494 = vpop.f32.mrb[0].mxu0
    %3495 = vmatprep.mubr.f32.mxu0 0.0
    %3496 = vmatmul.mubr.f32.gmra.mrb[0].mxu0 %v3364
    %v3497 = vpop.f32.mrb[0].mxu0
    %v3498 = vadd.f32 0.0, %v3497
    %v3499 = vpop.f32.mrb[0].mxu0
    %3500 = vmatprep.mubr.f32.mxu0 0.0
    %3501 = vmatmul.mubr.f32.gmra.mrb[0].mxu0 %v3367
    %v3502 = vpop.f32.mrb[0].mxu0
    %v3503 = vadd.f32 0.0, %v3502
    %v3504 = vpop.f32.mrb[0].mxu0
    %3505 = vmatprep.mubr.f32.mxu0 0.0
    %3506 = vmatmul.mubr.f32.gmra.mrb[0].mxu0 %v3370
    %v3507 = vpop.f32.mrb[0].mxu0
    %v3508 = vadd.f32 0.0, %v3507
    %v3509 = vpop.f32.mrb[0].mxu0
    %3510 = vmatprep.mubr.f32.mxu0 0.0
    %3511 = vmatmul.mubr.f32.gmra.mrb[0].mxu0 %v3373
    %v3512 = vpop.f32.mrb[0].mxu0
    %v3513 = vadd.f32 0.0, %v3512
    %v3514 = vpop.f32.mrb[0].mxu0
    %3515 = vmatprep.mubr.f32.mxu0 0.0
    %3516 = vmatmul.mubr.f32.gmra.mrb[0].mxu0 %v3376
    %v3517 = vpop.f32.mrb[0].mxu0
    %v3518 = vadd.f32 0.0, %v3517
    %v3519 = vpop.f32.mrb[0].mxu0
    %3520 = vmatprep.mubr.f32.mxu0 0.0
    %3521 = vmatmul.mubr.f32.gmra.mrb[0].mxu0 %v3379
    %v3522 = vpop.f32.mrb[0].mxu0
    %v3523 = vadd.f32 0.0, %v3522
    %v3524 = vpop.f32.mrb[0].mxu0
    %3525 = vdwg.mxu0
    %v3526 = vadd.f32 %v3292, %v3448
    %v3527 = vadd.f32 %v3293, %v3453
    %v3528 = vadd.f32 %v3294, %v3458
    %v3529 = vadd.f32 %v3295, %v3463
    %v3530 = vadd.f32 %v3296, %v3468
    %v3531 = vadd.f32 %v3297, %v3473
    %v3532 = vadd.f32 %v3298, %v3478
    %v3533 = vadd.f32 %v3299, %v3483
    %v3534 = vadd.f32 %v3300, %v3488
    %v3535 = vadd.f32 %v3301, %v3493
    %v3536 = vadd.f32 %v3302, %v3498
    %v3537 = vadd.f32 %v3303, %v3503
    %v3538 = vadd.f32 %v3304, %v3508
    %v3539 = vadd.f32 %v3305, %v3513
    %v3540 = vadd.f32 %v3306, %v3518
    %v3541 = vadd.f32 %v3307, %v3523
    %v3542 = vld [vmem:[%s126 + $0x2] sm:$0xff]
    %v3543 = vld [vmem:[%s126 + $0x12] sm:$0xff]
    %v3544 = vld [vmem:[%s126 + $0x22] sm:$0xff]
    %v3545 = vld [vmem:[%s126 + $0x32] sm:$0xff]
    %v3546 = vld [vmem:[%s126 + $0x42] sm:$0xff]
    %v3547 = vld [vmem:[%s126 + $0x52] sm:$0xff]
    %v3548 = vld [vmem:[%s126 + $0x62] sm:$0xff]
    %v3549 = vld [vmem:[%s126 + $0x72] sm:$0xff]
    %v3550 = vld [vmem:[%s126 + $0xa2] sm:$0xff]
    %v3551 = vld [vmem:[%s126 + $0xb2] sm:$0xff]
    %v3552 = vld [vmem:[%s126 + $0xc2] sm:$0xff]
    %v3553 = vld [vmem:[%s126 + $0xd2] sm:$0xff]
    %v3554 = vld [vmem:[%s126 + $0xe2] sm:$0xff]
    %v3555 = vld [vmem:[%s126 + $0xf2] sm:$0xff]
    %v3556 = vld [vmem:[%s126 + $0x102] sm:$0xff]
    %v3557 = vld [vmem:[%s126 + $0x112] sm:$0xff]
    %s3558 = scalar_lea.vmem [#allocation8], 320
    %v3559 = vld [vmem:[%s3558] sm:$0xff]
    %v3560 = vld [vmem:[%s3558 + $0x8] sm:$0xff]
    %v3561 = vld [vmem:[%s3558 + $0x10] sm:$0xff]
    %v3562 = vld [vmem:[%s3558 + $0x18] sm:$0xff]
    %v3563 = vld [vmem:[%s3558 + $0x20] sm:$0xff]
    %v3564 = vld [vmem:[%s3558 + $0x28] sm:$0xff]
    %v3565 = vld [vmem:[%s3558 + $0x30] sm:$0xff]
    %v3566 = vld [vmem:[%s3558 + $0x38] sm:$0xff]
    %v3568 = vsel %vm68, %v3542, 0
    %v3571 = vsel %vm68, %v3543, 0
    %v3574 = vsel %vm68, %v3544, 0
    %v3577 = vsel %vm68, %v3545, 0
    %v3580 = vsel %vm68, %v3546, 0
    %v3583 = vsel %vm68, %v3547, 0
    %v3586 = vsel %vm68, %v3548, 0
    %v3589 = vsel %vm68, %v3549, 0
    %v3592 = vsel %vm68, %v3550, 0
    %v3595 = vsel %vm68, %v3551, 0
    %v3598 = vsel %vm68, %v3552, 0
    %v3601 = vsel %vm68, %v3553, 0
    %v3604 = vsel %vm68, %v3554, 0
    %v3607 = vsel %vm68, %v3555, 0
    %v3610 = vsel %vm68, %v3556, 0
    %v3613 = vsel %vm68, %v3557, 0
    %3615 = vmatprep.subr.mxu0 0.0
    %3616 = vmatpush1.msra.mxu0 %v3559
    %3617 = vmatprep.subr.mxu0 0.0
    %3618 = vmatpush1.msra.mxu0 %v3560
    %3619 = vmatprep.subr.mxu0 0.0
    %3620 = vmatpush1.msra.mxu0 %v3561
    %3621 = vmatprep.subr.mxu0 0.0
    %3622 = vmatpush1.msra.mxu0 %v3562
    %3623 = vmatprep.subr.mxu0 0.0
    %3624 = vmatpush1.msra.mxu0 %v3563
    %3625 = vmatprep.subr.mxu0 0.0
    %3626 = vmatpush1.msra.mxu0 %v3564
    %3627 = vmatprep.subr.mxu0 0.0
    %3628 = vmatpush1.msra.mxu0 %v3565
    %3629 = vmatprep.subr.mxu0 0.0
    %3630 = vmatpush1.msra.mxu0 %v3566
    %3631 = vmatprep.subr.mxu0 0.0
    %3632 = vmatpush1.msra.mxu0 0.0
    %3633 = vmatprep.subr.mxu0 0.0
    %3634 = vmatpush1.msra.mxu0 0.0
    %3635 = vmatprep.subr.mxu0 0.0
    %3636 = vmatpush1.msra.mxu0 0.0
    %3637 = vmatprep.subr.mxu0 0.0
    %3638 = vmatpush1.msra.mxu0 0.0
    %3639 = vmatprep.subr.mxu0 0.0
    %3640 = vmatpush1.msra.mxu0 0.0
    %3641 = vmatprep.subr.mxu0 0.0
    %3642 = vmatpush1.msra.mxu0 0.0
    %3643 = vmatprep.subr.mxu0 0.0
    %3644 = vmatpush1.msra.mxu0 0.0
    %3645 = vmatprep.subr.mxu0 0.0
    %3646 = vmatpush1.msra.mxu0 0.0
    %3647 = vmatprep.subr.mxu0 0.0
    %3648 = vmatpush1.msra.mxu0 0.0
    %3649 = vmatprep.subr.mxu0 0.0
    %3650 = vmatpush1.msra.mxu0 0.0
    %3651 = vmatprep.subr.mxu0 0.0
    %3652 = vmatpush1.msra.mxu0 0.0
    %3653 = vmatprep.subr.mxu0 0.0
    %3654 = vmatpush1.msra.mxu0 0.0
    %3655 = vmatprep.subr.mxu0 0.0
    %3656 = vmatpush1.msra.mxu0 0.0
    %3657 = vmatprep.subr.mxu0 0.0
    %3658 = vmatpush1.msra.mxu0 0.0
    %3659 = vmatprep.subr.mxu0 0.0
    %3660 = vmatpush1.msra.mxu0 0.0
    %3661 = vmatprep.subr.mxu0 0.0
    %3662 = vmatpush1.msra.mxu0 0.0
    %3663 = vmatprep.subr.mxu0 0.0
    %3664 = vmatpush1.msra.mxu0 0.0
    %3665 = vmatprep.subr.mxu0 0.0
    %3666 = vmatpush1.msra.mxu0 0.0
    %3667 = vmatprep.subr.mxu0 0.0
    %3668 = vmatpush1.msra.mxu0 0.0
    %3669 = vmatprep.subr.mxu0 0.0
    %3670 = vmatpush1.msra.mxu0 0.0
    %3671 = vmatprep.subr.mxu0 0.0
    %3672 = vmatpush1.msra.mxu0 0.0
    %3673 = vmatprep.subr.mxu0 0.0
    %3674 = vmatpush1.msra.mxu0 0.0
    %3675 = vmatprep.subr.mxu0 0.0
    %3676 = vmatpush1.msra.mxu0 0.0
    %3677 = vmatprep.subr.mxu0 0.0
    %3678 = vmatpush1.msra.mxu0 0.0
    %3679 = vmatprep.mubr.f32.mxu0 0.0
    %3680 = vmatmul.mubr.f32.gmra.mrb[0].mxu0 %v3568
    %v3681 = vpop.f32.mrb[0].mxu0
    %v3682 = vadd.f32 0.0, %v3681
    %v3683 = vpop.f32.mrb[0].mxu0
    %3684 = vmatprep.mubr.f32.mxu0 0.0
    %3685 = vmatmul.mubr.f32.gmra.mrb[0].mxu0 %v3571
    %v3686 = vpop.f32.mrb[0].mxu0
    %v3687 = vadd.f32 0.0, %v3686
    %v3688 = vpop.f32.mrb[0].mxu0
    %3689 = vmatprep.mubr.f32.mxu0 0.0
    %3690 = vmatmul.mubr.f32.gmra.mrb[0].mxu0 %v3574
    %v3691 = vpop.f32.mrb[0].mxu0
    %v3692 = vadd.f32 0.0, %v3691
    %v3693 = vpop.f32.mrb[0].mxu0
    %3694 = vmatprep.mubr.f32.mxu0 0.0
    %3695 = vmatmul.mubr.f32.gmra.mrb[0].mxu0 %v3577
    %v3696 = vpop.f32.mrb[0].mxu0
    %v3697 = vadd.f32 0.0, %v3696
    %v3698 = vpop.f32.mrb[0].mxu0
    %3699 = vmatprep.mubr.f32.mxu0 0.0
    %3700 = vmatmul.mubr.f32.gmra.mrb[0].mxu0 %v3580
    %v3701 = vpop.f32.mrb[0].mxu0
    %v3702 = vadd.f32 0.0, %v3701
    %v3703 = vpop.f32.mrb[0].mxu0
    %3704 = vmatprep.mubr.f32.mxu0 0.0
    %3705 = vmatmul.mubr.f32.gmra.mrb[0].mxu0 %v3583
    %v3706 = vpop.f32.mrb[0].mxu0
    %v3707 = vadd.f32 0.0, %v3706
    %v3708 = vpop.f32.mrb[0].mxu0
    %3709 = vmatprep.mubr.f32.mxu0 0.0
    %3710 = vmatmul.mubr.f32.gmra.mrb[0].mxu0 %v3586
    %v3711 = vpop.f32.mrb[0].mxu0
    %v3712 = vadd.f32 0.0, %v3711
    %v3713 = vpop.f32.mrb[0].mxu0
    %3714 = vmatprep.mubr.f32.mxu0 0.0
    %3715 = vmatmul.mubr.f32.gmra.mrb[0].mxu0 %v3589
    %v3716 = vpop.f32.mrb[0].mxu0
    %v3717 = vadd.f32 0.0, %v3716
    %v3718 = vpop.f32.mrb[0].mxu0
    %3719 = vmatprep.mubr.f32.mxu0 0.0
    %3720 = vmatmul.mubr.f32.gmra.mrb[0].mxu0 %v3592
    %v3721 = vpop.f32.mrb[0].mxu0
    %v3722 = vadd.f32 0.0, %v3721
    %v3723 = vpop.f32.mrb[0].mxu0
    %3724 = vmatprep.mubr.f32.mxu0 0.0
    %3725 = vmatmul.mubr.f32.gmra.mrb[0].mxu0 %v3595
    %v3726 = vpop.f32.mrb[0].mxu0
    %v3727 = vadd.f32 0.0, %v3726
    %v3728 = vpop.f32.mrb[0].mxu0
    %3729 = vmatprep.mubr.f32.mxu0 0.0
    %3730 = vmatmul.mubr.f32.gmra.mrb[0].mxu0 %v3598
    %v3731 = vpop.f32.mrb[0].mxu0
    %v3732 = vadd.f32 0.0, %v3731
    %v3733 = vpop.f32.mrb[0].mxu0
    %3734 = vmatprep.mubr.f32.mxu0 0.0
    %3735 = vmatmul.mubr.f32.gmra.mrb[0].mxu0 %v3601
    %v3736 = vpop.f32.mrb[0].mxu0
    %v3737 = vadd.f32 0.0, %v3736
    %v3738 = vpop.f32.mrb[0].mxu0
    %3739 = vmatprep.mubr.f32.mxu0 0.0
    %3740 = vmatmul.mubr.f32.gmra.mrb[0].mxu0 %v3604
    %v3741 = vpop.f32.mrb[0].mxu0
    %v3742 = vadd.f32 0.0, %v3741
    %v3743 = vpop.f32.mrb[0].mxu0
    %3744 = vmatprep.mubr.f32.mxu0 0.0
    %3745 = vmatmul.mubr.f32.gmra.mrb[0].mxu0 %v3607
    %v3746 = vpop.f32.mrb[0].mxu0
    %v3747 = vadd.f32 0.0, %v3746
    %v3748 = vpop.f32.mrb[0].mxu0
    %3749 = vmatprep.mubr.f32.mxu0 0.0
    %3750 = vmatmul.mubr.f32.gmra.mrb[0].mxu0 %v3610
    %v3751 = vpop.f32.mrb[0].mxu0
    %v3752 = vadd.f32 0.0, %v3751
    %v3753 = vpop.f32.mrb[0].mxu0
    %3754 = vmatprep.mubr.f32.mxu0 0.0
    %3755 = vmatmul.mubr.f32.gmra.mrb[0].mxu0 %v3613
    %v3756 = vpop.f32.mrb[0].mxu0
    %v3757 = vadd.f32 0.0, %v3756
    %v3758 = vpop.f32.mrb[0].mxu0
    %3759 = vdwg.mxu0
    %v3760 = vadd.f32 %v3526, %v3682
    %v3761 = vadd.f32 %v3527, %v3687
    %v3762 = vadd.f32 %v3528, %v3692
    %v3763 = vadd.f32 %v3529, %v3697
    %v3764 = vadd.f32 %v3530, %v3702
    %v3765 = vadd.f32 %v3531, %v3707
    %v3766 = vadd.f32 %v3532, %v3712
    %v3767 = vadd.f32 %v3533, %v3717
    %v3768 = vadd.f32 %v3534, %v3722
    %v3769 = vadd.f32 %v3535, %v3727
    %v3770 = vadd.f32 %v3536, %v3732
    %v3771 = vadd.f32 %v3537, %v3737
    %v3772 = vadd.f32 %v3538, %v3742
    %v3773 = vadd.f32 %v3539, %v3747
    %v3774 = vadd.f32 %v3540, %v3752
    %v3775 = vadd.f32 %v3541, %v3757
    %v3776 = vld [vmem:[%s1514] sm:$0xff]
    %v3777 = vld [vmem:[%s1514 + $0x10] sm:$0xff]
    %v3778 = vld [vmem:[%s1514 + $0x20] sm:$0xff]
    %v3779 = vld [vmem:[%s1514 + $0x30] sm:$0xff]
    %v3780 = vld [vmem:[%s1514 + $0x40] sm:$0xff]
    %v3781 = vld [vmem:[%s1514 + $0x50] sm:$0xff]
    %v3782 = vld [vmem:[%s1514 + $0x60] sm:$0xff]
    %v3783 = vld [vmem:[%s1514 + $0x70] sm:$0xff]
    %v3784 = vld [vmem:[%s1514 + $0xa0] sm:$0xff]
    %v3785 = vld [vmem:[%s1514 + $0xb0] sm:$0xff]
    %v3786 = vld [vmem:[%s1514 + $0xc0] sm:$0xff]
    %v3787 = vld [vmem:[%s1514 + $0xd0] sm:$0xff]
    %v3788 = vld [vmem:[%s1514 + $0xe0] sm:$0xff]
    %v3789 = vld [vmem:[%s1514 + $0xf0] sm:$0xff]
    %v3790 = vld [vmem:[%s1514 + $0x100] sm:$0xff]
    %v3791 = vld [vmem:[%s1514 + $0x110] sm:$0xff]
    %s3792 = scalar_lea.vmem [#allocation8], 384
    %v3793 = vld [vmem:[%s3792] sm:$0xff]
    %v3794 = vld [vmem:[%s3792 + $0x8] sm:$0xff]
    %v3795 = vld [vmem:[%s3792 + $0x10] sm:$0xff]
    %v3796 = vld [vmem:[%s3792 + $0x18] sm:$0xff]
    %v3797 = vld [vmem:[%s3792 + $0x20] sm:$0xff]
    %v3798 = vld [vmem:[%s3792 + $0x28] sm:$0xff]
    %v3799 = vld [vmem:[%s3792 + $0x30] sm:$0xff]
    %v3800 = vld [vmem:[%s3792 + $0x38] sm:$0xff]
    %v3802 = vsel %vm68, %v3776, 0
    %v3805 = vsel %vm68, %v3777, 0
    %v3808 = vsel %vm68, %v3778, 0
    %v3811 = vsel %vm68, %v3779, 0
    %v3814 = vsel %vm68, %v3780, 0
    %v3817 = vsel %vm68, %v3781, 0
    %v3820 = vsel %vm68, %v3782, 0
    %v3823 = vsel %vm68, %v3783, 0
    %v3826 = vsel %vm68, %v3784, 0
    %v3829 = vsel %vm68, %v3785, 0
    %v3832 = vsel %vm68, %v3786, 0
    %v3835 = vsel %vm68, %v3787, 0
    %v3838 = vsel %vm68, %v3788, 0
    %v3841 = vsel %vm68, %v3789, 0
    %v3844 = vsel %vm68, %v3790, 0
    %v3847 = vsel %vm68, %v3791, 0
    %3849 = vmatprep.subr.mxu0 0.0
    %3850 = vmatpush1.msra.mxu0 %v3793
    %3851 = vmatprep.subr.mxu0 0.0
    %3852 = vmatpush1.msra.mxu0 %v3794
    %3853 = vmatprep.subr.mxu0 0.0
    %3854 = vmatpush1.msra.mxu0 %v3795
    %3855 = vmatprep.subr.mxu0 0.0
    %3856 = vmatpush1.msra.mxu0 %v3796
    %3857 = vmatprep.subr.mxu0 0.0
    %3858 = vmatpush1.msra.mxu0 %v3797
    %3859 = vmatprep.subr.mxu0 0.0
    %3860 = vmatpush1.msra.mxu0 %v3798
    %3861 = vmatprep.subr.mxu0 0.0
    %3862 = vmatpush1.msra.mxu0 %v3799
    %3863 = vmatprep.subr.mxu0 0.0
    %3864 = vmatpush1.msra.mxu0 %v3800
    %3865 = vmatprep.subr.mxu0 0.0
    %3866 = vmatpush1.msra.mxu0 0.0
    %3867 = vmatprep.subr.mxu0 0.0
    %3868 = vmatpush1.msra.mxu0 0.0
    %3869 = vmatprep.subr.mxu0 0.0
    %3870 = vmatpush1.msra.mxu0 0.0
    %3871 = vmatprep.subr.mxu0 0.0
    %3872 = vmatpush1.msra.mxu0 0.0
    %3873 = vmatprep.subr.mxu0 0.0
    %3874 = vmatpush1.msra.mxu0 0.0
    %3875 = vmatprep.subr.mxu0 0.0
    %3876 = vmatpush1.msra.mxu0 0.0
    %3877 = vmatprep.subr.mxu0 0.0
    %3878 = vmatpush1.msra.mxu0 0.0
    %3879 = vmatprep.subr.mxu0 0.0
    %3880 = vmatpush1.msra.mxu0 0.0
    %3881 = vmatprep.subr.mxu0 0.0
    %3882 = vmatpush1.msra.mxu0 0.0
    %3883 = vmatprep.subr.mxu0 0.0
    %3884 = vmatpush1.msra.mxu0 0.0
    %3885 = vmatprep.subr.mxu0 0.0
    %3886 = vmatpush1.msra.mxu0 0.0
    %3887 = vmatprep.subr.mxu0 0.0
    %3888 = vmatpush1.msra.mxu0 0.0
    %3889 = vmatprep.subr.mxu0 0.0
    %3890 = vmatpush1.msra.mxu0 0.0
    %3891 = vmatprep.subr.mxu0 0.0
    %3892 = vmatpush1.msra.mxu0 0.0
    %3893 = vmatprep.subr.mxu0 0.0
    %3894 = vmatpush1.msra.mxu0 0.0
    %3895 = vmatprep.subr.mxu0 0.0
    %3896 = vmatpush1.msra.mxu0 0.0
    %3897 = vmatprep.subr.mxu0 0.0
    %3898 = vmatpush1.msra.mxu0 0.0
    %3899 = vmatprep.subr.mxu0 0.0
    %3900 = vmatpush1.msra.mxu0 0.0
    %3901 = vmatprep.subr.mxu0 0.0
    %3902 = vmatpush1.msra.mxu0 0.0
    %3903 = vmatprep.subr.mxu0 0.0
    %3904 = vmatpush1.msra.mxu0 0.0
    %3905 = vmatprep.subr.mxu0 0.0
    %3906 = vmatpush1.msra.mxu0 0.0
    %3907 = vmatprep.subr.mxu0 0.0
    %3908 = vmatpush1.msra.mxu0 0.0
    %3909 = vmatprep.subr.mxu0 0.0
    %3910 = vmatpush1.msra.mxu0 0.0
    %3911 = vmatprep.subr.mxu0 0.0
    %3912 = vmatpush1.msra.mxu0 0.0
    %3913 = vmatprep.mubr.f32.mxu0 0.0
    %3914 = vmatmul.mubr.f32.gmra.mrb[0].mxu0 %v3802
    %v3915 = vpop.f32.mrb[0].mxu0
    %v3916 = vadd.f32 0.0, %v3915
    %v3917 = vpop.f32.mrb[0].mxu0
    %3918 = vmatprep.mubr.f32.mxu0 0.0
    %3919 = vmatmul.mubr.f32.gmra.mrb[0].mxu0 %v3805
    %v3920 = vpop.f32.mrb[0].mxu0
    %v3921 = vadd.f32 0.0, %v3920
    %v3922 = vpop.f32.mrb[0].mxu0
    %3923 = vmatprep.mubr.f32.mxu0 0.0
    %3924 = vmatmul.mubr.f32.gmra.mrb[0].mxu0 %v3808
    %v3925 = vpop.f32.mrb[0].mxu0
    %v3926 = vadd.f32 0.0, %v3925
    %v3927 = vpop.f32.mrb[0].mxu0
    %3928 = vmatprep.mubr.f32.mxu0 0.0
    %3929 = vmatmul.mubr.f32.gmra.mrb[0].mxu0 %v3811
    %v3930 = vpop.f32.mrb[0].mxu0
    %v3931 = vadd.f32 0.0, %v3930
    %v3932 = vpop.f32.mrb[0].mxu0
    %3933 = vmatprep.mubr.f32.mxu0 0.0
    %3934 = vmatmul.mubr.f32.gmra.mrb[0].mxu0 %v3814
    %v3935 = vpop.f32.mrb[0].mxu0
    %v3936 = vadd.f32 0.0, %v3935
    %v3937 = vpop.f32.mrb[0].mxu0
    %3938 = vmatprep.mubr.f32.mxu0 0.0
    %3939 = vmatmul.mubr.f32.gmra.mrb[0].mxu0 %v3817
    %v3940 = vpop.f32.mrb[0].mxu0
    %v3941 = vadd.f32 0.0, %v3940
    %v3942 = vpop.f32.mrb[0].mxu0
    %3943 = vmatprep.mubr.f32.mxu0 0.0
    %3944 = vmatmul.mubr.f32.gmra.mrb[0].mxu0 %v3820
    %v3945 = vpop.f32.mrb[0].mxu0
    %v3946 = vadd.f32 0.0, %v3945
    %v3947 = vpop.f32.mrb[0].mxu0
    %3948 = vmatprep.mubr.f32.mxu0 0.0
    %3949 = vmatmul.mubr.f32.gmra.mrb[0].mxu0 %v3823
    %v3950 = vpop.f32.mrb[0].mxu0
    %v3951 = vadd.f32 0.0, %v3950
    %v3952 = vpop.f32.mrb[0].mxu0
    %3953 = vmatprep.mubr.f32.mxu0 0.0
    %3954 = vmatmul.mubr.f32.gmra.mrb[0].mxu0 %v3826
    %v3955 = vpop.f32.mrb[0].mxu0
    %v3956 = vadd.f32 0.0, %v3955
    %v3957 = vpop.f32.mrb[0].mxu0
    %3958 = vmatprep.mubr.f32.mxu0 0.0
    %3959 = vmatmul.mubr.f32.gmra.mrb[0].mxu0 %v3829
    %v3960 = vpop.f32.mrb[0].mxu0
    %v3961 = vadd.f32 0.0, %v3960
    %v3962 = vpop.f32.mrb[0].mxu0
    %3963 = vmatprep.mubr.f32.mxu0 0.0
    %3964 = vmatmul.mubr.f32.gmra.mrb[0].mxu0 %v3832
    %v3965 = vpop.f32.mrb[0].mxu0
    %v3966 = vadd.f32 0.0, %v3965
    %v3967 = vpop.f32.mrb[0].mxu0
    %3968 = vmatprep.mubr.f32.mxu0 0.0
    %3969 = vmatmul.mubr.f32.gmra.mrb[0].mxu0 %v3835
    %v3970 = vpop.f32.mrb[0].mxu0
    %v3971 = vadd.f32 0.0, %v3970
    %v3972 = vpop.f32.mrb[0].mxu0
    %3973 = vmatprep.mubr.f32.mxu0 0.0
    %3974 = vmatmul.mubr.f32.gmra.mrb[0].mxu0 %v3838
    %v3975 = vpop.f32.mrb[0].mxu0
    %v3976 = vadd.f32 0.0, %v3975
    %v3977 = vpop.f32.mrb[0].mxu0
    %3978 = vmatprep.mubr.f32.mxu0 0.0
    %3979 = vmatmul.mubr.f32.gmra.mrb[0].mxu0 %v3841
    %v3980 = vpop.f32.mrb[0].mxu0
    %v3981 = vadd.f32 0.0, %v3980
    %v3982 = vpop.f32.mrb[0].mxu0
    %3983 = vmatprep.mubr.f32.mxu0 0.0
    %3984 = vmatmul.mubr.f32.gmra.mrb[0].mxu0 %v3844
    %v3985 = vpop.f32.mrb[0].mxu0
    %v3986 = vadd.f32 0.0, %v3985
    %v3987 = vpop.f32.mrb[0].mxu0
    %3988 = vmatprep.mubr.f32.mxu0 0.0
    %3989 = vmatmul.mubr.f32.gmra.mrb[0].mxu0 %v3847
    %v3990 = vpop.f32.mrb[0].mxu0
    %v3991 = vadd.f32 0.0, %v3990
    %v3992 = vpop.f32.mrb[0].mxu0
    %3993 = vdwg.mxu0
    %v3994 = vadd.f32 %v3760, %v3916
    %v3995 = vadd.f32 %v3761, %v3921
    %v3996 = vadd.f32 %v3762, %v3926
    %v3997 = vadd.f32 %v3763, %v3931
    %v3998 = vadd.f32 %v3764, %v3936
    %v3999 = vadd.f32 %v3765, %v3941
    %v4000 = vadd.f32 %v3766, %v3946
    %v4001 = vadd.f32 %v3767, %v3951
    %v4002 = vadd.f32 %v3768, %v3956
    %v4003 = vadd.f32 %v3769, %v3961
    %v4004 = vadd.f32 %v3770, %v3966
    %v4005 = vadd.f32 %v3771, %v3971
    %v4006 = vadd.f32 %v3772, %v3976
    %v4007 = vadd.f32 %v3773, %v3981
    %v4008 = vadd.f32 %v3774, %v3986
    %v4009 = vadd.f32 %v3775, %v3991
    %v4010 = vld [vmem:[%s1514 + $0x1] sm:$0xff]
    %v4011 = vld [vmem:[%s1514 + $0x11] sm:$0xff]
    %v4012 = vld [vmem:[%s1514 + $0x21] sm:$0xff]
    %v4013 = vld [vmem:[%s1514 + $0x31] sm:$0xff]
    %v4014 = vld [vmem:[%s1514 + $0x41] sm:$0xff]
    %v4015 = vld [vmem:[%s1514 + $0x51] sm:$0xff]
    %v4016 = vld [vmem:[%s1514 + $0x61] sm:$0xff]
    %v4017 = vld [vmem:[%s1514 + $0x71] sm:$0xff]
    %v4018 = vld [vmem:[%s1514 + $0xa1] sm:$0xff]
    %v4019 = vld [vmem:[%s1514 + $0xb1] sm:$0xff]
    %v4020 = vld [vmem:[%s1514 + $0xc1] sm:$0xff]
    %v4021 = vld [vmem:[%s1514 + $0xd1] sm:$0xff]
    %v4022 = vld [vmem:[%s1514 + $0xe1] sm:$0xff]
    %v4023 = vld [vmem:[%s1514 + $0xf1] sm:$0xff]
    %v4024 = vld [vmem:[%s1514 + $0x101] sm:$0xff]
    %v4025 = vld [vmem:[%s1514 + $0x111] sm:$0xff]
    %s4026 = scalar_lea.vmem [#allocation8], 448
    %v4027 = vld [vmem:[%s4026] sm:$0xff]
    %v4028 = vld [vmem:[%s4026 + $0x8] sm:$0xff]
    %v4029 = vld [vmem:[%s4026 + $0x10] sm:$0xff]
    %v4030 = vld [vmem:[%s4026 + $0x18] sm:$0xff]
    %v4031 = vld [vmem:[%s4026 + $0x20] sm:$0xff]
    %v4032 = vld [vmem:[%s4026 + $0x28] sm:$0xff]
    %v4033 = vld [vmem:[%s4026 + $0x30] sm:$0xff]
    %v4034 = vld [vmem:[%s4026 + $0x38] sm:$0xff]
    %v4036 = vsel %vm68, %v4010, 0
    %v4039 = vsel %vm68, %v4011, 0
    %v4042 = vsel %vm68, %v4012, 0
    %v4045 = vsel %vm68, %v4013, 0
    %v4048 = vsel %vm68, %v4014, 0
    %v4051 = vsel %vm68, %v4015, 0
    %v4054 = vsel %vm68, %v4016, 0
    %v4057 = vsel %vm68, %v4017, 0
    %v4060 = vsel %vm68, %v4018, 0
    %v4063 = vsel %vm68, %v4019, 0
    %v4066 = vsel %vm68, %v4020, 0
    %v4069 = vsel %vm68, %v4021, 0
    %v4072 = vsel %vm68, %v4022, 0
    %v4075 = vsel %vm68, %v4023, 0
    %v4078 = vsel %vm68, %v4024, 0
    %v4081 = vsel %vm68, %v4025, 0
    %4083 = vmatprep.subr.mxu0 0.0
    %4084 = vmatpush1.msra.mxu0 %v4027
    %4085 = vmatprep.subr.mxu0 0.0
    %4086 = vmatpush1.msra.mxu0 %v4028
    %4087 = vmatprep.subr.mxu0 0.0
    %4088 = vmatpush1.msra.mxu0 %v4029
    %4089 = vmatprep.subr.mxu0 0.0
    %4090 = vmatpush1.msra.mxu0 %v4030
    %4091 = vmatprep.subr.mxu0 0.0
    %4092 = vmatpush1.msra.mxu0 %v4031
    %4093 = vmatprep.subr.mxu0 0.0
    %4094 = vmatpush1.msra.mxu0 %v4032
    %4095 = vmatprep.subr.mxu0 0.0
    %4096 = vmatpush1.msra.mxu0 %v4033
    %4097 = vmatprep.subr.mxu0 0.0
    %4098 = vmatpush1.msra.mxu0 %v4034
    %4099 = vmatprep.subr.mxu0 0.0
    %4100 = vmatpush1.msra.mxu0 0.0
    %4101 = vmatprep.subr.mxu0 0.0
    %4102 = vmatpush1.msra.mxu0 0.0
    %4103 = vmatprep.subr.mxu0 0.0
    %4104 = vmatpush1.msra.mxu0 0.0
    %4105 = vmatprep.subr.mxu0 0.0
    %4106 = vmatpush1.msra.mxu0 0.0
    %4107 = vmatprep.subr.mxu0 0.0
    %4108 = vmatpush1.msra.mxu0 0.0
    %4109 = vmatprep.subr.mxu0 0.0
    %4110 = vmatpush1.msra.mxu0 0.0
    %4111 = vmatprep.subr.mxu0 0.0
    %4112 = vmatpush1.msra.mxu0 0.0
    %4113 = vmatprep.subr.mxu0 0.0
    %4114 = vmatpush1.msra.mxu0 0.0
    %4115 = vmatprep.subr.mxu0 0.0
    %4116 = vmatpush1.msra.mxu0 0.0
    %4117 = vmatprep.subr.mxu0 0.0
    %4118 = vmatpush1.msra.mxu0 0.0
    %4119 = vmatprep.subr.mxu0 0.0
    %4120 = vmatpush1.msra.mxu0 0.0
    %4121 = vmatprep.subr.mxu0 0.0
    %4122 = vmatpush1.msra.mxu0 0.0
    %4123 = vmatprep.subr.mxu0 0.0
    %4124 = vmatpush1.msra.mxu0 0.0
    %4125 = vmatprep.subr.mxu0 0.0
    %4126 = vmatpush1.msra.mxu0 0.0
    %4127 = vmatprep.subr.mxu0 0.0
    %4128 = vmatpush1.msra.mxu0 0.0
    %4129 = vmatprep.subr.mxu0 0.0
    %4130 = vmatpush1.msra.mxu0 0.0
    %4131 = vmatprep.subr.mxu0 0.0
    %4132 = vmatpush1.msra.mxu0 0.0
    %4133 = vmatprep.subr.mxu0 0.0
    %4134 = vmatpush1.msra.mxu0 0.0
    %4135 = vmatprep.subr.mxu0 0.0
    %4136 = vmatpush1.msra.mxu0 0.0
    %4137 = vmatprep.subr.mxu0 0.0
    %4138 = vmatpush1.msra.mxu0 0.0
    %4139 = vmatprep.subr.mxu0 0.0
    %4140 = vmatpush1.msra.mxu0 0.0
    %4141 = vmatprep.subr.mxu0 0.0
    %4142 = vmatpush1.msra.mxu0 0.0
    %4143 = vmatprep.subr.mxu0 0.0
    %4144 = vmatpush1.msra.mxu0 0.0
    %4145 = vmatprep.subr.mxu0 0.0
    %4146 = vmatpush1.msra.mxu0 0.0
    %4147 = vmatprep.mubr.f32.mxu0 0.0
    %4148 = vmatmul.mubr.f32.gmra.mrb[0].mxu0 %v4036
    %v4149 = vpop.f32.mrb[0].mxu0
    %v4150 = vadd.f32 0.0, %v4149
    %v4151 = vpop.f32.mrb[0].mxu0
    %4152 = vmatprep.mubr.f32.mxu0 0.0
    %4153 = vmatmul.mubr.f32.gmra.mrb[0].mxu0 %v4039
    %v4154 = vpop.f32.mrb[0].mxu0
    %v4155 = vadd.f32 0.0, %v4154
    %v4156 = vpop.f32.mrb[0].mxu0
    %4157 = vmatprep.mubr.f32.mxu0 0.0
    %4158 = vmatmul.mubr.f32.gmra.mrb[0].mxu0 %v4042
    %v4159 = vpop.f32.mrb[0].mxu0
    %v4160 = vadd.f32 0.0, %v4159
    %v4161 = vpop.f32.mrb[0].mxu0
    %4162 = vmatprep.mubr.f32.mxu0 0.0
    %4163 = vmatmul.mubr.f32.gmra.mrb[0].mxu0 %v4045
    %v4164 = vpop.f32.mrb[0].mxu0
    %v4165 = vadd.f32 0.0, %v4164
    %v4166 = vpop.f32.mrb[0].mxu0
    %4167 = vmatprep.mubr.f32.mxu0 0.0
    %4168 = vmatmul.mubr.f32.gmra.mrb[0].mxu0 %v4048
    %v4169 = vpop.f32.mrb[0].mxu0
    %v4170 = vadd.f32 0.0, %v4169
    %v4171 = vpop.f32.mrb[0].mxu0
    %4172 = vmatprep.mubr.f32.mxu0 0.0
    %4173 = vmatmul.mubr.f32.gmra.mrb[0].mxu0 %v4051
    %v4174 = vpop.f32.mrb[0].mxu0
    %v4175 = vadd.f32 0.0, %v4174
    %v4176 = vpop.f32.mrb[0].mxu0
    %4177 = vmatprep.mubr.f32.mxu0 0.0
    %4178 = vmatmul.mubr.f32.gmra.mrb[0].mxu0 %v4054
    %v4179 = vpop.f32.mrb[0].mxu0
    %v4180 = vadd.f32 0.0, %v4179
    %v4181 = vpop.f32.mrb[0].mxu0
    %4182 = vmatprep.mubr.f32.mxu0 0.0
    %4183 = vmatmul.mubr.f32.gmra.mrb[0].mxu0 %v4057
    %v4184 = vpop.f32.mrb[0].mxu0
    %v4185 = vadd.f32 0.0, %v4184
    %v4186 = vpop.f32.mrb[0].mxu0
    %4187 = vmatprep.mubr.f32.mxu0 0.0
    %4188 = vmatmul.mubr.f32.gmra.mrb[0].mxu0 %v4060
    %v4189 = vpop.f32.mrb[0].mxu0
    %v4190 = vadd.f32 0.0, %v4189
    %v4191 = vpop.f32.mrb[0].mxu0
    %4192 = vmatprep.mubr.f32.mxu0 0.0
    %4193 = vmatmul.mubr.f32.gmra.mrb[0].mxu0 %v4063
    %v4194 = vpop.f32.mrb[0].mxu0
    %v4195 = vadd.f32 0.0, %v4194
    %v4196 = vpop.f32.mrb[0].mxu0
    %4197 = vmatprep.mubr.f32.mxu0 0.0
    %4198 = vmatmul.mubr.f32.gmra.mrb[0].mxu0 %v4066
    %v4199 = vpop.f32.mrb[0].mxu0
    %v4200 = vadd.f32 0.0, %v4199
    %v4201 = vpop.f32.mrb[0].mxu0
    %4202 = vmatprep.mubr.f32.mxu0 0.0
    %4203 = vmatmul.mubr.f32.gmra.mrb[0].mxu0 %v4069
    %v4204 = vpop.f32.mrb[0].mxu0
    %v4205 = vadd.f32 0.0, %v4204
    %v4206 = vpop.f32.mrb[0].mxu0
    %4207 = vmatprep.mubr.f32.mxu0 0.0
    %4208 = vmatmul.mubr.f32.gmra.mrb[0].mxu0 %v4072
    %v4209 = vpop.f32.mrb[0].mxu0
    %v4210 = vadd.f32 0.0, %v4209
    %v4211 = vpop.f32.mrb[0].mxu0
    %4212 = vmatprep.mubr.f32.mxu0 0.0
    %4213 = vmatmul.mubr.f32.gmra.mrb[0].mxu0 %v4075
    %v4214 = vpop.f32.mrb[0].mxu0
    %v4215 = vadd.f32 0.0, %v4214
    %v4216 = vpop.f32.mrb[0].mxu0
    %4217 = vmatprep.mubr.f32.mxu0 0.0
    %4218 = vmatmul.mubr.f32.gmra.mrb[0].mxu0 %v4078
    %v4219 = vpop.f32.mrb[0].mxu0
    %v4220 = vadd.f32 0.0, %v4219
    %v4221 = vpop.f32.mrb[0].mxu0
    %4222 = vmatprep.mubr.f32.mxu0 0.0
    %4223 = vmatmul.mubr.f32.gmra.mrb[0].mxu0 %v4081
    %v4224 = vpop.f32.mrb[0].mxu0
    %v4225 = vadd.f32 0.0, %v4224
    %v4226 = vpop.f32.mrb[0].mxu0
    %4227 = vdwg.mxu0
    %v4228 = vadd.f32 %v3994, %v4150
    %v4229 = vadd.f32 %v3995, %v4155
    %v4230 = vadd.f32 %v3996, %v4160
    %v4231 = vadd.f32 %v3997, %v4165
    %v4232 = vadd.f32 %v3998, %v4170
    %v4233 = vadd.f32 %v3999, %v4175
    %v4234 = vadd.f32 %v4000, %v4180
    %v4235 = vadd.f32 %v4001, %v4185
    %v4236 = vadd.f32 %v4002, %v4190
    %v4237 = vadd.f32 %v4003, %v4195
    %v4238 = vadd.f32 %v4004, %v4200
    %v4239 = vadd.f32 %v4005, %v4205
    %v4240 = vadd.f32 %v4006, %v4210
    %v4241 = vadd.f32 %v4007, %v4215
    %v4242 = vadd.f32 %v4008, %v4220
    %v4243 = vadd.f32 %v4009, %v4225
    %v4244 = vld [vmem:[%s1514 + $0x2] sm:$0xff]
    %v4245 = vld [vmem:[%s1514 + $0x12] sm:$0xff]
    %v4246 = vld [vmem:[%s1514 + $0x22] sm:$0xff]
    %v4247 = vld [vmem:[%s1514 + $0x32] sm:$0xff]
    %v4248 = vld [vmem:[%s1514 + $0x42] sm:$0xff]
    %v4249 = vld [vmem:[%s1514 + $0x52] sm:$0xff]
    %v4250 = vld [vmem:[%s1514 + $0x62] sm:$0xff]
    %v4251 = vld [vmem:[%s1514 + $0x72] sm:$0xff]
    %v4252 = vld [vmem:[%s1514 + $0xa2] sm:$0xff]
    %v4253 = vld [vmem:[%s1514 + $0xb2] sm:$0xff]
    %v4254 = vld [vmem:[%s1514 + $0xc2] sm:$0xff]
    %v4255 = vld [vmem:[%s1514 + $0xd2] sm:$0xff]
    %v4256 = vld [vmem:[%s1514 + $0xe2] sm:$0xff]
    %v4257 = vld [vmem:[%s1514 + $0xf2] sm:$0xff]
    %v4258 = vld [vmem:[%s1514 + $0x102] sm:$0xff]
    %v4259 = vld [vmem:[%s1514 + $0x112] sm:$0xff]
    %s4260 = scalar_lea.vmem [#allocation8], 512
    %v4261 = vld [vmem:[%s4260] sm:$0xff]
    %v4262 = vld [vmem:[%s4260 + $0x8] sm:$0xff]
    %v4263 = vld [vmem:[%s4260 + $0x10] sm:$0xff]
    %v4264 = vld [vmem:[%s4260 + $0x18] sm:$0xff]
    %v4265 = vld [vmem:[%s4260 + $0x20] sm:$0xff]
    %v4266 = vld [vmem:[%s4260 + $0x28] sm:$0xff]
    %v4267 = vld [vmem:[%s4260 + $0x30] sm:$0xff]
    %v4268 = vld [vmem:[%s4260 + $0x38] sm:$0xff]
    %v4270 = vsel %vm68, %v4244, 0
    %v4273 = vsel %vm68, %v4245, 0
    %v4276 = vsel %vm68, %v4246, 0
    %v4279 = vsel %vm68, %v4247, 0
    %v4282 = vsel %vm68, %v4248, 0
    %v4285 = vsel %vm68, %v4249, 0
    %v4288 = vsel %vm68, %v4250, 0
    %v4291 = vsel %vm68, %v4251, 0
    %v4294 = vsel %vm68, %v4252, 0
    %v4297 = vsel %vm68, %v4253, 0
    %v4300 = vsel %vm68, %v4254, 0
    %v4303 = vsel %vm68, %v4255, 0
    %v4306 = vsel %vm68, %v4256, 0
    %v4309 = vsel %vm68, %v4257, 0
    %v4312 = vsel %vm68, %v4258, 0
    %v4315 = vsel %vm68, %v4259, 0
    %4317 = vmatprep.subr.mxu0 0.0
    %4318 = vmatpush1.msra.mxu0 %v4261
    %4319 = vmatprep.subr.mxu0 0.0
    %4320 = vmatpush1.msra.mxu0 %v4262
    %4321 = vmatprep.subr.mxu0 0.0
    %4322 = vmatpush1.msra.mxu0 %v4263
    %4323 = vmatprep.subr.mxu0 0.0
    %4324 = vmatpush1.msra.mxu0 %v4264
    %4325 = vmatprep.subr.mxu0 0.0
    %4326 = vmatpush1.msra.mxu0 %v4265
    %4327 = vmatprep.subr.mxu0 0.0
    %4328 = vmatpush1.msra.mxu0 %v4266
    %4329 = vmatprep.subr.mxu0 0.0
    %4330 = vmatpush1.msra.mxu0 %v4267
    %4331 = vmatprep.subr.mxu0 0.0
    %4332 = vmatpush1.msra.mxu0 %v4268
    %4333 = vmatprep.subr.mxu0 0.0
    %4334 = vmatpush1.msra.mxu0 0.0
    %4335 = vmatprep.subr.mxu0 0.0
    %4336 = vmatpush1.msra.mxu0 0.0
    %4337 = vmatprep.subr.mxu0 0.0
    %4338 = vmatpush1.msra.mxu0 0.0
    %4339 = vmatprep.subr.mxu0 0.0
    %4340 = vmatpush1.msra.mxu0 0.0
    %4341 = vmatprep.subr.mxu0 0.0
    %4342 = vmatpush1.msra.mxu0 0.0
    %4343 = vmatprep.subr.mxu0 0.0
    %4344 = vmatpush1.msra.mxu0 0.0
    %4345 = vmatprep.subr.mxu0 0.0
    %4346 = vmatpush1.msra.mxu0 0.0
    %4347 = vmatprep.subr.mxu0 0.0
    %4348 = vmatpush1.msra.mxu0 0.0
    %4349 = vmatprep.subr.mxu0 0.0
    %4350 = vmatpush1.msra.mxu0 0.0
    %4351 = vmatprep.subr.mxu0 0.0
    %4352 = vmatpush1.msra.mxu0 0.0
    %4353 = vmatprep.subr.mxu0 0.0
    %4354 = vmatpush1.msra.mxu0 0.0
    %4355 = vmatprep.subr.mxu0 0.0
    %4356 = vmatpush1.msra.mxu0 0.0
    %4357 = vmatprep.subr.mxu0 0.0
    %4358 = vmatpush1.msra.mxu0 0.0
    %4359 = vmatprep.subr.mxu0 0.0
    %4360 = vmatpush1.msra.mxu0 0.0
    %4361 = vmatprep.subr.mxu0 0.0
    %4362 = vmatpush1.msra.mxu0 0.0
    %4363 = vmatprep.subr.mxu0 0.0
    %4364 = vmatpush1.msra.mxu0 0.0
    %4365 = vmatprep.subr.mxu0 0.0
    %4366 = vmatpush1.msra.mxu0 0.0
    %4367 = vmatprep.subr.mxu0 0.0
    %4368 = vmatpush1.msra.mxu0 0.0
    %4369 = vmatprep.subr.mxu0 0.0
    %4370 = vmatpush1.msra.mxu0 0.0
    %4371 = vmatprep.subr.mxu0 0.0
    %4372 = vmatpush1.msra.mxu0 0.0
    %4373 = vmatprep.subr.mxu0 0.0
    %4374 = vmatpush1.msra.mxu0 0.0
    %4375 = vmatprep.subr.mxu0 0.0
    %4376 = vmatpush1.msra.mxu0 0.0
    %4377 = vmatprep.subr.mxu0 0.0
    %4378 = vmatpush1.msra.mxu0 0.0
    %4379 = vmatprep.subr.mxu0 0.0
    %4380 = vmatpush1.msra.mxu0 0.0
    %4381 = vmatprep.mubr.f32.mxu0 0.0
    %4382 = vmatmul.mubr.f32.gmra.mrb[0].mxu0 %v4270
    %v4383 = vpop.f32.mrb[0].mxu0
    %v4384 = vadd.f32 0.0, %v4383
    %v4385 = vpop.f32.mrb[0].mxu0
    %4386 = vmatprep.mubr.f32.mxu0 0.0
    %4387 = vmatmul.mubr.f32.gmra.mrb[0].mxu0 %v4273
    %v4388 = vpop.f32.mrb[0].mxu0
    %v4389 = vadd.f32 0.0, %v4388
    %v4390 = vpop.f32.mrb[0].mxu0
    %4391 = vmatprep.mubr.f32.mxu0 0.0
    %4392 = vmatmul.mubr.f32.gmra.mrb[0].mxu0 %v4276
    %v4393 = vpop.f32.mrb[0].mxu0
    %v4394 = vadd.f32 0.0, %v4393
    %v4395 = vpop.f32.mrb[0].mxu0
    %4396 = vmatprep.mubr.f32.mxu0 0.0
    %4397 = vmatmul.mubr.f32.gmra.mrb[0].mxu0 %v4279
    %v4398 = vpop.f32.mrb[0].mxu0
    %v4399 = vadd.f32 0.0, %v4398
    %v4400 = vpop.f32.mrb[0].mxu0
    %4401 = vmatprep.mubr.f32.mxu0 0.0
    %4402 = vmatmul.mubr.f32.gmra.mrb[0].mxu0 %v4282
    %v4403 = vpop.f32.mrb[0].mxu0
    %v4404 = vadd.f32 0.0, %v4403
    %v4405 = vpop.f32.mrb[0].mxu0
    %4406 = vmatprep.mubr.f32.mxu0 0.0
    %4407 = vmatmul.mubr.f32.gmra.mrb[0].mxu0 %v4285
    %v4408 = vpop.f32.mrb[0].mxu0
    %v4409 = vadd.f32 0.0, %v4408
    %v4410 = vpop.f32.mrb[0].mxu0
    %4411 = vmatprep.mubr.f32.mxu0 0.0
    %4412 = vmatmul.mubr.f32.gmra.mrb[0].mxu0 %v4288
    %v4413 = vpop.f32.mrb[0].mxu0
    %v4414 = vadd.f32 0.0, %v4413
    %v4415 = vpop.f32.mrb[0].mxu0
    %4416 = vmatprep.mubr.f32.mxu0 0.0
    %4417 = vmatmul.mubr.f32.gmra.mrb[0].mxu0 %v4291
    %v4418 = vpop.f32.mrb[0].mxu0
    %v4419 = vadd.f32 0.0, %v4418
    %v4420 = vpop.f32.mrb[0].mxu0
    %4421 = vmatprep.mubr.f32.mxu0 0.0
    %4422 = vmatmul.mubr.f32.gmra.mrb[0].mxu0 %v4294
    %v4423 = vpop.f32.mrb[0].mxu0
    %v4424 = vadd.f32 0.0, %v4423
    %v4425 = vpop.f32.mrb[0].mxu0
    %4426 = vmatprep.mubr.f32.mxu0 0.0
    %4427 = vmatmul.mubr.f32.gmra.mrb[0].mxu0 %v4297
    %v4428 = vpop.f32.mrb[0].mxu0
    %v4429 = vadd.f32 0.0, %v4428
    %v4430 = vpop.f32.mrb[0].mxu0
    %4431 = vmatprep.mubr.f32.mxu0 0.0
    %4432 = vmatmul.mubr.f32.gmra.mrb[0].mxu0 %v4300
    %v4433 = vpop.f32.mrb[0].mxu0
    %v4434 = vadd.f32 0.0, %v4433
    %v4435 = vpop.f32.mrb[0].mxu0
    %4436 = vmatprep.mubr.f32.mxu0 0.0
    %4437 = vmatmul.mubr.f32.gmra.mrb[0].mxu0 %v4303
    %v4438 = vpop.f32.mrb[0].mxu0
    %v4439 = vadd.f32 0.0, %v4438
    %v4440 = vpop.f32.mrb[0].mxu0
    %4441 = vmatprep.mubr.f32.mxu0 0.0
    %4442 = vmatmul.mubr.f32.gmra.mrb[0].mxu0 %v4306
    %v4443 = vpop.f32.mrb[0].mxu0
    %v4444 = vadd.f32 0.0, %v4443
    %v4445 = vpop.f32.mrb[0].mxu0
    %4446 = vmatprep.mubr.f32.mxu0 0.0
    %4447 = vmatmul.mubr.f32.gmra.mrb[0].mxu0 %v4309
    %v4448 = vpop.f32.mrb[0].mxu0
    %v4449 = vadd.f32 0.0, %v4448
    %v4450 = vpop.f32.mrb[0].mxu0
    %4451 = vmatprep.mubr.f32.mxu0 0.0
    %4452 = vmatmul.mubr.f32.gmra.mrb[0].mxu0 %v4312
    %v4453 = vpop.f32.mrb[0].mxu0
    %v4454 = vadd.f32 0.0, %v4453
    %v4455 = vpop.f32.mrb[0].mxu0
    %4456 = vmatprep.mubr.f32.mxu0 0.0
    %4457 = vmatmul.mubr.f32.gmra.mrb[0].mxu0 %v4315
    %v4458 = vpop.f32.mrb[0].mxu0
    %v4459 = vadd.f32 0.0, %v4458
    %v4460 = vpop.f32.mrb[0].mxu0
    %4461 = vdwg.mxu0
    %v4462 = vadd.f32 %v4228, %v4384
    %v4463 = vadd.f32 %v4229, %v4389
    %v4464 = vadd.f32 %v4230, %v4394
    %v4465 = vadd.f32 %v4231, %v4399
    %v4466 = vadd.f32 %v4232, %v4404
    %v4467 = vadd.f32 %v4233, %v4409
    %v4468 = vadd.f32 %v4234, %v4414
    %v4469 = vadd.f32 %v4235, %v4419
    %v4470 = vadd.f32 %v4236, %v4424
    %v4471 = vadd.f32 %v4237, %v4429
    %v4472 = vadd.f32 %v4238, %v4434
    %v4473 = vadd.f32 %v4239, %v4439
    %v4474 = vadd.f32 %v4240, %v4444
    %v4475 = vadd.f32 %v4241, %v4449
    %v4476 = vadd.f32 %v4242, %v4454
    %v4477 = vadd.f32 %v4243, %v4459
    %v4478 = vsel %vm68, %v4462, 0.0
    %v4479 = vsel %vm68, %v4463, 0.0
    %v4480 = vadd.f32 %v4478, %v4479
    %v4481 = vsel %vm68, %v4464, 0.0
    %v4482 = vadd.f32 %v4480, %v4481
    %v4483 = vsel %vm68, %v4465, 0.0
    %v4484 = vadd.f32 %v4482, %v4483
    %v4485 = vsel %vm68, %v4466, 0.0
    %v4486 = vadd.f32 %v4484, %v4485
    %v4487 = vsel %vm68, %v4467, 0.0
    %v4488 = vadd.f32 %v4486, %v4487
    %v4489 = vsel %vm68, %v4468, 0.0
    %v4490 = vadd.f32 %v4488, %v4489
    %v4491 = vsel %vm68, %v4469, 0.0
    %v4492 = vadd.f32 %v4490, %v4491
    %v4493 = vsel %vm68, %v4470, 0.0
    %v4494 = vadd.f32 %v4492, %v4493
    %v4495 = vsel %vm68, %v4471, 0.0
    %v4496 = vadd.f32 %v4494, %v4495
    %v4497 = vsel %vm68, %v4472, 0.0
    %v4498 = vadd.f32 %v4496, %v4497
    %v4499 = vsel %vm68, %v4473, 0.0
    %v4500 = vadd.f32 %v4498, %v4499
    %v4501 = vsel %vm68, %v4474, 0.0
    %v4502 = vadd.f32 %v4500, %v4501
    %v4503 = vsel %vm68, %v4475, 0.0
    %v4504 = vadd.f32 %v4502, %v4503
    %v4505 = vsel %vm68, %v4476, 0.0
    %v4506 = vadd.f32 %v4504, %v4505
    %v4507 = vsel %vm68, %v4477, 0.0
    %v4508 = vadd.f32 %v4506, %v4507
    %v4509 = vrot.slane %v4508, 4
    %v4510 = vadd.f32 %v4508, %v4509
    %v4511 = vrot.slane %v4510, 2
    %v4512 = vadd.f32 %v4510, %v4511
    %v4513 = vrot.slane %v4512, 1
    %v4514 = vadd.f32 %v4512, %v4513
    %v4515 = vmul.f32 %v4514, %v2254
    %v4516 = vsub.f32 %v4462, %v4515
    %v4517 = vsub.f32 %v4463, %v4515
    %v4518 = vsub.f32 %v4464, %v4515
    %v4519 = vsub.f32 %v4465, %v4515
    %v4520 = vsub.f32 %v4466, %v4515
    %v4521 = vsub.f32 %v4467, %v4515
    %v4522 = vsub.f32 %v4468, %v4515
    %v4523 = vsub.f32 %v4469, %v4515
    %v4524 = vsub.f32 %v4470, %v4515
    %v4525 = vsub.f32 %v4471, %v4515
    %v4526 = vsub.f32 %v4472, %v4515
    %v4527 = vsub.f32 %v4473, %v4515
    %v4528 = vsub.f32 %v4474, %v4515
    %v4529 = vsub.f32 %v4475, %v4515
    %v4530 = vsub.f32 %v4476, %v4515
    %v4531 = vsub.f32 %v4477, %v4515
    %v4532 = vmul.f32 %v4516, %v4516
    %v4533 = vmul.f32 %v4517, %v4517
    %v4534 = vmul.f32 %v4518, %v4518
    %v4535 = vmul.f32 %v4519, %v4519
    %v4536 = vmul.f32 %v4520, %v4520
    %v4537 = vmul.f32 %v4521, %v4521
    %v4538 = vmul.f32 %v4522, %v4522
    %v4539 = vmul.f32 %v4523, %v4523
    %v4540 = vmul.f32 %v4524, %v4524
    %v4541 = vmul.f32 %v4525, %v4525
    %v4542 = vmul.f32 %v4526, %v4526
    %v4543 = vmul.f32 %v4527, %v4527
    %v4544 = vmul.f32 %v4528, %v4528
    %v4545 = vmul.f32 %v4529, %v4529
    %v4546 = vmul.f32 %v4530, %v4530
    %v4547 = vmul.f32 %v4531, %v4531
    %v4548 = vsel %vm68, %v4532, 0.0
    %v4549 = vsel %vm68, %v4533, 0.0
    %v4550 = vadd.f32 %v4548, %v4549
    %v4551 = vsel %vm68, %v4534, 0.0
    %v4552 = vadd.f32 %v4550, %v4551
    %v4553 = vsel %vm68, %v4535, 0.0
    %v4554 = vadd.f32 %v4552, %v4553
    %v4555 = vsel %vm68, %v4536, 0.0
    %v4556 = vadd.f32 %v4554, %v4555
    %v4557 = vsel %vm68, %v4537, 0.0
    %v4558 = vadd.f32 %v4556, %v4557
    %v4559 = vsel %vm68, %v4538, 0.0
    %v4560 = vadd.f32 %v4558, %v4559
    %v4561 = vsel %vm68, %v4539, 0.0
    %v4562 = vadd.f32 %v4560, %v4561
    %v4563 = vsel %vm68, %v4540, 0.0
    %v4564 = vadd.f32 %v4562, %v4563
    %v4565 = vsel %vm68, %v4541, 0.0
    %v4566 = vadd.f32 %v4564, %v4565
    %v4567 = vsel %vm68, %v4542, 0.0
    %v4568 = vadd.f32 %v4566, %v4567
    %v4569 = vsel %vm68, %v4543, 0.0
    %v4570 = vadd.f32 %v4568, %v4569
    %v4571 = vsel %vm68, %v4544, 0.0
    %v4572 = vadd.f32 %v4570, %v4571
    %v4573 = vsel %vm68, %v4545, 0.0
    %v4574 = vadd.f32 %v4572, %v4573
    %v4575 = vsel %vm68, %v4546, 0.0
    %v4576 = vadd.f32 %v4574, %v4575
    %v4577 = vsel %vm68, %v4547, 0.0
    %v4578 = vadd.f32 %v4576, %v4577
    %v4579 = vrot.slane %v4578, 4
    %v4580 = vadd.f32 %v4578, %v4579
    %v4581 = vrot.slane %v4580, 2
    %v4582 = vadd.f32 %v4580, %v4581
    %v4583 = vrot.slane %v4582, 1
    %v4584 = vadd.f32 %v4582, %v4583
    %v4585 = vmul.f32 %v4584, %v2254
    %v4586 = vadd.f32 %v4585, 1e-05
    %v4587 = vrsqrt.pop %v4586
    %v4588 = vld [vmem:[%s5] sm:$0x1]
    %v4589 = vmul.f32 %v4587, %v4588
    %v4590 = vlaneseq
    %v4591 = vshrl.u32 %v4590, 7
    %v4592 = vsub.s32 0, %v4591
    %v4593 = vrot.slane %v4589, %v4592
    %v4594 = vmul.f32 %v4516, %v4593
    %v4595 = vmul.f32 %v4517, %v4593
    %v4596 = vmul.f32 %v4518, %v4593
    %v4597 = vmul.f32 %v4519, %v4593
    %v4598 = vmul.f32 %v4520, %v4593
    %v4599 = vmul.f32 %v4521, %v4593
    %v4600 = vmul.f32 %v4522, %v4593
    %v4601 = vmul.f32 %v4523, %v4593
    %v4602 = vmul.f32 %v4524, %v4593
    %v4603 = vmul.f32 %v4525, %v4593
    %v4604 = vmul.f32 %v4526, %v4593
    %v4605 = vmul.f32 %v4527, %v4593
    %v4606 = vmul.f32 %v4528, %v4593
    %v4607 = vmul.f32 %v4529, %v4593
    %v4608 = vmul.f32 %v4530, %v4593
    %v4609 = vmul.f32 %v4531, %v4593
    %v4610 = vld [vmem:[%s6] sm:$0x1]
    %v4612 = vlaneseq
    %v4613 = vshrl.u32 %v4612, 7
    %v4614 = vsub.s32 0, %v4613
    %v4615 = vrot.slane %v4610, %v4614
    %v4617 = vadd.f32 %v4594, %v4615
    %v4618 = vadd.f32 %v4595, %v4615
    %v4619 = vadd.f32 %v4596, %v4615
    %v4620 = vadd.f32 %v4597, %v4615
    %v4621 = vadd.f32 %v4598, %v4615
    %v4622 = vadd.f32 %v4599, %v4615
    %v4623 = vadd.f32 %v4600, %v4615
    %v4624 = vadd.f32 %v4601, %v4615
    %v4625 = vadd.f32 %v4602, %v4615
    %v4626 = vadd.f32 %v4603, %v4615
    %v4627 = vadd.f32 %v4604, %v4615
    %v4628 = vadd.f32 %v4605, %v4615
    %v4629 = vadd.f32 %v4606, %v4615
    %v4630 = vadd.f32 %v4607, %v4615
    %v4631 = vadd.f32 %v4608, %v4615
    %v4632 = vadd.f32 %v4609, %v4615
    %v4633 = vmax.f32 %v4617, 0.0
    %v4634 = vmax.f32 %v4618, 0.0
    %v4635 = vmax.f32 %v4619, 0.0
    %v4636 = vmax.f32 %v4620, 0.0
    %v4637 = vmax.f32 %v4621, 0.0
    %v4638 = vmax.f32 %v4622, 0.0
    %v4639 = vmax.f32 %v4623, 0.0
    %v4640 = vmax.f32 %v4624, 0.0
    %v4641 = vmax.f32 %v4625, 0.0
    %v4642 = vmax.f32 %v4626, 0.0
    %v4643 = vmax.f32 %v4627, 0.0
    %v4644 = vmax.f32 %v4628, 0.0
    %v4645 = vmax.f32 %v4629, 0.0
    %v4646 = vmax.f32 %v4630, 0.0
    %v4647 = vmax.f32 %v4631, 0.0
    %v4648 = vmax.f32 %v4632, 0.0
    %v4649 = vld [vmem:[#allocation3] sm:$0xff]
    %v4650 = vld [vmem:[#allocation3 + $0x8] sm:$0xff]
    %v4651 = vld [vmem:[#allocation3 + $0x10] sm:$0xff]
    %v4652 = vld [vmem:[#allocation3 + $0x18] sm:$0xff]
    %v4653 = vld [vmem:[#allocation3 + $0x20] sm:$0xff]
    %v4654 = vld [vmem:[#allocation3 + $0x28] sm:$0xff]
    %v4655 = vld [vmem:[#allocation3 + $0x30] sm:$0xff]
    %v4656 = vld [vmem:[#allocation3 + $0x38] sm:$0xff]
    %v4657 = vld [vmem:[#allocation3 + $0x40] sm:$0xff]
    %v4658 = vld [vmem:[#allocation3 + $0x48] sm:$0xff]
    %v4659 = vld [vmem:[#allocation3 + $0x50] sm:$0xff]
    %v4660 = vld [vmem:[#allocation3 + $0x58] sm:$0xff]
    %v4661 = vld [vmem:[#allocation3 + $0x60] sm:$0xff]
    %v4662 = vld [vmem:[#allocation3 + $0x68] sm:$0xff]
    %v4663 = vld [vmem:[#allocation3 + $0x70] sm:$0xff]
    %v4664 = vld [vmem:[#allocation3 + $0x78] sm:$0xff]
    %v4665 = vadd.f32 %v4649, %v4633
    %v4666 = vadd.f32 %v4650, %v4634
    %v4667 = vadd.f32 %v4651, %v4635
    %v4668 = vadd.f32 %v4652, %v4636
    %v4669 = vadd.f32 %v4653, %v4637
    %v4670 = vadd.f32 %v4654, %v4638
    %v4671 = vadd.f32 %v4655, %v4639
    %v4672 = vadd.f32 %v4656, %v4640
    %v4673 = vadd.f32 %v4657, %v4641
    %v4674 = vadd.f32 %v4658, %v4642
    %v4675 = vadd.f32 %v4659, %v4643
    %v4676 = vadd.f32 %v4660, %v4644
    %v4677 = vadd.f32 %v4661, %v4645
    %v4678 = vadd.f32 %v4662, %v4646
    %v4679 = vadd.f32 %v4663, %v4647
    %v4680 = vadd.f32 %v4664, %v4648
    %v4681 = vmax.f32 %v4665, 0.0
    %v4682 = vmax.f32 %v4666, 0.0
    %v4683 = vmax.f32 %v4667, 0.0
    %v4684 = vmax.f32 %v4668, 0.0
    %v4685 = vmax.f32 %v4669, 0.0
    %v4686 = vmax.f32 %v4670, 0.0
    %v4687 = vmax.f32 %v4671, 0.0
    %v4688 = vmax.f32 %v4672, 0.0
    %v4689 = vmax.f32 %v4673, 0.0
    %v4690 = vmax.f32 %v4674, 0.0
    %v4691 = vmax.f32 %v4675, 0.0
    %v4692 = vmax.f32 %v4676, 0.0
    %v4693 = vmax.f32 %v4677, 0.0
    %v4694 = vmax.f32 %v4678, 0.0
    %v4695 = vmax.f32 %v4679, 0.0
    %v4696 = vmax.f32 %v4680, 0.0
    %4697 = vst.msk [vmem:[#allocation9] sm:$0xff] %vm68, %v4681
    %4698 = vst.msk [vmem:[#allocation9 + $0x8] sm:$0xff] %vm68, %v4682
    %4699 = vst.msk [vmem:[#allocation9 + $0x10] sm:$0xff] %vm68, %v4683
    %4700 = vst.msk [vmem:[#allocation9 + $0x18] sm:$0xff] %vm68, %v4684
    %4701 = vst.msk [vmem:[#allocation9 + $0x20] sm:$0xff] %vm68, %v4685
    %4702 = vst.msk [vmem:[#allocation9 + $0x28] sm:$0xff] %vm68, %v4686
    %4703 = vst.msk [vmem:[#allocation9 + $0x30] sm:$0xff] %vm68, %v4687
    %4704 = vst.msk [vmem:[#allocation9 + $0x38] sm:$0xff] %vm68, %v4688
    %4705 = vst.msk [vmem:[#allocation9 + $0x40] sm:$0xff] %vm68, %v4689
    %4706 = vst.msk [vmem:[#allocation9 + $0x48] sm:$0xff] %vm68, %v4690
    %4707 = vst.msk [vmem:[#allocation9 + $0x50] sm:$0xff] %vm68, %v4691
    %4708 = vst.msk [vmem:[#allocation9 + $0x58] sm:$0xff] %vm68, %v4692
    %4709 = vst.msk [vmem:[#allocation9 + $0x60] sm:$0xff] %vm68, %v4693
    %4710 = vst.msk [vmem:[#allocation9 + $0x68] sm:$0xff] %vm68, %v4694
    %4711 = vst.msk [vmem:[#allocation9 + $0x70] sm:$0xff] %vm68, %v4695
    %4712 = vst.msk [vmem:[#allocation9 + $0x78] sm:$0xff] %vm68, %v4696
    // Predicated region
    $region42: #{tpu_custom_call.1} parent=1 // pred_check
      _
    $region43: #{tpu_custom_call.1} parent=1 // pred_check_branch
      %4714 = sbr.rel (0) target = $region45
    $region44: #{tpu_custom_call.1} parent=1 // pred_region
      %s4716 = ssub.s32 2048, 2048
      %4717 = vsyncadd [#allocation5], %s4716
      %s4718 = sshll.u32 [#allocation9], 4
      %s4719 = int_to_ptr.vmem [resolvable:$true] %s4718
      %4724 = dma.vmem_to_hbm [thread:$0]  %s4719, 2048, %s7, [#allocation5], 128, 128, 8
    $region45: #{tpu_custom_call.1} parent=1 // pred_fallthru
      _
    // Predicated region
    $region46: #{tpu_custom_call.1} parent=1 // pred_check
      _
    $region47: #{tpu_custom_call.1} parent=1 // pred_check_branch
      %4726 = sbr.rel (0) target = $region49
    $region48: #{tpu_custom_call.1} parent=1 // pred_region
      %4727 = dma.done [#allocation5], 2048
    $region49: #{tpu_custom_call.1} parent=1 // pred_fallthru
      _
    %4728 = vsyncpa [#allocation4], 1
    %4729 = vsyncpa [#allocation7], 1
    %4730 = vsyncpa [#allocation5], 1

</llo_original>
